<compile_context>
chip_gen: v6e
topology: v6e:2x2x1
jax: 0.10.0
libtpu: 0.0.40
codegen_flags: <defaults>
</compile_context>

<pallas_src>
import math
import numpy as np
import jax
import jax.numpy as jnp
from jax.experimental import pallas as pl
from jax.experimental.pallas import tpu as pltpu

# ------------------------- small synthetic config ---------------------------
B = 2
C_IMG, H_IMG, W_IMG = 16, 4, 4          # torchvision-style backbone output (pre global_view)
T_ROI, C_ROI = 8, 32                     # faster_rcnn-style ROI features
T_TXT, C_TXT = 8, 32                     # text model word vectors
INTERNAL_DIMS = 32                       # internal_dims
CLASSIFIER_DIMS = 32                     # classifier_dims
N_TOKENS_OUT = 8                         # n_tokens_out
N_HEADS = 4
N_ENCODERS = 1                           # n_layers
N_DECODERS = 1
NUM_CLASSES = 2
FFN_DIM = 4 * INTERNAL_DIMS

D = INTERNAL_DIMS
DH = D // N_HEADS
LANES = 128                              # padded lane width for all activations/weights
MXU_DTYPE = jnp.bfloat16                 # bf16 operands, f32 accumulation on the MXU
LN_EPS = 1e-5


# --------------------------- parameter slab packing --------------------------
class _SlabBuilder:
    """Packs many small 2-D parameters into a single (rows, 128) slab.

    Every piece is zero-padded to the full 128-lane width; row offsets are
    recorded so the kernel can carve each piece back out with a static,
    tile-aligned slice (a cheap view load, no per-parameter DMA)."""

    def __init__(self, dtype, row_align):
        self._pieces, self._layout = [], {}
        self._rows, self._dtype, self._align = 0, dtype, row_align

    def add(self, name, arr):
        arr = jnp.asarray(arr, jnp.float32)
        if arr.ndim == 1:
            arr = arr[None, :]
        k, n = arr.shape
        assert n <= LANES
        kp = -(-k // self._align) * self._align
        self._pieces.append(jnp.pad(arr, ((0, kp - k), (0, LANES - n))))
        self._layout[name] = (self._rows, k)
        self._rows += kp

    def build(self):
        slab = jnp.concatenate(self._pieces, axis=0)
        pad = (-slab.shape[0]) % 8
        if pad:
            slab = jnp.pad(slab, ((0, pad), (0, 0)))
        return slab.astype(self._dtype), dict(self._layout)


def _pad_rows(w, rows):
    """Zero-pad the contraction (K) dim so a weight can multiply 128-wide,
    zero-tailed activations directly."""
    return jnp.pad(w, ((0, rows - w.shape[0]), (0, 0)))


# --------------------------- the single fused kernel --------------------------
def _make_featurizer_kernel(layout_w, layout_f):
    """Whole TransformerEnsembleFeaturizer forward for ONE batch element per
    grid step.  All weights/activations are VMEM-resident, 128-lane padded."""

    def kernel(x_ref, w_ref, f_ref, o_ref):
        def W(name):                                   # bf16 weight slice (view)
            off, k = layout_w[name]
            return w_ref[off:off + k, :]

        def Fv(name):                                  # f32 vector/matrix slice
            off, k = layout_f[name]
            return f_ref[off:off + k, :]

        def mm(x, wname):                              # bf16 matmul, f32 accumulate
            return jnp.dot(x.astype(MXU_DTYPE), W(wname),
                           preferred_element_type=jnp.float32)

        def layernorm(x, gname, bname):
            # activations carry an exact-zero tail in lanes [D:128]; use masked
            # moments (divide by the real width D). gamma/beta tails are zero,
            # so the output tail stays zero.
            mu = jnp.sum(x, axis=-1, keepdims=True) * (1.0 / D)
            var = jnp.sum(x * x, axis=-1, keepdims=True) * (1.0 / D) - mu * mu
            return (x - mu) * jax.lax.rsqrt(var + LN_EPS) * Fv(gname) + Fv(bname)

        def mha(q_src, kv_src, q_off, k_off, v_off, ow, ob):
            # q_src/kv_src: (T, 128) f32 with Q/K/V in known lane ranges.
            qb = q_src.astype(MXU_DTYPE)               # cast ONCE (hoisted out of head loop)
            kb = kv_src.astype(MXU_DTYPE)
            heads = []
            for h in range(N_HEADS):                   # static unroll, N_HEADS=4
                qh = qb[:, q_off + h * DH:q_off + (h + 1) * DH]
                kh = kb[:, k_off + h * DH:k_off + (h + 1) * DH]
                vh = kb[:, v_off + h * DH:v_off + (h + 1) * DH]
                # 1/sqrt(dh) is already folded into the Q weights/biases.
                s = jax.lax.dot_general(qh, kh, (((1,), (1,)), ((), ())),
                                        preferred_element_type=jnp.float32)
                s = s - jnp.max(s, axis=-1, keepdims=True)
                p = jnp.exp(s)
                p = p * pl.reciprocal(jnp.sum(p, axis=-1, keepdims=True), approx=True)
                heads.append(jnp.dot(p.astype(MXU_DTYPE), vh,
                                     preferred_element_type=jnp.float32))
            # head-concat folded into ONE K=D output projection (no K=8 matmuls)
            o = jnp.concatenate(heads, axis=-1)        # (Tq, D) f32
            return mm(o, ow) + Fv(ob)

        # --- fused modality projections (+ per-modality bias + positional enc) ---
        x = jnp.dot(x_ref[0], W("wcomb"),
                    preferred_element_type=jnp.float32) + Fv("addin")

        # --- encoder stack ---
        for li in range(N_ENCODERS):
            pre = f"enc{li}_"
            qkv = mm(x, pre + "qkv_w") + Fv(pre + "qkv_b")      # Q|K|V|0 lanes
            a = mha(qkv, qkv, 0, D, 2 * D, pre + "o_w", pre + "o_b")
            x = layernorm(x + a, pre + "ln1_g", pre + "ln1_b")
            hdn = jnp.maximum(mm(x, pre + "ffn1_w") + Fv(pre + "ffn1_b"), 0.0)
            hdn = mm(hdn, pre + "ffn2_w") + Fv(pre + "ffn2_b")
            x = layernorm(x + hdn, pre + "ln2_g", pre + "ln2_b")
        mem = x

        # --- decoder stack with learned output query tokens ---
        t = Fv("queries")
        for li in range(N_DECODERS):
            pre = f"dec{li}_"
            qkv = mm(t, pre + "sa_qkv_w") + Fv(pre + "sa_qkv_b")
            a = mha(qkv, qkv, 0, D, 2 * D, pre + "sa_o_w", pre + "sa_o_b")
            t = layernorm(t + a, pre + "ln1_g", pre + "ln1_b")
            q = mm(t, pre + "ca_q_w") + Fv(pre + "ca_q_b")
            kv = mm(mem, pre + "ca_kv_w") + Fv(pre + "ca_kv_b")  # K|V|0 lanes
            a = mha(q, kv, 0, 0, D, pre + "ca_o_w", pre + "ca_o_b")
            t = layernorm(t + a, pre + "ln2_g", pre + "ln2_b")
            hdn = jnp.maximum(mm(t, pre + "ffn1_w") + Fv(pre + "ffn1_b"), 0.0)
            hdn = mm(hdn, pre + "ffn2_w") + Fv(pre + "ffn2_b")
            t = layernorm(t + hdn, pre + "ln3_g", pre + "ln3_b")

        # --- output projection; lane-dense (8, 128) unmasked store ---
        o_ref[0] = mm(t, "out_proj_w") + Fv("out_proj_b")

    return kernel


def _fused_featurizer(xcomb, w_slab, f_slab, layout_w, layout_f):
    bn, t_total, _ = xcomb.shape
    rw, rf = w_slab.shape[0], f_slab.shape[0]
    kernel = _make_featurizer_kernel(layout_w, layout_f)
    return pl.pallas_call(
        kernel,
        out_shape=jax.ShapeDtypeStruct((bn, N_TOKENS_OUT, LANES), jnp.float32),
        grid=(bn,),
        in_specs=[
            pl.BlockSpec((1, t_total, LANES), lambda b: (b, 0, 0)),   # per-batch tokens
            pl.BlockSpec((rw, LANES), lambda b: (0, 0)),              # weight slab (shared)
            pl.BlockSpec((rf, LANES), lambda b: (0, 0)),              # f32 slab (shared)
        ],
        out_specs=pl.BlockSpec((1, N_TOKENS_OUT, LANES), lambda b: (b, 0, 0)),
        compiler_params=pltpu.CompilerParams(
            dimension_semantics=("parallel",)),       # batch-per-TensorCore on v7x
    )(xcomb, w_slab, f_slab)


# --------------------------- parameter construction --------------------------
def _dense(key, fan_in, fan_out, scale=0.02):
    return {"w": jax.random.normal(key, (fan_in, fan_out), jnp.float32) * scale,
            "b": jnp.zeros((fan_out,), jnp.float32)}


def _ln_params(d):
    return {"g": jnp.ones((d,), jnp.float32), "b": jnp.zeros((d,), jnp.float32)}


def _self_attn_params(key, d):
    k1, k2 = jax.random.split(key)
    return {"qkv": _dense(k1, d, 3 * d), "o": _dense(k2, d, d)}


def _cross_attn_params(key, d):
    k1, k2, k3 = jax.random.split(key, 3)
    return {"q": _dense(k1, d, d), "kv": _dense(k2, d, 2 * d), "o": _dense(k3, d, d)}


def _enc_layer_params(key, d):
    k1, k2, k3 = jax.random.split(key, 3)
    return {"self_attn": _self_attn_params(k1, d), "ln1": _ln_params(d),
            "ffn1": _dense(k2, d, FFN_DIM), "ffn2": _dense(k3, FFN_DIM, d),
            "ln2": _ln_params(d)}


def _dec_layer_params(key, d):
    k1, k2, k3, k4 = jax.random.split(key, 4)
    return {"self_attn": _self_attn_params(k1, d), "ln1": _ln_params(d),
            "cross_attn": _cross_attn_params(k2, d), "ln2": _ln_params(d),
            "ffn1": _dense(k3, d, FFN_DIM), "ffn2": _dense(k4, FFN_DIM, d),
            "ln3": _ln_params(d)}


def init_params(key):
    ks = jax.random.split(key, 8)
    d = INTERNAL_DIMS
    return {
        # per-modality input layers of TransformerEnsembleFeaturizer
        "img_proj": _dense(ks[0], C_IMG, d),   # 1x1 Conv2d == per-pixel linear
        "roi_proj": _dense(ks[1], C_ROI, d),
        "txt_proj": _dense(ks[2], C_TXT, d),
        "queries": jax.random.normal(ks[3], (N_TOKENS_OUT, d), jnp.float32) * 0.02,
        "enc_layers": [_enc_layer_params(k, d)
                       for k in jax.random.split(ks[4], N_ENCODERS)],
        "dec_layers": [_dec_layer_params(k, d)
                       for k in jax.random.split(ks[5], N_DECODERS)],
        "out_proj": _dense(ks[6], d, CLASSIFIER_DIMS),
        "cls": _dense(ks[7], CLASSIFIER_DIMS, NUM_CLASSES),
    }


def sinusoidal_pe(T, D_):
    pos = np.arange(T)[:, None].astype(np.float64)
    i = np.arange(D_)[None, :]
    angle = pos / np.power(10000.0, (2 * (i // 2)) / D_)
    pe = np.where(i % 2 == 0, np.sin(angle), np.cos(angle))
    return jnp.asarray(pe, jnp.float32)


# --------------------- pack all parameters into 2 slabs ----------------------
def _build_param_slabs(params, wcomb, addin):
    d = INTERNAL_DIMS
    scale = 1.0 / math.sqrt(DH)
    # fold the 1/sqrt(dh) softmax scale into the Q columns of the QKV projection
    qscale = jnp.concatenate([jnp.full((d,), scale, jnp.float32),
                              jnp.ones((2 * d,), jnp.float32)])[None, :]

    wb = _SlabBuilder(MXU_DTYPE, row_align=16)   # bf16 weight slab
    fb = _SlabBuilder(jnp.float32, row_align=8)  # f32 bias/LN/addin/queries slab

    fb.add("addin", addin)                       # multi-row pieces first (aligned)
    fb.add("queries", params["queries"])

    wb.add("wcomb", _pad_rows(wcomb, LANES))

    for li, p in enumerate(params["enc_layers"]):
        pre = f"enc{li}_"
        sa = p["self_attn"]
        wb.add(pre + "qkv_w", _pad_rows(sa["qkv"]["w"] * qscale, LANES))
        wb.add(pre + "o_w", sa["o"]["w"])
        wb.add(pre + "ffn1_w", _pad_rows(p["ffn1"]["w"], LANES))
        wb.add(pre + "ffn2_w", p["ffn2"]["w"])
        fb.add(pre + "qkv_b", sa["qkv"]["b"] * qscale[0])
        fb.add(pre + "o_b", sa["o"]["b"])
        fb.add(pre + "ln1_g", p["ln1"]["g"]); fb.add(pre + "ln1_b", p["ln1"]["b"])
        fb.add(pre + "ffn1_b", p["ffn1"]["b"]); fb.add(pre + "ffn2_b", p["ffn2"]["b"])
        fb.add(pre + "ln2_g", p["ln2"]["g"]); fb.add(pre + "ln2_b", p["ln2"]["b"])

    for li, p in enumerate(params["dec_layers"]):
        pre = f"dec{li}_"
        sa, ca = p["self_attn"], p["cross_attn"]
        wb.add(pre + "sa_qkv_w", _pad_rows(sa["qkv"]["w"] * qscale, LANES))
        wb.add(pre + "sa_o_w", sa["o"]["w"])
        wb.add(pre + "ca_q_w", _pad_rows(ca["q"]["w"] * scale, LANES))
        wb.add(pre + "ca_kv_w", _pad_rows(ca["kv"]["w"], LANES))
        wb.add(pre + "ca_o_w", ca["o"]["w"])
        wb.add(pre + "ffn1_w", _pad_rows(p["ffn1"]["w"], LANES))
        wb.add(pre + "ffn2_w", p["ffn2"]["w"])
        fb.add(pre + "sa_qkv_b", sa["qkv"]["b"] * qscale[0])
        fb.add(pre + "sa_o_b", sa["o"]["b"])
        fb.add(pre + "ln1_g", p["ln1"]["g"]); fb.add(pre + "ln1_b", p["ln1"]["b"])
        fb.add(pre + "ca_q_b", ca["q"]["b"] * scale)
        fb.add(pre + "ca_kv_b", ca["kv"]["b"])
        fb.add(pre + "ca_o_b", ca["o"]["b"])
        fb.add(pre + "ln2_g", p["ln2"]["g"]); fb.add(pre + "ln2_b", p["ln2"]["b"])
        fb.add(pre + "ffn1_b", p["ffn1"]["b"]); fb.add(pre + "ffn2_b", p["ffn2"]["b"])
        fb.add(pre + "ln3_g", p["ln3"]["g"]); fb.add(pre + "ln3_b", p["ln3"]["b"])

    wb.add("out_proj_w", _pad_rows(params["out_proj"]["w"], LANES))
    fb.add("out_proj_b", params["out_proj"]["b"])

    w_slab, layout_w = wb.build()
    f_slab, layout_f = fb.build()
    return w_slab, layout_w, f_slab, layout_f


# ------------------------------- forward pass --------------------------------
def model_forward(params, img_feat, roi_feat, txt_feat, labels):
    d = INTERNAL_DIMS
    bn, c, hh, ww = img_feat.shape

    # ---- post_proc for the torchvision modality: global_view (pool + concat) ----
    pooled = jnp.mean(img_feat, axis=(2, 3), keepdims=True)           # AdaptiveAvgPool2d(1)
    xv = jnp.broadcast_to(pooled, (bn, c, hh, 1))                     # expand(-1,-1,H,-1)
    gv = jnp.concatenate([img_feat, xv], axis=3)                      # cat dim 3 -> (B,C,H,W+1)
    img_tok = gv.transpose(0, 2, 3, 1).reshape(bn, hh * (ww + 1), c)  # (B, T_IMG, C_IMG)

    t_img, t_roi, t_txt = img_tok.shape[1], roi_feat.shape[1], txt_feat.shape[1]
    t_total = t_img + t_roi + t_txt
    c_total = C_IMG + C_ROI + C_TXT

    # ---- block-diagonal packing of all three modalities, padded to 128 lanes ----
    # (the fused in-kernel projection is then one full-lane, unmasked matmul)
    img_row = jnp.pad(img_tok,  ((0, 0), (0, 0), (0, LANES - C_IMG)))
    roi_row = jnp.pad(roi_feat, ((0, 0), (0, 0), (C_IMG, LANES - C_IMG - C_ROI)))
    txt_row = jnp.pad(txt_feat, ((0, 0), (0, 0), (C_IMG + C_ROI, LANES - c_total)))
    xcomb = jnp.concatenate([img_row, roi_row, txt_row], axis=1).astype(MXU_DTYPE)

    wcomb = jnp.concatenate([params["img_proj"]["w"], params["roi_proj"]["w"],
                             params["txt_proj"]["w"]], axis=0)        # (c_total, d)
    row_bias = jnp.concatenate([
        jnp.tile(params["img_proj"]["b"][None, :], (t_img, 1)),
        jnp.tile(params["roi_proj"]["b"][None, :], (t_roi, 1)),
        jnp.tile(params["txt_proj"]["b"][None, :], (t_txt, 1))], axis=0)
    addin = row_bias + sinusoidal_pe(t_total, d)                      # bias + PE, folded

    # ---- pack every parameter into two slabs (3 total kernel inputs) ----
    w_slab, layout_w, f_slab, layout_f = _build_param_slabs(params, wcomb, addin)

    # ---- the whole featurizer (encoder + decoder + output proj) in ONE kernel ----
    vec_padded = _fused_featurizer(xcomb, w_slab, f_slab, layout_w, layout_f)
    vectors = vec_padded[:, :, :CLASSIFIER_DIMS]       # (B, n_tokens_out, classifier_dims)

    # ---- final_layer: pooled classifier + cross-entropy loss (tiny; plain JAX) ----
    pooled_vec = vectors.mean(axis=1)                  # == vectors.mean(1)
    logits = pooled_vec @ params["cls"]["w"] + params["cls"]["b"]
    logp = jax.nn.log_softmax(logits, axis=-1)
    loss = -jnp.mean(jnp.take_along_axis(logp, labels[:, None], axis=1))

    return logits, pooled_vec, vectors, loss


# ------------------------------------ main -----------------------------------
if __name__ == "__main__":
    root = jax.random.PRNGKey(0)
    k_param, k_img, k_roi, k_txt = jax.random.split(root, 4)

    params = init_params(k_param)

    img_feat = jax.random.normal(k_img, (B, C_IMG, H_IMG, W_IMG), jnp.float32)
    roi_feat = jax.random.normal(k_roi, (B, T_ROI, C_ROI), jnp.float32)
    txt_feat = jax.random.normal(k_txt, (B, T_TXT, C_TXT), jnp.float32)
    labels = jnp.array([0, 1], dtype=jnp.int32)

    fwd = jax.jit(model_forward)
    logits, pooled, vectors, loss = fwd(params, img_feat, roi_feat, txt_feat, labels)
    jax.block_until_ready((logits, pooled, vectors, loss))

    assert logits.shape == (B, NUM_CLASSES)
    assert pooled.shape == (B, CLASSIFIER_DIMS)
    assert vectors.shape == (B, N_TOKENS_OUT, CLASSIFIER_DIMS)
    assert loss.shape == ()
    assert bool(jnp.isfinite(loss))
    print("KERNEL_OK")
</pallas_src>

<mosaic_0001>
module attributes {stable_mosaic.version = 11 : i64} {
  func.func @kernel(%arg0: i32, %arg1: memref<1x36x128xbf16, #tpu.memory_space<vmem>>, %arg2: memref<1376x128xbf16, #tpu.memory_space<vmem>>, %arg3: memref<224x128xf32, #tpu.memory_space<vmem>>, %arg4: memref<1x8x128xf32, #tpu.memory_space<vmem>>) attributes {dimension_semantics = [#tpu.dimension_semantics<parallel>], iteration_bounds = array<i64: 2>, scalar_prefetch = 0 : i64, scratch_operands = 0 : i64, tpu.core_type = #tpu.core_type<tc>, window_params = [{transform_indices = @transform_0, window_bounds = array<i64: 1, 36, 128>}, {pipeline_mode = #tpu.pipeline_mode<synchronous>, transform_indices = @transform_1, window_bounds = array<i64: 1376, 128>}, {pipeline_mode = #tpu.pipeline_mode<synchronous>, transform_indices = @transform_2, window_bounds = array<i64: 224, 128>}, {transform_indices = @transform_3, window_bounds = array<i64: 1, 8, 128>}]} {
    %c0 = arith.constant 0 : index
    %c0_0 = arith.constant 0 : index
    %c0_1 = arith.constant 0 : index
    %0 = vector.load %arg1[%c0, %c0_0, %c0_1] : memref<1x36x128xbf16, #tpu.memory_space<vmem>>, vector<1x36x128xbf16>
    %1 = vector.shape_cast %0 : vector<1x36x128xbf16> to vector<36x128xbf16>
    %c0_2 = arith.constant 0 : index
    %c0_3 = arith.constant 0 : index
    %2 = vector.load %arg2[%c0_2, %c0_3] : memref<1376x128xbf16, #tpu.memory_space<vmem>>, vector<128x128xbf16>
    %cst = arith.constant dense<0.000000e+00> : vector<36x128xf32>
    %3 = tpu.matmul %1, %2, %cst {dimension_numbers = #tpu.dot_dimension_numbers<[1], [0], [0], [1], [0, 0, 1, 1], [], []>} : vector<36x128xbf16>, vector<128x128xbf16>, vector<36x128xf32> -> vector<36x128xf32>
    %c0_4 = arith.constant 0 : index
    %c0_5 = arith.constant 0 : index
    %4 = vector.load %arg3[%c0_4, %c0_5] : memref<224x128xf32, #tpu.memory_space<vmem>>, vector<36x128xf32>
    %5 = arith.addf %3, %4 : vector<36x128xf32>
    %6 = arith.truncf %5 : vector<36x128xf32> to vector<36x128xbf16>
    %c128 = arith.constant 128 : index
    %c0_6 = arith.constant 0 : index
    %7 = vector.load %arg2[%c128, %c0_6] : memref<1376x128xbf16, #tpu.memory_space<vmem>>, vector<128x128xbf16>
    %cst_7 = arith.constant dense<0.000000e+00> : vector<36x128xf32>
    %8 = tpu.matmul %6, %7, %cst_7 {dimension_numbers = #tpu.dot_dimension_numbers<[1], [0], [0], [1], [0, 0, 1, 1], [], []>} : vector<36x128xbf16>, vector<128x128xbf16>, vector<36x128xf32> -> vector<36x128xf32>
    %c48 = arith.constant 48 : index
    %c0_8 = arith.constant 0 : index
    %9 = vector.load %arg3[%c48, %c0_8] : memref<224x128xf32, #tpu.memory_space<vmem>>, vector<1x128xf32>
    %10 = vector.broadcast %9 : vector<1x128xf32> to vector<36x128xf32>
    %11 = arith.addf %8, %10 : vector<36x128xf32>
    %12 = arith.truncf %11 : vector<36x128xf32> to vector<36x128xbf16>
    %13 = arith.truncf %11 : vector<36x128xf32> to vector<36x128xbf16>
    %14 = vector.extract_strided_slice %12 {offsets = [0, 0], sizes = [36, 8], strides = [1, 1]} : vector<36x128xbf16> to vector<36x8xbf16>
    %15 = vector.extract_strided_slice %13 {offsets = [0, 32], sizes = [36, 8], strides = [1, 1]} : vector<36x128xbf16> to vector<36x8xbf16>
    %16 = vector.extract_strided_slice %13 {offsets = [0, 64], sizes = [36, 8], strides = [1, 1]} : vector<36x128xbf16> to vector<36x8xbf16>
    %cst_9 = arith.constant dense<0.000000e+00> : vector<36x36xf32>
    %17 = tpu.matmul %14, %15, %cst_9 {dimension_numbers = #tpu.dot_dimension_numbers<[1], [1], [0], [0], [0, 0, 1, 0], [], []>} : vector<36x8xbf16>, vector<36x8xbf16>, vector<36x36xf32> -> vector<36x36xf32>
    %cst_10 = arith.constant dense<0xFF800000> : vector<36xf32>
    %18 = vector.multi_reduction <maximumf>, %17, %cst_10 [1] : vector<36x36xf32> to vector<36xf32>
    %19 = vector.shape_cast %18 : vector<36xf32> to vector<36x1xf32>
    %20 = vector.broadcast %19 : vector<36x1xf32> to vector<36x36xf32>
    %21 = arith.subf %17, %20 : vector<36x36xf32>
    %22 = math.exp %21 : vector<36x36xf32>
    %cst_11 = arith.constant dense<0.000000e+00> : vector<36xf32>
    %23 = vector.multi_reduction <add>, %22, %cst_11 [1] : vector<36x36xf32> to vector<36xf32>
    %24 = vector.shape_cast %23 : vector<36xf32> to vector<36x1xf32>
    %25 = tpu.reciprocal %24 {approx = true} : vector<36x1xf32> -> vector<36x1xf32>
    %26 = vector.broadcast %25 : vector<36x1xf32> to vector<36x36xf32>
    %27 = arith.mulf %22, %26 : vector<36x36xf32>
    %28 = arith.truncf %27 : vector<36x36xf32> to vector<36x36xbf16>
    %cst_12 = arith.constant dense<0.000000e+00> : vector<36x8xf32>
    %29 = tpu.matmul %28, %16, %cst_12 {dimension_numbers = #tpu.dot_dimension_numbers<[1], [0], [0], [1], [0, 0, 1, 1], [], []>} : vector<36x36xbf16>, vector<36x8xbf16>, vector<36x8xf32> -> vector<36x8xf32>
    %30 = vector.extract_strided_slice %12 {offsets = [0, 8], sizes = [36, 8], strides = [1, 1]} : vector<36x128xbf16> to vector<36x8xbf16>
    %31 = vector.extract_strided_slice %13 {offsets = [0, 40], sizes = [36, 8], strides = [1, 1]} : vector<36x128xbf16> to vector<36x8xbf16>
    %32 = vector.extract_strided_slice %13 {offsets = [0, 72], sizes = [36, 8], strides = [1, 1]} : vector<36x128xbf16> to vector<36x8xbf16>
    %cst_13 = arith.constant dense<0.000000e+00> : vector<36x36xf32>
    %33 = tpu.matmul %30, %31, %cst_13 {dimension_numbers = #tpu.dot_dimension_numbers<[1], [1], [0], [0], [0, 0, 1, 0], [], []>} : vector<36x8xbf16>, vector<36x8xbf16>, vector<36x36xf32> -> vector<36x36xf32>
    %cst_14 = arith.constant dense<0xFF800000> : vector<36xf32>
    %34 = vector.multi_reduction <maximumf>, %33, %cst_14 [1] : vector<36x36xf32> to vector<36xf32>
    %35 = vector.shape_cast %34 : vector<36xf32> to vector<36x1xf32>
    %36 = vector.broadcast %35 : vector<36x1xf32> to vector<36x36xf32>
    %37 = arith.subf %33, %36 : vector<36x36xf32>
    %38 = math.exp %37 : vector<36x36xf32>
    %cst_15 = arith.constant dense<0.000000e+00> : vector<36xf32>
    %39 = vector.multi_reduction <add>, %38, %cst_15 [1] : vector<36x36xf32> to vector<36xf32>
    %40 = vector.shape_cast %39 : vector<36xf32> to vector<36x1xf32>
    %41 = tpu.reciprocal %40 {approx = true} : vector<36x1xf32> -> vector<36x1xf32>
    %42 = vector.broadcast %41 : vector<36x1xf32> to vector<36x36xf32>
    %43 = arith.mulf %38, %42 : vector<36x36xf32>
    %44 = arith.truncf %43 : vector<36x36xf32> to vector<36x36xbf16>
    %cst_16 = arith.constant dense<0.000000e+00> : vector<36x8xf32>
    %45 = tpu.matmul %44, %32, %cst_16 {dimension_numbers = #tpu.dot_dimension_numbers<[1], [0], [0], [1], [0, 0, 1, 1], [], []>} : vector<36x36xbf16>, vector<36x8xbf16>, vector<36x8xf32> -> vector<36x8xf32>
    %46 = vector.extract_strided_slice %12 {offsets = [0, 16], sizes = [36, 8], strides = [1, 1]} : vector<36x128xbf16> to vector<36x8xbf16>
    %47 = vector.extract_strided_slice %13 {offsets = [0, 48], sizes = [36, 8], strides = [1, 1]} : vector<36x128xbf16> to vector<36x8xbf16>
    %48 = vector.extract_strided_slice %13 {offsets = [0, 80], sizes = [36, 8], strides = [1, 1]} : vector<36x128xbf16> to vector<36x8xbf16>
    %cst_17 = arith.constant dense<0.000000e+00> : vector<36x36xf32>
    %49 = tpu.matmul %46, %47, %cst_17 {dimension_numbers = #tpu.dot_dimension_numbers<[1], [1], [0], [0], [0, 0, 1, 0], [], []>} : vector<36x8xbf16>, vector<36x8xbf16>, vector<36x36xf32> -> vector<36x36xf32>
    %cst_18 = arith.constant dense<0xFF800000> : vector<36xf32>
    %50 = vector.multi_reduction <maximumf>, %49, %cst_18 [1] : vector<36x36xf32> to vector<36xf32>
    %51 = vector.shape_cast %50 : vector<36xf32> to vector<36x1xf32>
    %52 = vector.broadcast %51 : vector<36x1xf32> to vector<36x36xf32>
    %53 = arith.subf %49, %52 : vector<36x36xf32>
    %54 = math.exp %53 : vector<36x36xf32>
    %cst_19 = arith.constant dense<0.000000e+00> : vector<36xf32>
    %55 = vector.multi_reduction <add>, %54, %cst_19 [1] : vector<36x36xf32> to vector<36xf32>
    %56 = vector.shape_cast %55 : vector<36xf32> to vector<36x1xf32>
    %57 = tpu.reciprocal %56 {approx = true} : vector<36x1xf32> -> vector<36x1xf32>
    %58 = vector.broadcast %57 : vector<36x1xf32> to vector<36x36xf32>
    %59 = arith.mulf %54, %58 : vector<36x36xf32>
    %60 = arith.truncf %59 : vector<36x36xf32> to vector<36x36xbf16>
    %cst_20 = arith.constant dense<0.000000e+00> : vector<36x8xf32>
    %61 = tpu.matmul %60, %48, %cst_20 {dimension_numbers = #tpu.dot_dimension_numbers<[1], [0], [0], [1], [0, 0, 1, 1], [], []>} : vector<36x36xbf16>, vector<36x8xbf16>, vector<36x8xf32> -> vector<36x8xf32>
    %62 = vector.extract_strided_slice %12 {offsets = [0, 24], sizes = [36, 8], strides = [1, 1]} : vector<36x128xbf16> to vector<36x8xbf16>
    %63 = vector.extract_strided_slice %13 {offsets = [0, 56], sizes = [36, 8], strides = [1, 1]} : vector<36x128xbf16> to vector<36x8xbf16>
    %64 = vector.extract_strided_slice %13 {offsets = [0, 88], sizes = [36, 8], strides = [1, 1]} : vector<36x128xbf16> to vector<36x8xbf16>
    %cst_21 = arith.constant dense<0.000000e+00> : vector<36x36xf32>
    %65 = tpu.matmul %62, %63, %cst_21 {dimension_numbers = #tpu.dot_dimension_numbers<[1], [1], [0], [0], [0, 0, 1, 0], [], []>} : vector<36x8xbf16>, vector<36x8xbf16>, vector<36x36xf32> -> vector<36x36xf32>
    %cst_22 = arith.constant dense<0xFF800000> : vector<36xf32>
    %66 = vector.multi_reduction <maximumf>, %65, %cst_22 [1] : vector<36x36xf32> to vector<36xf32>
    %67 = vector.shape_cast %66 : vector<36xf32> to vector<36x1xf32>
    %68 = vector.broadcast %67 : vector<36x1xf32> to vector<36x36xf32>
    %69 = arith.subf %65, %68 : vector<36x36xf32>
    %70 = math.exp %69 : vector<36x36xf32>
    %cst_23 = arith.constant dense<0.000000e+00> : vector<36xf32>
    %71 = vector.multi_reduction <add>, %70, %cst_23 [1] : vector<36x36xf32> to vector<36xf32>
    %72 = vector.shape_cast %71 : vector<36xf32> to vector<36x1xf32>
    %73 = tpu.reciprocal %72 {approx = true} : vector<36x1xf32> -> vector<36x1xf32>
    %74 = vector.broadcast %73 : vector<36x1xf32> to vector<36x36xf32>
    %75 = arith.mulf %70, %74 : vector<36x36xf32>
    %76 = arith.truncf %75 : vector<36x36xf32> to vector<36x36xbf16>
    %cst_24 = arith.constant dense<0.000000e+00> : vector<36x8xf32>
    %77 = tpu.matmul %76, %64, %cst_24 {dimension_numbers = #tpu.dot_dimension_numbers<[1], [0], [0], [1], [0, 0, 1, 1], [], []>} : vector<36x36xbf16>, vector<36x8xbf16>, vector<36x8xf32> -> vector<36x8xf32>
    %78 = tpu.concatenate %29, %45, %61, %77 in 1 : vector<36x8xf32>, vector<36x8xf32>, vector<36x8xf32>, vector<36x8xf32> -> vector<36x32xf32>
    %79 = arith.truncf %78 : vector<36x32xf32> to vector<36x32xbf16>
    %c256 = arith.constant 256 : index
    %c0_25 = arith.constant 0 : index
    %80 = vector.load %arg2[%c256, %c0_25] : memref<1376x128xbf16, #tpu.memory_space<vmem>>, vector<32x128xbf16>
    %cst_26 = arith.constant dense<0.000000e+00> : vector<36x128xf32>
    %81 = tpu.matmul %79, %80, %cst_26 {dimension_numbers = #tpu.dot_dimension_numbers<[1], [0], [0], [1], [0, 0, 1, 1], [], []>} : vector<36x32xbf16>, vector<32x128xbf16>, vector<36x128xf32> -> vector<36x128xf32>
    %c56 = arith.constant 56 : index
    %c0_27 = arith.constant 0 : index
    %82 = vector.load %arg3[%c56, %c0_27] : memref<224x128xf32, #tpu.memory_space<vmem>>, vector<1x128xf32>
    %83 = vector.broadcast %82 : vector<1x128xf32> to vector<36x128xf32>
    %84 = arith.addf %81, %83 : vector<36x128xf32>
    %85 = arith.addf %5, %84 : vector<36x128xf32>
    %cst_28 = arith.constant dense<0.000000e+00> : vector<36xf32>
    %86 = vector.multi_reduction <add>, %85, %cst_28 [1] : vector<36x128xf32> to vector<36xf32>
    %87 = vector.shape_cast %86 : vector<36xf32> to vector<36x1xf32>
    %cst_29 = arith.constant 3.125000e-02 : f32
    %88 = vector.broadcast %cst_29 : f32 to vector<36x1xf32>
    %89 = arith.mulf %87, %88 : vector<36x1xf32>
    %90 = arith.mulf %85, %85 : vector<36x128xf32>
    %cst_30 = arith.constant dense<0.000000e+00> : vector<36xf32>
    %91 = vector.multi_reduction <add>, %90, %cst_30 [1] : vector<36x128xf32> to vector<36xf32>
    %92 = vector.shape_cast %91 : vector<36xf32> to vector<36x1xf32>
    %cst_31 = arith.constant 3.125000e-02 : f32
    %93 = vector.broadcast %cst_31 : f32 to vector<36x1xf32>
    %94 = arith.mulf %92, %93 : vector<36x1xf32>
    %95 = arith.mulf %89, %89 : vector<36x1xf32>
    %96 = arith.subf %94, %95 : vector<36x1xf32>
    %97 = vector.broadcast %89 : vector<36x1xf32> to vector<36x128xf32>
    %98 = arith.subf %85, %97 : vector<36x128xf32>
    %cst_32 = arith.constant 9.99999974E-6 : f32
    %99 = vector.broadcast %cst_32 : f32 to vector<36x1xf32>
    %100 = arith.addf %96, %99 : vector<36x1xf32>
    %101 = math.rsqrt %100 : vector<36x1xf32>
    %102 = vector.broadcast %101 : vector<36x1xf32> to vector<36x128xf32>
    %103 = arith.mulf %98, %102 : vector<36x128xf32>
    %c64 = arith.constant 64 : index
    %c0_33 = arith.constant 0 : index
    %104 = vector.load %arg3[%c64, %c0_33] : memref<224x128xf32, #tpu.memory_space<vmem>>, vector<1x128xf32>
    %105 = vector.broadcast %104 : vector<1x128xf32> to vector<36x128xf32>
    %106 = arith.mulf %103, %105 : vector<36x128xf32>
    %c72 = arith.constant 72 : index
    %c0_34 = arith.constant 0 : index
    %107 = vector.load %arg3[%c72, %c0_34] : memref<224x128xf32, #tpu.memory_space<vmem>>, vector<1x128xf32>
    %108 = vector.broadcast %107 : vector<1x128xf32> to vector<36x128xf32>
    %109 = arith.addf %106, %108 : vector<36x128xf32>
    %110 = arith.truncf %109 : vector<36x128xf32> to vector<36x128xbf16>
    %c288 = arith.constant 288 : index
    %c0_35 = arith.constant 0 : index
    %111 = vector.load %arg2[%c288, %c0_35] : memref<1376x128xbf16, #tpu.memory_space<vmem>>, vector<128x128xbf16>
    %cst_36 = arith.constant dense<0.000000e+00> : vector<36x128xf32>
    %112 = tpu.matmul %110, %111, %cst_36 {dimension_numbers = #tpu.dot_dimension_numbers<[1], [0], [0], [1], [0, 0, 1, 1], [], []>} : vector<36x128xbf16>, vector<128x128xbf16>, vector<36x128xf32> -> vector<36x128xf32>
    %c80 = arith.constant 80 : index
    %c0_37 = arith.constant 0 : index
    %113 = vector.load %arg3[%c80, %c0_37] : memref<224x128xf32, #tpu.memory_space<vmem>>, vector<1x128xf32>
    %114 = vector.broadcast %113 : vector<1x128xf32> to vector<36x128xf32>
    %115 = arith.addf %112, %114 : vector<36x128xf32>
    %cst_38 = arith.constant 0.000000e+00 : f32
    %116 = vector.broadcast %cst_38 : f32 to vector<36x128xf32>
    %117 = arith.maximumf %115, %116 : vector<36x128xf32>
    %118 = arith.truncf %117 : vector<36x128xf32> to vector<36x128xbf16>
    %c416 = arith.constant 416 : index
    %c0_39 = arith.constant 0 : index
    %119 = vector.load %arg2[%c416, %c0_39] : memref<1376x128xbf16, #tpu.memory_space<vmem>>, vector<128x128xbf16>
    %cst_40 = arith.constant dense<0.000000e+00> : vector<36x128xf32>
    %120 = tpu.matmul %118, %119, %cst_40 {dimension_numbers = #tpu.dot_dimension_numbers<[1], [0], [0], [1], [0, 0, 1, 1], [], []>} : vector<36x128xbf16>, vector<128x128xbf16>, vector<36x128xf32> -> vector<36x128xf32>
    %c88 = arith.constant 88 : index
    %c0_41 = arith.constant 0 : index
    %121 = vector.load %arg3[%c88, %c0_41] : memref<224x128xf32, #tpu.memory_space<vmem>>, vector<1x128xf32>
    %122 = vector.broadcast %121 : vector<1x128xf32> to vector<36x128xf32>
    %123 = arith.addf %120, %122 : vector<36x128xf32>
    %124 = arith.addf %109, %123 : vector<36x128xf32>
    %cst_42 = arith.constant dense<0.000000e+00> : vector<36xf32>
    %125 = vector.multi_reduction <add>, %124, %cst_42 [1] : vector<36x128xf32> to vector<36xf32>
    %126 = vector.shape_cast %125 : vector<36xf32> to vector<36x1xf32>
    %cst_43 = arith.constant 3.125000e-02 : f32
    %127 = vector.broadcast %cst_43 : f32 to vector<36x1xf32>
    %128 = arith.mulf %126, %127 : vector<36x1xf32>
    %129 = arith.mulf %124, %124 : vector<36x128xf32>
    %cst_44 = arith.constant dense<0.000000e+00> : vector<36xf32>
    %130 = vector.multi_reduction <add>, %129, %cst_44 [1] : vector<36x128xf32> to vector<36xf32>
    %131 = vector.shape_cast %130 : vector<36xf32> to vector<36x1xf32>
    %cst_45 = arith.constant 3.125000e-02 : f32
    %132 = vector.broadcast %cst_45 : f32 to vector<36x1xf32>
    %133 = arith.mulf %131, %132 : vector<36x1xf32>
    %134 = arith.mulf %128, %128 : vector<36x1xf32>
    %135 = arith.subf %133, %134 : vector<36x1xf32>
    %136 = vector.broadcast %128 : vector<36x1xf32> to vector<36x128xf32>
    %137 = arith.subf %124, %136 : vector<36x128xf32>
    %cst_46 = arith.constant 9.99999974E-6 : f32
    %138 = vector.broadcast %cst_46 : f32 to vector<36x1xf32>
    %139 = arith.addf %135, %138 : vector<36x1xf32>
    %140 = math.rsqrt %139 : vector<36x1xf32>
    %141 = vector.broadcast %140 : vector<36x1xf32> to vector<36x128xf32>
    %142 = arith.mulf %137, %141 : vector<36x128xf32>
    %c96 = arith.constant 96 : index
    %c0_47 = arith.constant 0 : index
    %143 = vector.load %arg3[%c96, %c0_47] : memref<224x128xf32, #tpu.memory_space<vmem>>, vector<1x128xf32>
    %144 = vector.broadcast %143 : vector<1x128xf32> to vector<36x128xf32>
    %145 = arith.mulf %142, %144 : vector<36x128xf32>
    %c104 = arith.constant 104 : index
    %c0_48 = arith.constant 0 : index
    %146 = vector.load %arg3[%c104, %c0_48] : memref<224x128xf32, #tpu.memory_space<vmem>>, vector<1x128xf32>
    %147 = vector.broadcast %146 : vector<1x128xf32> to vector<36x128xf32>
    %148 = arith.addf %145, %147 : vector<36x128xf32>
    %c40 = arith.constant 40 : index
    %c0_49 = arith.constant 0 : index
    %149 = vector.load %arg3[%c40, %c0_49] : memref<224x128xf32, #tpu.memory_space<vmem>>, vector<8x128xf32>
    %150 = arith.truncf %149 : vector<8x128xf32> to vector<8x128xbf16>
    %c544 = arith.constant 544 : index
    %c0_50 = arith.constant 0 : index
    %151 = vector.load %arg2[%c544, %c0_50] : memref<1376x128xbf16, #tpu.memory_space<vmem>>, vector<128x128xbf16>
    %cst_51 = arith.constant dense<0.000000e+00> : vector<8x128xf32>
    %152 = tpu.matmul %150, %151, %cst_51 {dimension_numbers = #tpu.dot_dimension_numbers<[1], [0], [0], [1], [0, 0, 1, 1], [], []>} : vector<8x128xbf16>, vector<128x128xbf16>, vector<8x128xf32> -> vector<8x128xf32>
    %c112 = arith.constant 112 : index
    %c0_52 = arith.constant 0 : index
    %153 = vector.load %arg3[%c112, %c0_52] : memref<224x128xf32, #tpu.memory_space<vmem>>, vector<1x128xf32>
    %154 = vector.broadcast %153 : vector<1x128xf32> to vector<8x128xf32>
    %155 = arith.addf %152, %154 : vector<8x128xf32>
    %156 = arith.truncf %155 : vector<8x128xf32> to vector<8x128xbf16>
    %157 = arith.truncf %155 : vector<8x128xf32> to vector<8x128xbf16>
    %158 = vector.extract_strided_slice %156 {offsets = [0, 0], sizes = [8, 8], strides = [1, 1]} : vector<8x128xbf16> to vector<8x8xbf16>
    %159 = vector.extract_strided_slice %157 {offsets = [0, 32], sizes = [8, 8], strides = [1, 1]} : vector<8x128xbf16> to vector<8x8xbf16>
    %160 = vector.extract_strided_slice %157 {offsets = [0, 64], sizes = [8, 8], strides = [1, 1]} : vector<8x128xbf16> to vector<8x8xbf16>
    %cst_53 = arith.constant dense<0.000000e+00> : vector<8x8xf32>
    %161 = tpu.matmul %158, %159, %cst_53 {dimension_numbers = #tpu.dot_dimension_numbers<[1], [1], [0], [0], [0, 0, 1, 0], [], []>} : vector<8x8xbf16>, vector<8x8xbf16>, vector<8x8xf32> -> vector<8x8xf32>
    %cst_54 = arith.constant dense<0xFF800000> : vector<8xf32>
    %162 = vector.multi_reduction <maximumf>, %161, %cst_54 [1] : vector<8x8xf32> to vector<8xf32>
    %163 = vector.shape_cast %162 : vector<8xf32> to vector<8x1xf32>
    %164 = vector.broadcast %163 : vector<8x1xf32> to vector<8x8xf32>
    %165 = arith.subf %161, %164 : vector<8x8xf32>
    %166 = math.exp %165 : vector<8x8xf32>
    %cst_55 = arith.constant dense<0.000000e+00> : vector<8xf32>
    %167 = vector.multi_reduction <add>, %166, %cst_55 [1] : vector<8x8xf32> to vector<8xf32>
    %168 = vector.shape_cast %167 : vector<8xf32> to vector<8x1xf32>
    %169 = tpu.reciprocal %168 {approx = true} : vector<8x1xf32> -> vector<8x1xf32>
    %170 = vector.broadcast %169 : vector<8x1xf32> to vector<8x8xf32>
    %171 = arith.mulf %166, %170 : vector<8x8xf32>
    %172 = arith.truncf %171 : vector<8x8xf32> to vector<8x8xbf16>
    %cst_56 = arith.constant dense<0.000000e+00> : vector<8x8xf32>
    %173 = tpu.matmul %172, %160, %cst_56 {dimension_numbers = #tpu.dot_dimension_numbers<[1], [0], [0], [1], [0, 0, 1, 1], [], []>} : vector<8x8xbf16>, vector<8x8xbf16>, vector<8x8xf32> -> vector<8x8xf32>
    %174 = vector.extract_strided_slice %156 {offsets = [0, 8], sizes = [8, 8], strides = [1, 1]} : vector<8x128xbf16> to vector<8x8xbf16>
    %175 = vector.extract_strided_slice %157 {offsets = [0, 40], sizes = [8, 8], strides = [1, 1]} : vector<8x128xbf16> to vector<8x8xbf16>
    %176 = vector.extract_strided_slice %157 {offsets = [0, 72], sizes = [8, 8], strides = [1, 1]} : vector<8x128xbf16> to vector<8x8xbf16>
    %cst_57 = arith.constant dense<0.000000e+00> : vector<8x8xf32>
    %177 = tpu.matmul %174, %175, %cst_57 {dimension_numbers = #tpu.dot_dimension_numbers<[1], [1], [0], [0], [0, 0, 1, 0], [], []>} : vector<8x8xbf16>, vector<8x8xbf16>, vector<8x8xf32> -> vector<8x8xf32>
    %cst_58 = arith.constant dense<0xFF800000> : vector<8xf32>
    %178 = vector.multi_reduction <maximumf>, %177, %cst_58 [1] : vector<8x8xf32> to vector<8xf32>
    %179 = vector.shape_cast %178 : vector<8xf32> to vector<8x1xf32>
    %180 = vector.broadcast %179 : vector<8x1xf32> to vector<8x8xf32>
    %181 = arith.subf %177, %180 : vector<8x8xf32>
    %182 = math.exp %181 : vector<8x8xf32>
    %cst_59 = arith.constant dense<0.000000e+00> : vector<8xf32>
    %183 = vector.multi_reduction <add>, %182, %cst_59 [1] : vector<8x8xf32> to vector<8xf32>
    %184 = vector.shape_cast %183 : vector<8xf32> to vector<8x1xf32>
    %185 = tpu.reciprocal %184 {approx = true} : vector<8x1xf32> -> vector<8x1xf32>
    %186 = vector.broadcast %185 : vector<8x1xf32> to vector<8x8xf32>
    %187 = arith.mulf %182, %186 : vector<8x8xf32>
    %188 = arith.truncf %187 : vector<8x8xf32> to vector<8x8xbf16>
    %cst_60 = arith.constant dense<0.000000e+00> : vector<8x8xf32>
    %189 = tpu.matmul %188, %176, %cst_60 {dimension_numbers = #tpu.dot_dimension_numbers<[1], [0], [0], [1], [0, 0, 1, 1], [], []>} : vector<8x8xbf16>, vector<8x8xbf16>, vector<8x8xf32> -> vector<8x8xf32>
    %190 = vector.extract_strided_slice %156 {offsets = [0, 16], sizes = [8, 8], strides = [1, 1]} : vector<8x128xbf16> to vector<8x8xbf16>
    %191 = vector.extract_strided_slice %157 {offsets = [0, 48], sizes = [8, 8], strides = [1, 1]} : vector<8x128xbf16> to vector<8x8xbf16>
    %192 = vector.extract_strided_slice %157 {offsets = [0, 80], sizes = [8, 8], strides = [1, 1]} : vector<8x128xbf16> to vector<8x8xbf16>
    %cst_61 = arith.constant dense<0.000000e+00> : vector<8x8xf32>
    %193 = tpu.matmul %190, %191, %cst_61 {dimension_numbers = #tpu.dot_dimension_numbers<[1], [1], [0], [0], [0, 0, 1, 0], [], []>} : vector<8x8xbf16>, vector<8x8xbf16>, vector<8x8xf32> -> vector<8x8xf32>
    %cst_62 = arith.constant dense<0xFF800000> : vector<8xf32>
    %194 = vector.multi_reduction <maximumf>, %193, %cst_62 [1] : vector<8x8xf32> to vector<8xf32>
    %195 = vector.shape_cast %194 : vector<8xf32> to vector<8x1xf32>
    %196 = vector.broadcast %195 : vector<8x1xf32> to vector<8x8xf32>
    %197 = arith.subf %193, %196 : vector<8x8xf32>
    %198 = math.exp %197 : vector<8x8xf32>
    %cst_63 = arith.constant dense<0.000000e+00> : vector<8xf32>
    %199 = vector.multi_reduction <add>, %198, %cst_63 [1] : vector<8x8xf32> to vector<8xf32>
    %200 = vector.shape_cast %199 : vector<8xf32> to vector<8x1xf32>
    %201 = tpu.reciprocal %200 {approx = true} : vector<8x1xf32> -> vector<8x1xf32>
    %202 = vector.broadcast %201 : vector<8x1xf32> to vector<8x8xf32>
    %203 = arith.mulf %198, %202 : vector<8x8xf32>
    %204 = arith.truncf %203 : vector<8x8xf32> to vector<8x8xbf16>
    %cst_64 = arith.constant dense<0.000000e+00> : vector<8x8xf32>
    %205 = tpu.matmul %204, %192, %cst_64 {dimension_numbers = #tpu.dot_dimension_numbers<[1], [0], [0], [1], [0, 0, 1, 1], [], []>} : vector<8x8xbf16>, vector<8x8xbf16>, vector<8x8xf32> -> vector<8x8xf32>
    %206 = vector.extract_strided_slice %156 {offsets = [0, 24], sizes = [8, 8], strides = [1, 1]} : vector<8x128xbf16> to vector<8x8xbf16>
    %207 = vector.extract_strided_slice %157 {offsets = [0, 56], sizes = [8, 8], strides = [1, 1]} : vector<8x128xbf16> to vector<8x8xbf16>
    %208 = vector.extract_strided_slice %157 {offsets = [0, 88], sizes = [8, 8], strides = [1, 1]} : vector<8x128xbf16> to vector<8x8xbf16>
    %cst_65 = arith.constant dense<0.000000e+00> : vector<8x8xf32>
    %209 = tpu.matmul %206, %207, %cst_65 {dimension_numbers = #tpu.dot_dimension_numbers<[1], [1], [0], [0], [0, 0, 1, 0], [], []>} : vector<8x8xbf16>, vector<8x8xbf16>, vector<8x8xf32> -> vector<8x8xf32>
    %cst_66 = arith.constant dense<0xFF800000> : vector<8xf32>
    %210 = vector.multi_reduction <maximumf>, %209, %cst_66 [1] : vector<8x8xf32> to vector<8xf32>
    %211 = vector.shape_cast %210 : vector<8xf32> to vector<8x1xf32>
    %212 = vector.broadcast %211 : vector<8x1xf32> to vector<8x8xf32>
    %213 = arith.subf %209, %212 : vector<8x8xf32>
    %214 = math.exp %213 : vector<8x8xf32>
    %cst_67 = arith.constant dense<0.000000e+00> : vector<8xf32>
    %215 = vector.multi_reduction <add>, %214, %cst_67 [1] : vector<8x8xf32> to vector<8xf32>
    %216 = vector.shape_cast %215 : vector<8xf32> to vector<8x1xf32>
    %217 = tpu.reciprocal %216 {approx = true} : vector<8x1xf32> -> vector<8x1xf32>
    %218 = vector.broadcast %217 : vector<8x1xf32> to vector<8x8xf32>
    %219 = arith.mulf %214, %218 : vector<8x8xf32>
    %220 = arith.truncf %219 : vector<8x8xf32> to vector<8x8xbf16>
    %cst_68 = arith.constant dense<0.000000e+00> : vector<8x8xf32>
    %221 = tpu.matmul %220, %208, %cst_68 {dimension_numbers = #tpu.dot_dimension_numbers<[1], [0], [0], [1], [0, 0, 1, 1], [], []>} : vector<8x8xbf16>, vector<8x8xbf16>, vector<8x8xf32> -> vector<8x8xf32>
    %222 = tpu.concatenate %173, %189, %205, %221 in 1 : vector<8x8xf32>, vector<8x8xf32>, vector<8x8xf32>, vector<8x8xf32> -> vector<8x32xf32>
    %223 = arith.truncf %222 : vector<8x32xf32> to vector<8x32xbf16>
    %c672 = arith.constant 672 : index
    %c0_69 = arith.constant 0 : index
    %224 = vector.load %arg2[%c672, %c0_69] : memref<1376x128xbf16, #tpu.memory_space<vmem>>, vector<32x128xbf16>
    %cst_70 = arith.constant dense<0.000000e+00> : vector<8x128xf32>
    %225 = tpu.matmul %223, %224, %cst_70 {dimension_numbers = #tpu.dot_dimension_numbers<[1], [0], [0], [1], [0, 0, 1, 1], [], []>} : vector<8x32xbf16>, vector<32x128xbf16>, vector<8x128xf32> -> vector<8x128xf32>
    %c120 = arith.constant 120 : index
    %c0_71 = arith.constant 0 : index
    %226 = vector.load %arg3[%c120, %c0_71] : memref<224x128xf32, #tpu.memory_space<vmem>>, vector<1x128xf32>
    %227 = vector.broadcast %226 : vector<1x128xf32> to vector<8x128xf32>
    %228 = arith.addf %225, %227 : vector<8x128xf32>
    %229 = arith.addf %149, %228 : vector<8x128xf32>
    %cst_72 = arith.constant dense<0.000000e+00> : vector<8xf32>
    %230 = vector.multi_reduction <add>, %229, %cst_72 [1] : vector<8x128xf32> to vector<8xf32>
    %231 = vector.shape_cast %230 : vector<8xf32> to vector<8x1xf32>
    %cst_73 = arith.constant 3.125000e-02 : f32
    %232 = vector.broadcast %cst_73 : f32 to vector<8x1xf32>
    %233 = arith.mulf %231, %232 : vector<8x1xf32>
    %234 = arith.mulf %229, %229 : vector<8x128xf32>
    %cst_74 = arith.constant dense<0.000000e+00> : vector<8xf32>
    %235 = vector.multi_reduction <add>, %234, %cst_74 [1] : vector<8x128xf32> to vector<8xf32>
    %236 = vector.shape_cast %235 : vector<8xf32> to vector<8x1xf32>
    %cst_75 = arith.constant 3.125000e-02 : f32
    %237 = vector.broadcast %cst_75 : f32 to vector<8x1xf32>
    %238 = arith.mulf %236, %237 : vector<8x1xf32>
    %239 = arith.mulf %233, %233 : vector<8x1xf32>
    %240 = arith.subf %238, %239 : vector<8x1xf32>
    %241 = vector.broadcast %233 : vector<8x1xf32> to vector<8x128xf32>
    %242 = arith.subf %229, %241 : vector<8x128xf32>
    %cst_76 = arith.constant 9.99999974E-6 : f32
    %243 = vector.broadcast %cst_76 : f32 to vector<8x1xf32>
    %244 = arith.addf %240, %243 : vector<8x1xf32>
    %245 = math.rsqrt %244 : vector<8x1xf32>
    %246 = vector.broadcast %245 : vector<8x1xf32> to vector<8x128xf32>
    %247 = arith.mulf %242, %246 : vector<8x128xf32>
    %c128_77 = arith.constant 128 : index
    %c0_78 = arith.constant 0 : index
    %248 = vector.load %arg3[%c128_77, %c0_78] : memref<224x128xf32, #tpu.memory_space<vmem>>, vector<1x128xf32>
    %249 = vector.broadcast %248 : vector<1x128xf32> to vector<8x128xf32>
    %250 = arith.mulf %247, %249 : vector<8x128xf32>
    %c136 = arith.constant 136 : index
    %c0_79 = arith.constant 0 : index
    %251 = vector.load %arg3[%c136, %c0_79] : memref<224x128xf32, #tpu.memory_space<vmem>>, vector<1x128xf32>
    %252 = vector.broadcast %251 : vector<1x128xf32> to vector<8x128xf32>
    %253 = arith.addf %250, %252 : vector<8x128xf32>
    %254 = arith.truncf %253 : vector<8x128xf32> to vector<8x128xbf16>
    %c704 = arith.constant 704 : index
    %c0_80 = arith.constant 0 : index
    %255 = vector.load %arg2[%c704, %c0_80] : memref<1376x128xbf16, #tpu.memory_space<vmem>>, vector<128x128xbf16>
    %cst_81 = arith.constant dense<0.000000e+00> : vector<8x128xf32>
    %256 = tpu.matmul %254, %255, %cst_81 {dimension_numbers = #tpu.dot_dimension_numbers<[1], [0], [0], [1], [0, 0, 1, 1], [], []>} : vector<8x128xbf16>, vector<128x128xbf16>, vector<8x128xf32> -> vector<8x128xf32>
    %c144 = arith.constant 144 : index
    %c0_82 = arith.constant 0 : index
    %257 = vector.load %arg3[%c144, %c0_82] : memref<224x128xf32, #tpu.memory_space<vmem>>, vector<1x128xf32>
    %258 = vector.broadcast %257 : vector<1x128xf32> to vector<8x128xf32>
    %259 = arith.addf %256, %258 : vector<8x128xf32>
    %260 = arith.truncf %148 : vector<36x128xf32> to vector<36x128xbf16>
    %c832 = arith.constant 832 : index
    %c0_83 = arith.constant 0 : index
    %261 = vector.load %arg2[%c832, %c0_83] : memref<1376x128xbf16, #tpu.memory_space<vmem>>, vector<128x128xbf16>
    %cst_84 = arith.constant dense<0.000000e+00> : vector<36x128xf32>
    %262 = tpu.matmul %260, %261, %cst_84 {dimension_numbers = #tpu.dot_dimension_numbers<[1], [0], [0], [1], [0, 0, 1, 1], [], []>} : vector<36x128xbf16>, vector<128x128xbf16>, vector<36x128xf32> -> vector<36x128xf32>
    %c152 = arith.constant 152 : index
    %c0_85 = arith.constant 0 : index
    %263 = vector.load %arg3[%c152, %c0_85] : memref<224x128xf32, #tpu.memory_space<vmem>>, vector<1x128xf32>
    %264 = vector.broadcast %263 : vector<1x128xf32> to vector<36x128xf32>
    %265 = arith.addf %262, %264 : vector<36x128xf32>
    %266 = arith.truncf %259 : vector<8x128xf32> to vector<8x128xbf16>
    %267 = arith.truncf %265 : vector<36x128xf32> to vector<36x128xbf16>
    %268 = vector.extract_strided_slice %266 {offsets = [0, 0], sizes = [8, 8], strides = [1, 1]} : vector<8x128xbf16> to vector<8x8xbf16>
    %269 = vector.extract_strided_slice %267 {offsets = [0, 0], sizes = [36, 8], strides = [1, 1]} : vector<36x128xbf16> to vector<36x8xbf16>
    %270 = vector.extract_strided_slice %267 {offsets = [0, 32], sizes = [36, 8], strides = [1, 1]} : vector<36x128xbf16> to vector<36x8xbf16>
    %cst_86 = arith.constant dense<0.000000e+00> : vector<8x36xf32>
    %271 = tpu.matmul %268, %269, %cst_86 {dimension_numbers = #tpu.dot_dimension_numbers<[1], [1], [0], [0], [0, 0, 1, 0], [], []>} : vector<8x8xbf16>, vector<36x8xbf16>, vector<8x36xf32> -> vector<8x36xf32>
    %cst_87 = arith.constant dense<0xFF800000> : vector<8xf32>
    %272 = vector.multi_reduction <maximumf>, %271, %cst_87 [1] : vector<8x36xf32> to vector<8xf32>
    %273 = vector.shape_cast %272 : vector<8xf32> to vector<8x1xf32>
    %274 = vector.broadcast %273 : vector<8x1xf32> to vector<8x36xf32>
    %275 = arith.subf %271, %274 : vector<8x36xf32>
    %276 = math.exp %275 : vector<8x36xf32>
    %cst_88 = arith.constant dense<0.000000e+00> : vector<8xf32>
    %277 = vector.multi_reduction <add>, %276, %cst_88 [1] : vector<8x36xf32> to vector<8xf32>
    %278 = vector.shape_cast %277 : vector<8xf32> to vector<8x1xf32>
    %279 = tpu.reciprocal %278 {approx = true} : vector<8x1xf32> -> vector<8x1xf32>
    %280 = vector.broadcast %279 : vector<8x1xf32> to vector<8x36xf32>
    %281 = arith.mulf %276, %280 : vector<8x36xf32>
    %282 = arith.truncf %281 : vector<8x36xf32> to vector<8x36xbf16>
    %cst_89 = arith.constant dense<0.000000e+00> : vector<8x8xf32>
    %283 = tpu.matmul %282, %270, %cst_89 {dimension_numbers = #tpu.dot_dimension_numbers<[1], [0], [0], [1], [0, 0, 1, 1], [], []>} : vector<8x36xbf16>, vector<36x8xbf16>, vector<8x8xf32> -> vector<8x8xf32>
    %284 = vector.extract_strided_slice %266 {offsets = [0, 8], sizes = [8, 8], strides = [1, 1]} : vector<8x128xbf16> to vector<8x8xbf16>
    %285 = vector.extract_strided_slice %267 {offsets = [0, 8], sizes = [36, 8], strides = [1, 1]} : vector<36x128xbf16> to vector<36x8xbf16>
    %286 = vector.extract_strided_slice %267 {offsets = [0, 40], sizes = [36, 8], strides = [1, 1]} : vector<36x128xbf16> to vector<36x8xbf16>
    %cst_90 = arith.constant dense<0.000000e+00> : vector<8x36xf32>
    %287 = tpu.matmul %284, %285, %cst_90 {dimension_numbers = #tpu.dot_dimension_numbers<[1], [1], [0], [0], [0, 0, 1, 0], [], []>} : vector<8x8xbf16>, vector<36x8xbf16>, vector<8x36xf32> -> vector<8x36xf32>
    %cst_91 = arith.constant dense<0xFF800000> : vector<8xf32>
    %288 = vector.multi_reduction <maximumf>, %287, %cst_91 [1] : vector<8x36xf32> to vector<8xf32>
    %289 = vector.shape_cast %288 : vector<8xf32> to vector<8x1xf32>
    %290 = vector.broadcast %289 : vector<8x1xf32> to vector<8x36xf32>
    %291 = arith.subf %287, %290 : vector<8x36xf32>
    %292 = math.exp %291 : vector<8x36xf32>
    %cst_92 = arith.constant dense<0.000000e+00> : vector<8xf32>
    %293 = vector.multi_reduction <add>, %292, %cst_92 [1] : vector<8x36xf32> to vector<8xf32>
    %294 = vector.shape_cast %293 : vector<8xf32> to vector<8x1xf32>
    %295 = tpu.reciprocal %294 {approx = true} : vector<8x1xf32> -> vector<8x1xf32>
    %296 = vector.broadcast %295 : vector<8x1xf32> to vector<8x36xf32>
    %297 = arith.mulf %292, %296 : vector<8x36xf32>
    %298 = arith.truncf %297 : vector<8x36xf32> to vector<8x36xbf16>
    %cst_93 = arith.constant dense<0.000000e+00> : vector<8x8xf32>
    %299 = tpu.matmul %298, %286, %cst_93 {dimension_numbers = #tpu.dot_dimension_numbers<[1], [0], [0], [1], [0, 0, 1, 1], [], []>} : vector<8x36xbf16>, vector<36x8xbf16>, vector<8x8xf32> -> vector<8x8xf32>
    %300 = vector.extract_strided_slice %266 {offsets = [0, 16], sizes = [8, 8], strides = [1, 1]} : vector<8x128xbf16> to vector<8x8xbf16>
    %301 = vector.extract_strided_slice %267 {offsets = [0, 16], sizes = [36, 8], strides = [1, 1]} : vector<36x128xbf16> to vector<36x8xbf16>
    %302 = vector.extract_strided_slice %267 {offsets = [0, 48], sizes = [36, 8], strides = [1, 1]} : vector<36x128xbf16> to vector<36x8xbf16>
    %cst_94 = arith.constant dense<0.000000e+00> : vector<8x36xf32>
    %303 = tpu.matmul %300, %301, %cst_94 {dimension_numbers = #tpu.dot_dimension_numbers<[1], [1], [0], [0], [0, 0, 1, 0], [], []>} : vector<8x8xbf16>, vector<36x8xbf16>, vector<8x36xf32> -> vector<8x36xf32>
    %cst_95 = arith.constant dense<0xFF800000> : vector<8xf32>
    %304 = vector.multi_reduction <maximumf>, %303, %cst_95 [1] : vector<8x36xf32> to vector<8xf32>
    %305 = vector.shape_cast %304 : vector<8xf32> to vector<8x1xf32>
    %306 = vector.broadcast %305 : vector<8x1xf32> to vector<8x36xf32>
    %307 = arith.subf %303, %306 : vector<8x36xf32>
    %308 = math.exp %307 : vector<8x36xf32>
    %cst_96 = arith.constant dense<0.000000e+00> : vector<8xf32>
    %309 = vector.multi_reduction <add>, %308, %cst_96 [1] : vector<8x36xf32> to vector<8xf32>
    %310 = vector.shape_cast %309 : vector<8xf32> to vector<8x1xf32>
    %311 = tpu.reciprocal %310 {approx = true} : vector<8x1xf32> -> vector<8x1xf32>
    %312 = vector.broadcast %311 : vector<8x1xf32> to vector<8x36xf32>
    %313 = arith.mulf %308, %312 : vector<8x36xf32>
    %314 = arith.truncf %313 : vector<8x36xf32> to vector<8x36xbf16>
    %cst_97 = arith.constant dense<0.000000e+00> : vector<8x8xf32>
    %315 = tpu.matmul %314, %302, %cst_97 {dimension_numbers = #tpu.dot_dimension_numbers<[1], [0], [0], [1], [0, 0, 1, 1], [], []>} : vector<8x36xbf16>, vector<36x8xbf16>, vector<8x8xf32> -> vector<8x8xf32>
    %316 = vector.extract_strided_slice %266 {offsets = [0, 24], sizes = [8, 8], strides = [1, 1]} : vector<8x128xbf16> to vector<8x8xbf16>
    %317 = vector.extract_strided_slice %267 {offsets = [0, 24], sizes = [36, 8], strides = [1, 1]} : vector<36x128xbf16> to vector<36x8xbf16>
    %318 = vector.extract_strided_slice %267 {offsets = [0, 56], sizes = [36, 8], strides = [1, 1]} : vector<36x128xbf16> to vector<36x8xbf16>
    %cst_98 = arith.constant dense<0.000000e+00> : vector<8x36xf32>
    %319 = tpu.matmul %316, %317, %cst_98 {dimension_numbers = #tpu.dot_dimension_numbers<[1], [1], [0], [0], [0, 0, 1, 0], [], []>} : vector<8x8xbf16>, vector<36x8xbf16>, vector<8x36xf32> -> vector<8x36xf32>
    %cst_99 = arith.constant dense<0xFF800000> : vector<8xf32>
    %320 = vector.multi_reduction <maximumf>, %319, %cst_99 [1] : vector<8x36xf32> to vector<8xf32>
    %321 = vector.shape_cast %320 : vector<8xf32> to vector<8x1xf32>
    %322 = vector.broadcast %321 : vector<8x1xf32> to vector<8x36xf32>
    %323 = arith.subf %319, %322 : vector<8x36xf32>
    %324 = math.exp %323 : vector<8x36xf32>
    %cst_100 = arith.constant dense<0.000000e+00> : vector<8xf32>
    %325 = vector.multi_reduction <add>, %324, %cst_100 [1] : vector<8x36xf32> to vector<8xf32>
    %326 = vector.shape_cast %325 : vector<8xf32> to vector<8x1xf32>
    %327 = tpu.reciprocal %326 {approx = true} : vector<8x1xf32> -> vector<8x1xf32>
    %328 = vector.broadcast %327 : vector<8x1xf32> to vector<8x36xf32>
    %329 = arith.mulf %324, %328 : vector<8x36xf32>
    %330 = arith.truncf %329 : vector<8x36xf32> to vector<8x36xbf16>
    %cst_101 = arith.constant dense<0.000000e+00> : vector<8x8xf32>
    %331 = tpu.matmul %330, %318, %cst_101 {dimension_numbers = #tpu.dot_dimension_numbers<[1], [0], [0], [1], [0, 0, 1, 1], [], []>} : vector<8x36xbf16>, vector<36x8xbf16>, vector<8x8xf32> -> vector<8x8xf32>
    %332 = tpu.concatenate %283, %299, %315, %331 in 1 : vector<8x8xf32>, vector<8x8xf32>, vector<8x8xf32>, vector<8x8xf32> -> vector<8x32xf32>
    %333 = arith.truncf %332 : vector<8x32xf32> to vector<8x32xbf16>
    %c960 = arith.constant 960 : index
    %c0_102 = arith.constant 0 : index
    %334 = vector.load %arg2[%c960, %c0_102] : memref<1376x128xbf16, #tpu.memory_space<vmem>>, vector<32x128xbf16>
    %cst_103 = arith.constant dense<0.000000e+00> : vector<8x128xf32>
    %335 = tpu.matmul %333, %334, %cst_103 {dimension_numbers = #tpu.dot_dimension_numbers<[1], [0], [0], [1], [0, 0, 1, 1], [], []>} : vector<8x32xbf16>, vector<32x128xbf16>, vector<8x128xf32> -> vector<8x128xf32>
    %c160 = arith.constant 160 : index
    %c0_104 = arith.constant 0 : index
    %336 = vector.load %arg3[%c160, %c0_104] : memref<224x128xf32, #tpu.memory_space<vmem>>, vector<1x128xf32>
    %337 = vector.broadcast %336 : vector<1x128xf32> to vector<8x128xf32>
    %338 = arith.addf %335, %337 : vector<8x128xf32>
    %339 = arith.addf %253, %338 : vector<8x128xf32>
    %cst_105 = arith.constant dense<0.000000e+00> : vector<8xf32>
    %340 = vector.multi_reduction <add>, %339, %cst_105 [1] : vector<8x128xf32> to vector<8xf32>
    %341 = vector.shape_cast %340 : vector<8xf32> to vector<8x1xf32>
    %cst_106 = arith.constant 3.125000e-02 : f32
    %342 = vector.broadcast %cst_106 : f32 to vector<8x1xf32>
    %343 = arith.mulf %341, %342 : vector<8x1xf32>
    %344 = arith.mulf %339, %339 : vector<8x128xf32>
    %cst_107 = arith.constant dense<0.000000e+00> : vector<8xf32>
    %345 = vector.multi_reduction <add>, %344, %cst_107 [1] : vector<8x128xf32> to vector<8xf32>
    %346 = vector.shape_cast %345 : vector<8xf32> to vector<8x1xf32>
    %cst_108 = arith.constant 3.125000e-02 : f32
    %347 = vector.broadcast %cst_108 : f32 to vector<8x1xf32>
    %348 = arith.mulf %346, %347 : vector<8x1xf32>
    %349 = arith.mulf %343, %343 : vector<8x1xf32>
    %350 = arith.subf %348, %349 : vector<8x1xf32>
    %351 = vector.broadcast %343 : vector<8x1xf32> to vector<8x128xf32>
    %352 = arith.subf %339, %351 : vector<8x128xf32>
    %cst_109 = arith.constant 9.99999974E-6 : f32
    %353 = vector.broadcast %cst_109 : f32 to vector<8x1xf32>
    %354 = arith.addf %350, %353 : vector<8x1xf32>
    %355 = math.rsqrt %354 : vector<8x1xf32>
    %356 = vector.broadcast %355 : vector<8x1xf32> to vector<8x128xf32>
    %357 = arith.mulf %352, %356 : vector<8x128xf32>
    %c168 = arith.constant 168 : index
    %c0_110 = arith.constant 0 : index
    %358 = vector.load %arg3[%c168, %c0_110] : memref<224x128xf32, #tpu.memory_space<vmem>>, vector<1x128xf32>
    %359 = vector.broadcast %358 : vector<1x128xf32> to vector<8x128xf32>
    %360 = arith.mulf %357, %359 : vector<8x128xf32>
    %c176 = arith.constant 176 : index
    %c0_111 = arith.constant 0 : index
    %361 = vector.load %arg3[%c176, %c0_111] : memref<224x128xf32, #tpu.memory_space<vmem>>, vector<1x128xf32>
    %362 = vector.broadcast %361 : vector<1x128xf32> to vector<8x128xf32>
    %363 = arith.addf %360, %362 : vector<8x128xf32>
    %364 = arith.truncf %363 : vector<8x128xf32> to vector<8x128xbf16>
    %c992 = arith.constant 992 : index
    %c0_112 = arith.constant 0 : index
    %365 = vector.load %arg2[%c992, %c0_112] : memref<1376x128xbf16, #tpu.memory_space<vmem>>, vector<128x128xbf16>
    %cst_113 = arith.constant dense<0.000000e+00> : vector<8x128xf32>
    %366 = tpu.matmul %364, %365, %cst_113 {dimension_numbers = #tpu.dot_dimension_numbers<[1], [0], [0], [1], [0, 0, 1, 1], [], []>} : vector<8x128xbf16>, vector<128x128xbf16>, vector<8x128xf32> -> vector<8x128xf32>
    %c184 = arith.constant 184 : index
    %c0_114 = arith.constant 0 : index
    %367 = vector.load %arg3[%c184, %c0_114] : memref<224x128xf32, #tpu.memory_space<vmem>>, vector<1x128xf32>
    %368 = vector.broadcast %367 : vector<1x128xf32> to vector<8x128xf32>
    %369 = arith.addf %366, %368 : vector<8x128xf32>
    %cst_115 = arith.constant 0.000000e+00 : f32
    %370 = vector.broadcast %cst_115 : f32 to vector<8x128xf32>
    %371 = arith.maximumf %369, %370 : vector<8x128xf32>
    %372 = arith.truncf %371 : vector<8x128xf32> to vector<8x128xbf16>
    %c1120 = arith.constant 1120 : index
    %c0_116 = arith.constant 0 : index
    %373 = vector.load %arg2[%c1120, %c0_116] : memref<1376x128xbf16, #tpu.memory_space<vmem>>, vector<128x128xbf16>
    %cst_117 = arith.constant dense<0.000000e+00> : vector<8x128xf32>
    %374 = tpu.matmul %372, %373, %cst_117 {dimension_numbers = #tpu.dot_dimension_numbers<[1], [0], [0], [1], [0, 0, 1, 1], [], []>} : vector<8x128xbf16>, vector<128x128xbf16>, vector<8x128xf32> -> vector<8x128xf32>
    %c192 = arith.constant 192 : index
    %c0_118 = arith.constant 0 : index
    %375 = vector.load %arg3[%c192, %c0_118] : memref<224x128xf32, #tpu.memory_space<vmem>>, vector<1x128xf32>
    %376 = vector.broadcast %375 : vector<1x128xf32> to vector<8x128xf32>
    %377 = arith.addf %374, %376 : vector<8x128xf32>
    %378 = arith.addf %363, %377 : vector<8x128xf32>
    %cst_119 = arith.constant dense<0.000000e+00> : vector<8xf32>
    %379 = vector.multi_reduction <add>, %378, %cst_119 [1] : vector<8x128xf32> to vector<8xf32>
    %380 = vector.shape_cast %379 : vector<8xf32> to vector<8x1xf32>
    %cst_120 = arith.constant 3.125000e-02 : f32
    %381 = vector.broadcast %cst_120 : f32 to vector<8x1xf32>
    %382 = arith.mulf %380, %381 : vector<8x1xf32>
    %383 = arith.mulf %378, %378 : vector<8x128xf32>
    %cst_121 = arith.constant dense<0.000000e+00> : vector<8xf32>
    %384 = vector.multi_reduction <add>, %383, %cst_121 [1] : vector<8x128xf32> to vector<8xf32>
    %385 = vector.shape_cast %384 : vector<8xf32> to vector<8x1xf32>
    %cst_122 = arith.constant 3.125000e-02 : f32
    %386 = vector.broadcast %cst_122 : f32 to vector<8x1xf32>
    %387 = arith.mulf %385, %386 : vector<8x1xf32>
    %388 = arith.mulf %382, %382 : vector<8x1xf32>
    %389 = arith.subf %387, %388 : vector<8x1xf32>
    %390 = vector.broadcast %382 : vector<8x1xf32> to vector<8x128xf32>
    %391 = arith.subf %378, %390 : vector<8x128xf32>
    %cst_123 = arith.constant 9.99999974E-6 : f32
    %392 = vector.broadcast %cst_123 : f32 to vector<8x1xf32>
    %393 = arith.addf %389, %392 : vector<8x1xf32>
    %394 = math.rsqrt %393 : vector<8x1xf32>
    %395 = vector.broadcast %394 : vector<8x1xf32> to vector<8x128xf32>
    %396 = arith.mulf %391, %395 : vector<8x128xf32>
    %c200 = arith.constant 200 : index
    %c0_124 = arith.constant 0 : index
    %397 = vector.load %arg3[%c200, %c0_124] : memref<224x128xf32, #tpu.memory_space<vmem>>, vector<1x128xf32>
    %398 = vector.broadcast %397 : vector<1x128xf32> to vector<8x128xf32>
    %399 = arith.mulf %396, %398 : vector<8x128xf32>
    %c208 = arith.constant 208 : index
    %c0_125 = arith.constant 0 : index
    %400 = vector.load %arg3[%c208, %c0_125] : memref<224x128xf32, #tpu.memory_space<vmem>>, vector<1x128xf32>
    %401 = vector.broadcast %400 : vector<1x128xf32> to vector<8x128xf32>
    %402 = arith.addf %399, %401 : vector<8x128xf32>
    %403 = arith.truncf %402 : vector<8x128xf32> to vector<8x128xbf16>
    %c1248 = arith.constant 1248 : index
    %c0_126 = arith.constant 0 : index
    %404 = vector.load %arg2[%c1248, %c0_126] : memref<1376x128xbf16, #tpu.memory_space<vmem>>, vector<128x128xbf16>
    %cst_127 = arith.constant dense<0.000000e+00> : vector<8x128xf32>
    %405 = tpu.matmul %403, %404, %cst_127 {dimension_numbers = #tpu.dot_dimension_numbers<[1], [0], [0], [1], [0, 0, 1, 1], [], []>} : vector<8x128xbf16>, vector<128x128xbf16>, vector<8x128xf32> -> vector<8x128xf32>
    %c216 = arith.constant 216 : index
    %c0_128 = arith.constant 0 : index
    %406 = vector.load %arg3[%c216, %c0_128] : memref<224x128xf32, #tpu.memory_space<vmem>>, vector<1x128xf32>
    %407 = vector.broadcast %406 : vector<1x128xf32> to vector<8x128xf32>
    %408 = arith.addf %405, %407 : vector<8x128xf32>
    %c0_129 = arith.constant 0 : index
    %c0_130 = arith.constant 0 : index
    %c0_131 = arith.constant 0 : index
    %409 = vector.load %arg4[%c0_129, %c0_130, %c0_131] : memref<1x8x128xf32, #tpu.memory_space<vmem>>, vector<1x8x128xf32>
    %410 = vector.shape_cast %409 : vector<1x8x128xf32> to vector<8x128xf32>
    %411 = vector.shape_cast %408 : vector<8x128xf32> to vector<1x8x128xf32>
    tpu.vector_store %arg4[%c0_129, %c0_130, %c0_131], %411 {strides = array<i32>} : memref<1x8x128xf32, #tpu.memory_space<vmem>>, vector<1x8x128xf32>,
    return
  }
  func.func @transform_0(%arg0: i32) -> (i32, i32, i32) {
    %c0_i32 = arith.constant 0 : i32
    %c0_i32_0 = arith.constant 0 : i32
    %c0_i32_1 = arith.constant 0 : i32
    return %arg0, %c0_i32, %c0_i32_0 : i32, i32, i32
  }
  func.func @transform_1(%arg0: i32) -> (i32, i32) {
    %c0_i32 = arith.constant 0 : i32
    %c0_i32_0 = arith.constant 0 : i32
    %c0_i32_1 = arith.constant 0 : i32
    return %c0_i32, %c0_i32_0 : i32, i32
  }
  func.func @transform_2(%arg0: i32) -> (i32, i32) {
    %c0_i32 = arith.constant 0 : i32
    %c0_i32_0 = arith.constant 0 : i32
    %c0_i32_1 = arith.constant 0 : i32
    return %c0_i32, %c0_i32_0 : i32, i32
  }
  func.func @transform_3(%arg0: i32) -> (i32, i32, i32) {
    %c0_i32 = arith.constant 0 : i32
    %c0_i32_0 = arith.constant 0 : i32
    %c0_i32_1 = arith.constant 0 : i32
    return %arg0, %c0_i32, %c0_i32_0 : i32, i32, i32
  }
}

</mosaic_0001>

<llo_original>
// kernel: model_forward.1
$region0: #{model_forward.1}
  #allocation0 [shape = 'u32[]', space=smem, size = 0x4, offset = 0x4, fixed_abs, tag = 'smem constant byte address 0x4 - core index']
  #allocation1 [shape = 'u32[144,128]{1,0:T(1,128)}', space=vmem, size = 0x12000, scoped, tag = 'internal scratch']
  %s0 = inlined_call_operand.vmem [shape: bf16[2,36,128], index: 0, kind: input, shape index: {}]
  %s1 = inlined_call_operand.vmem [shape: bf16[1376,128], index: 1, kind: input, shape index: {}]
  %s2 = inlined_call_operand.vmem [shape: f32[224,128], index: 2, kind: input, shape index: {}]
  %s3 = inlined_call_operand.vmem [shape: f32[2,8,128], index: 3, kind: output, shape index: {}]
  %s4 = sld [smem:[#allocation0]]
  $region45: #{model_forward.1} parent=0
    _
  %s6 = ssub.s32 1, %s4
  %s7 = scalar_select 0, %s6, %s4
  loop: start=0, step=1, limit=4
  $region2: #{model_forward.1} parent=0 // loop_pre_header
    _
  $region3: #{model_forward.1} parent=0 // loop_header
    %s9 = sphi 0, %s13
    %p10 = scmp.ge.s32.totalorder %s9, 4
    %s19 = sphi 0, %s21
    %s22 = sphi 0, %s19
    %s23 = sphi 0, %s22
    %s39 = sphi 0, %s23
    %s43 = sphi 0, %s43
    %s45 = sphi 0, %s43
    %s46 = sphi 0, %s45
    %s60 = sphi 0, %s46
    %s64 = sphi 0, %s64
    %s66 = sphi 0, %s64
    %s67 = sphi 0, %s66
    %s81 = sphi 0, %s67
    %s87 = sphi 0, %s89
    %s90 = sphi 0, %s87
    %s91 = sphi 0, %s90
    %s107 = sphi 0, %s91
  $region4: #{model_forward.1} parent=0 // loop_header_branch
    %12 = sbr.rel (%p10) target = $region8
  $region5: #{model_forward.1} parent=0 // loop_body
    %s14 = ssub.s32 %s9, 1
    %s15 = ssub.s32 %s9, 2
    %s16 = sadd.s32 %s9, 1
    %s17 = ssub.s32 %s9, %s16
    %p18 = scmp.eq.s32.totalorder %s17, 0
    %s20 = sadd.s32 %s19, 1
    %s21 = scalar_select %p18, %s19, %s20
    %p24 = pneg %p18
    %p25 = scmp.eq.s32.totalorder %s9, 1
    %p26 = por %p24, %p25
    %p27 = scmp.ne.s32.totalorder %s19, %s22
    %p28 = scmp.eq.s32.totalorder %s9, 0
    %p29 = por %p27, %p28
    %p30 = scmp.ne.s32.totalorder %s19, %s22
    %p31 = scmp.eq.s32.totalorder %s14, 1
    %p32 = por %p30, %p31
    %p33 = scmp.ne.s32.totalorder %s22, %s23
    %p34 = scmp.eq.s32.totalorder %s14, 0
    %p35 = por %p33, %p34
    %p36 = scmp.ne.s32.totalorder %s22, %s23
    %p37 = scmp.eq.s32.totalorder %s15, 1
    %p38 = por %p36, %p37
    %p40 = scmp.ne.s32.totalorder %s23, %s39
    %p41 = scmp.eq.s32.totalorder %s15, 0
    %p42 = por %p40, %p41
    %s44 = sadd.s32 %s43, 1
    %p47 = scmp.eq.s32.totalorder %s9, 1
    %p48 = scmp.ne.s32.totalorder %s43, %s45
    %p49 = scmp.eq.s32.totalorder %s9, 0
    %p50 = por %p48, %p49
    %p51 = scmp.ne.s32.totalorder %s43, %s45
    %p52 = scmp.eq.s32.totalorder %s14, 1
    %p53 = por %p51, %p52
    %p54 = scmp.ne.s32.totalorder %s45, %s46
    %p55 = scmp.eq.s32.totalorder %s14, 0
    %p56 = por %p54, %p55
    %p57 = scmp.ne.s32.totalorder %s45, %s46
    %p58 = scmp.eq.s32.totalorder %s15, 1
    %p59 = por %p57, %p58
    %p61 = scmp.ne.s32.totalorder %s46, %s60
    %p62 = scmp.eq.s32.totalorder %s15, 0
    %p63 = por %p61, %p62
    %s65 = sadd.s32 %s64, 1
    %p68 = scmp.eq.s32.totalorder %s9, 1
    %p69 = scmp.ne.s32.totalorder %s64, %s66
    %p70 = scmp.eq.s32.totalorder %s9, 0
    %p71 = por %p69, %p70
    %p72 = scmp.ne.s32.totalorder %s64, %s66
    %p73 = scmp.eq.s32.totalorder %s14, 1
    %p74 = por %p72, %p73
    %p75 = scmp.ne.s32.totalorder %s66, %s67
    %p76 = scmp.eq.s32.totalorder %s14, 0
    %p77 = por %p75, %p76
    %p78 = scmp.ne.s32.totalorder %s66, %s67
    %p79 = scmp.eq.s32.totalorder %s15, 1
    %p80 = por %p78, %p79
    %p82 = scmp.ne.s32.totalorder %s67, %s81
    %p83 = scmp.eq.s32.totalorder %s15, 0
    %p84 = por %p82, %p83
    %s85 = ssub.s32 %s9, %s16
    %p86 = scmp.eq.s32.totalorder %s85, 0
    %s88 = sadd.s32 %s87, 1
    %s89 = scalar_select %p86, %s87, %s88
    %p92 = pneg %p86
    %p93 = scmp.eq.s32.totalorder %s9, 1
    %p94 = por %p92, %p93
    %p95 = scmp.ne.s32.totalorder %s87, %s90
    %p96 = scmp.eq.s32.totalorder %s9, 0
    %p97 = por %p95, %p96
    %p98 = scmp.ne.s32.totalorder %s87, %s90
    %p99 = scmp.eq.s32.totalorder %s14, 1
    %p100 = por %p98, %p99
    %p101 = scmp.ne.s32.totalorder %s90, %s91
    %p102 = scmp.eq.s32.totalorder %s14, 0
    %p103 = por %p101, %p102
    %p104 = scmp.ne.s32.totalorder %s90, %s91
    %p105 = scmp.eq.s32.totalorder %s15, 1
    %p106 = por %p104, %p105
    %p108 = scmp.ne.s32.totalorder %s91, %s107
    %p109 = scmp.eq.s32.totalorder %s15, 0
    %p110 = por %p108, %p109
    %p111 = scmp.le.s32.totalorder 1, %s9
    %p112 = scmp.lt.s32.totalorder %s9, 3
    %p113 = pnand %p111, %p112
    %p114 = pneg %p113
    // Predicated region
    $region9: #{model_forward.1} parent=5 // pred_check
      _
    $region10: #{model_forward.1} parent=5 // pred_check_branch
      %116 = sbr.rel (%p113) target = $region12
    $region11: #{model_forward.1} parent=5 // pred_region
      %s117 = ssub.s32 %s9, 1
      // Predicated region
      $region13: #{model_forward.1} parent=11 // pred_check
        %p118 = pneg %p56
      $region14: #{model_forward.1} parent=11 // pred_check_branch
        %120 = sbr.rel (%p118) target = $region16
      $region15: #{model_forward.1} parent=11 // pred_region
        _
      $region16: #{model_forward.1} parent=11 // pred_fallthru
        _
      // Predicated region
      $region17: #{model_forward.1} parent=11 // pred_check
        %p121 = pneg %p77
      $region18: #{model_forward.1} parent=11 // pred_check_branch
        %123 = sbr.rel (%p121) target = $region20
      $region19: #{model_forward.1} parent=11 // pred_region
        _
      $region20: #{model_forward.1} parent=11 // pred_fallthru
        _
    $region12: #{model_forward.1} parent=5 // pred_fallthru
      _
    %p124 = scmp.lt.s32.totalorder %s9, 2
    // Predicated region
    $region21: #{model_forward.1} parent=5 // pred_check
      %p125 = pneg %p124
    $region22: #{model_forward.1} parent=5 // pred_check_branch
      %127 = sbr.rel (%p125) target = $region24
    $region23: #{model_forward.1} parent=5 // pred_region
      // Predicated region
      $region25: #{model_forward.1} parent=23 // pred_check
        %p128 = pneg %p29
      $region26: #{model_forward.1} parent=23 // pred_check_branch
        %130 = sbr.rel (%p128) target = $region28
      $region27: #{model_forward.1} parent=23 // pred_region
        %p131 = scmp.lt.s32.totalorder %s9, 1
        %s132 = scalar_select %p131, %s9, 1
        %s133 = smul.addr %s132, 5
        %s134 = smul.addr %s133, 4
        %s135 = scalar_lea.vmem %s0, %s134
      $region28: #{model_forward.1} parent=23 // pred_fallthru
        _
    $region24: #{model_forward.1} parent=5 // pred_fallthru
      _
    %p136 = scmp.le.s32.totalorder 1, %s9
    %p137 = scmp.lt.s32.totalorder %s9, 3
    %p138 = pnand %p136, %p137
    %p139 = pneg %p138
    // Predicated region
    $region29: #{model_forward.1} parent=5 // pred_check
      _
    $region30: #{model_forward.1} parent=5 // pred_check_branch
      %141 = sbr.rel (%p138) target = $region32
    $region31: #{model_forward.1} parent=5 // pred_region
      %s142 = ssub.s32 %s9, 1
      %p143 = scmp.lt.s32.totalorder %s14, 1
      %s144 = scalar_select %p143, %s14, 1
      %s145 = smul.addr %s144, 5
      %s146 = smul.addr %s145, 4
      %s147 = scalar_lea.vmem %s0, %s146
      %p148 = pneg %p35
      %p149 = pneg %p32
      %p150 = pneg %p56
      %p151 = pneg %p53
      %p152 = pneg %p77
      %p153 = pneg %p74
      %p154 = pneg %p103
      %p155 = pneg %p100
      %p156 = scmp.lt.s32.totalorder %s14, 1
      %s157 = scalar_select %p156, %s14, 1
      %s158 = smul.addr %s157, 8
      %s159 = scalar_lea.vmem %s3, %s158
      %p160 = scmp.lt.s32.totalorder %s14, 1
      %s161 = scalar_select %p160, %s14, 1
      %s162 = smul.addr %s161, 5
      %s163 = smul.addr %s162, 4
      %s164 = scalar_lea.vmem %s0, %s163
      %p165 = scmp.lt.s32.totalorder %s14, 1
      %s166 = scalar_select %p165, %s14, 1
      %s167 = smul.addr %s166, 8
      %s168 = scalar_lea.vmem %s3, %s167
      %v170 = vld [vmem:[%s164] sm:$0xf]
      %v171 = vld [vmem:[%s164 + $0x4] sm:$0xf]
      %v172 = vld [vmem:[%s164 + $0x8] sm:$0xf]
      %v173 = vld [vmem:[%s164 + $0xc] sm:$0xf]
      %v174 = vld [vmem:[%s164 + $0x10] sm:$0x3]
      %v175 = vld [vmem:[%s1] sm:$0xf]
      %v176 = vld [vmem:[%s1 + $0x4] sm:$0xf]
      %v177 = vld [vmem:[%s1 + $0x8] sm:$0xf]
      %v178 = vld [vmem:[%s1 + $0xc] sm:$0xf]
      %v179 = vld [vmem:[%s1 + $0x10] sm:$0xf]
      %v180 = vld [vmem:[%s1 + $0x14] sm:$0xf]
      %v181 = vld [vmem:[%s1 + $0x18] sm:$0xf]
      %v182 = vld [vmem:[%s1 + $0x1c] sm:$0xf]
      %v183 = vld [vmem:[%s1 + $0x20] sm:$0xf]
      %v184 = vld [vmem:[%s1 + $0x24] sm:$0xf]
      %v185 = vld [vmem:[%s1 + $0x28] sm:$0xf]
      %v186 = vld [vmem:[%s1 + $0x2c] sm:$0xf]
      %v187 = vld [vmem:[%s1 + $0x30] sm:$0xf]
      %v188 = vld [vmem:[%s1 + $0x34] sm:$0xf]
      %v189 = vld [vmem:[%s1 + $0x38] sm:$0xf]
      %v190 = vld [vmem:[%s1 + $0x3c] sm:$0xf]
      %v191 = vld [vmem:[%s2] sm:$0xff]
      %v192 = vld [vmem:[%s2 + $0x8] sm:$0xff]
      %v193 = vld [vmem:[%s2 + $0x10] sm:$0xff]
      %v194 = vld [vmem:[%s2 + $0x18] sm:$0xff]
      %v195 = vld [vmem:[%s2 + $0x20] sm:$0xf]
      %v201 = vunpack.c.l.b16 %v170
      %v202 = vunpack.c.l.b16 %v171
      %v203 = vunpack.c.l.b16 %v172
      %v204 = vunpack.c.l.b16 %v173
      %v205 = vunpack.c.l.b16 %v174
      %v206 = vpack.c.b16 %v202, %v201
      %v207 = vpack.c.b16 %v204, %v203
      %v208 = vpack.c.b16 %v205, %v205
      %v228 = vunpack.c.l.b16 %v175
      %v229 = vunpack.c.l.b16 %v176
      %v230 = vunpack.c.l.b16 %v177
      %v231 = vunpack.c.l.b16 %v178
      %v232 = vunpack.c.l.b16 %v179
      %v233 = vunpack.c.l.b16 %v180
      %v234 = vunpack.c.l.b16 %v181
      %v235 = vunpack.c.l.b16 %v182
      %v236 = vunpack.c.l.b16 %v183
      %v237 = vunpack.c.l.b16 %v184
      %v238 = vunpack.c.l.b16 %v185
      %v239 = vunpack.c.l.b16 %v186
      %v240 = vunpack.c.l.b16 %v187
      %v241 = vunpack.c.l.b16 %v188
      %v242 = vunpack.c.l.b16 %v189
      %v243 = vunpack.c.l.b16 %v190
      %v244 = vpack.c.b16 %v229, %v228
      %v245 = vpack.c.b16 %v231, %v230
      %v246 = vpack.c.b16 %v233, %v232
      %v247 = vpack.c.b16 %v235, %v234
      %v248 = vpack.c.b16 %v237, %v236
      %v249 = vpack.c.b16 %v239, %v238
      %v250 = vpack.c.b16 %v241, %v240
      %v251 = vpack.c.b16 %v243, %v242
      %260 = vmatprep.subr.bf16.mxu0 0
      %261 = vmatpush1.bf16.msra.mxu0 %v251
      %262 = vmatprep.subr.bf16.mxu0 0
      %263 = vmatpush1.bf16.msra.mxu0 %v250
      %264 = vmatprep.subr.bf16.mxu0 0
      %265 = vmatpush1.bf16.msra.mxu0 %v249
      %266 = vmatprep.subr.bf16.mxu0 0
      %267 = vmatpush1.bf16.msra.mxu0 %v248
      %268 = vmatprep.subr.bf16.mxu0 0
      %269 = vmatpush1.bf16.msra.mxu0 %v247
      %270 = vmatprep.subr.bf16.mxu0 0
      %271 = vmatpush1.bf16.msra.mxu0 %v246
      %272 = vmatprep.subr.bf16.mxu0 0
      %273 = vmatpush1.bf16.msra.mxu0 %v245
      %274 = vmatprep.subr.bf16.mxu0 0
      %275 = vmatpush1.bf16.msra.mxu0 %v244
      %276 = vmatprep.subr.bf16.mxu0 0
      %277 = vmatpush2.bf16.msra.mxu0 0
      %278 = vmatprep.subr.bf16.mxu0 0
      %279 = vmatpush2.bf16.msra.mxu0 0
      %280 = vmatprep.subr.bf16.mxu0 0
      %281 = vmatpush2.bf16.msra.mxu0 0
      %282 = vmatprep.subr.bf16.mxu0 0
      %283 = vmatpush2.bf16.msra.mxu0 0
      %284 = vmatprep.subr.bf16.mxu0 0
      %285 = vmatpush2.bf16.msra.mxu0 0
      %286 = vmatprep.subr.bf16.mxu0 0
      %287 = vmatpush2.bf16.msra.mxu0 0
      %288 = vmatprep.subr.bf16.mxu0 0
      %289 = vmatpush2.bf16.msra.mxu0 0
      %290 = vmatprep.subr.bf16.mxu0 0
      %291 = vmatpush2.bf16.msra.mxu0 0
      %292 = vmatprep.mubr.bf16.mxu0 0
      %293 = vmatmul.mubr.bf16.gmra.mxu0 %v206
      %v294 = vpop.f32.mrf.mxu0
      %v295 = vadd.f32 %v191, %v294
      %v296 = vpop.f32.mrf.mxu0
      %v297 = vpop.f32.mrf.mxu0
      %v298 = vadd.f32 %v192, %v297
      %v299 = vpop.f32.mrf.mxu0
      %300 = vmatprep.mubr.bf16.mxu0 0
      %301 = vmatmul.mubr.bf16.gmra.mxu0 %v207
      %v302 = vpop.f32.mrf.mxu0
      %v303 = vadd.f32 %v193, %v302
      %v304 = vpop.f32.mrf.mxu0
      %v305 = vpop.f32.mrf.mxu0
      %v306 = vadd.f32 %v194, %v305
      %v307 = vpop.f32.mrf.mxu0
      %308 = vmatprep.mubr.bf16.mxu0 0
      %309 = vmatmul.mubr.bf16.gmra.mxu0 %v208
      %v310 = vpop.f32.mrf.mxu0
      %v311 = vadd.f32 %v195, %v310
      %v312 = vpop.f32.mrf.mxu0
      %v313 = vpop.f32.mrf.mxu0
      %v314 = vpop.f32.mrf.mxu0
      %315 = vdwg.mxu0
      %v316 = vpack.c.bf16 %v298, %v295
      %v317 = vpack.c.bf16 %v306, %v303
      %v318 = vpack.c.bf16 %v311, %v311
      %v319 = vld [vmem:[%s1 + $0x40] sm:$0xf]
      %v320 = vld [vmem:[%s1 + $0x44] sm:$0xf]
      %v321 = vld [vmem:[%s1 + $0x48] sm:$0xf]
      %v322 = vld [vmem:[%s1 + $0x4c] sm:$0xf]
      %v323 = vld [vmem:[%s1 + $0x50] sm:$0xf]
      %v324 = vld [vmem:[%s1 + $0x54] sm:$0xf]
      %v325 = vld [vmem:[%s1 + $0x58] sm:$0xf]
      %v326 = vld [vmem:[%s1 + $0x5c] sm:$0xf]
      %v327 = vld [vmem:[%s1 + $0x60] sm:$0xf]
      %v328 = vld [vmem:[%s1 + $0x64] sm:$0xf]
      %v329 = vld [vmem:[%s1 + $0x68] sm:$0xf]
      %v330 = vld [vmem:[%s1 + $0x6c] sm:$0xf]
      %v331 = vld [vmem:[%s1 + $0x70] sm:$0xf]
      %v332 = vld [vmem:[%s1 + $0x74] sm:$0xf]
      %v333 = vld [vmem:[%s1 + $0x78] sm:$0xf]
      %v334 = vld [vmem:[%s1 + $0x7c] sm:$0xf]
      %v335 = vld [vmem:[%s2 + $0x30] sm:$0x1]
      %v336 = vlaneseq
      %v337 = vshrl.u32 %v336, 7
      %v338 = vsub.s32 0, %v337
      %v339 = vrot.slane %v335, %v338
      %v356 = vunpack.c.l.b16 %v319
      %v357 = vunpack.c.l.b16 %v320
      %v358 = vunpack.c.l.b16 %v321
      %v359 = vunpack.c.l.b16 %v322
      %v360 = vunpack.c.l.b16 %v323
      %v361 = vunpack.c.l.b16 %v324
      %v362 = vunpack.c.l.b16 %v325
      %v363 = vunpack.c.l.b16 %v326
      %v364 = vunpack.c.l.b16 %v327
      %v365 = vunpack.c.l.b16 %v328
      %v366 = vunpack.c.l.b16 %v329
      %v367 = vunpack.c.l.b16 %v330
      %v368 = vunpack.c.l.b16 %v331
      %v369 = vunpack.c.l.b16 %v332
      %v370 = vunpack.c.l.b16 %v333
      %v371 = vunpack.c.l.b16 %v334
      %v372 = vpack.c.b16 %v357, %v356
      %v373 = vpack.c.b16 %v359, %v358
      %v374 = vpack.c.b16 %v361, %v360
      %v375 = vpack.c.b16 %v363, %v362
      %v376 = vpack.c.b16 %v365, %v364
      %v377 = vpack.c.b16 %v367, %v366
      %v378 = vpack.c.b16 %v369, %v368
      %v379 = vpack.c.b16 %v371, %v370
      %388 = vmatprep.subr.bf16.mxu0 0
      %389 = vmatpush1.bf16.msra.mxu0 %v379
      %390 = vmatprep.subr.bf16.mxu0 0
      %391 = vmatpush1.bf16.msra.mxu0 %v378
      %392 = vmatprep.subr.bf16.mxu0 0
      %393 = vmatpush1.bf16.msra.mxu0 %v377
      %394 = vmatprep.subr.bf16.mxu0 0
      %395 = vmatpush1.bf16.msra.mxu0 %v376
      %396 = vmatprep.subr.bf16.mxu0 0
      %397 = vmatpush1.bf16.msra.mxu0 %v375
      %398 = vmatprep.subr.bf16.mxu0 0
      %399 = vmatpush1.bf16.msra.mxu0 %v374
      %400 = vmatprep.subr.bf16.mxu0 0
      %401 = vmatpush1.bf16.msra.mxu0 %v373
      %402 = vmatprep.subr.bf16.mxu0 0
      %403 = vmatpush1.bf16.msra.mxu0 %v372
      %404 = vmatprep.subr.bf16.mxu0 0
      %405 = vmatpush2.bf16.msra.mxu0 0
      %406 = vmatprep.subr.bf16.mxu0 0
      %407 = vmatpush2.bf16.msra.mxu0 0
      %408 = vmatprep.subr.bf16.mxu0 0
      %409 = vmatpush2.bf16.msra.mxu0 0
      %410 = vmatprep.subr.bf16.mxu0 0
      %411 = vmatpush2.bf16.msra.mxu0 0
      %412 = vmatprep.subr.bf16.mxu0 0
      %413 = vmatpush2.bf16.msra.mxu0 0
      %414 = vmatprep.subr.bf16.mxu0 0
      %415 = vmatpush2.bf16.msra.mxu0 0
      %416 = vmatprep.subr.bf16.mxu0 0
      %417 = vmatpush2.bf16.msra.mxu0 0
      %418 = vmatprep.subr.bf16.mxu0 0
      %419 = vmatpush2.bf16.msra.mxu0 0
      %420 = vmatprep.mubr.bf16.mxu0 0
      %421 = vmatmul.mubr.bf16.gmra.mxu0 %v316
      %v422 = vpop.f32.mrf.mxu0
      %v423 = vadd.f32 %v339, %v422
      %v424 = vpop.f32.mrf.mxu0
      %v425 = vpop.f32.mrf.mxu0
      %v426 = vadd.f32 %v339, %v425
      %v427 = vpop.f32.mrf.mxu0
      %428 = vmatprep.mubr.bf16.mxu0 0
      %429 = vmatmul.mubr.bf16.gmra.mxu0 %v317
      %v430 = vpop.f32.mrf.mxu0
      %v431 = vadd.f32 %v339, %v430
      %v432 = vpop.f32.mrf.mxu0
      %v433 = vpop.f32.mrf.mxu0
      %v434 = vadd.f32 %v339, %v433
      %v435 = vpop.f32.mrf.mxu0
      %436 = vmatprep.mubr.bf16.mxu0 0
      %437 = vmatmul.mubr.bf16.gmra.mxu0 %v318
      %v438 = vpop.f32.mrf.mxu0
      %v439 = vadd.f32 %v339, %v438
      %v440 = vpop.f32.mrf.mxu0
      %v441 = vpop.f32.mrf.mxu0
      %v442 = vpop.f32.mrf.mxu0
      %443 = vdwg.mxu0
      %v444 = vpack.c.bf16 %v426, %v423
      %v445 = vpack.c.bf16 %v434, %v431
      %v446 = vpack.c.bf16 %v439, %v439
      %450 = vrot.lane.b32.xlu0 %v444, 96
      %v451 = vpop.permute.xlu0 %450
      %452 = vrot.lane.b32.xlu0 %v445, 96
      %v453 = vpop.permute.xlu0 %452
      %454 = vrot.lane.b32.xlu0 %v446, 96
      %v455 = vpop.permute.xlu0 %454
      %vm456 = vcmask 64512
      %v458 = vsel %vm456, %v444, 0
      %v461 = vsel %vm456, %v445, 0
      %v464 = vsel %vm456, %v446, 0
      %v467 = vsel %vm456, %v451, 0
      %v470 = vsel %vm456, %v453, 0
      %v473 = vsel %vm456, %v455, 0
      %475 = vmatprep.subr.bf16.mxu0 0
      %476 = vmatpush1.bf16.xpose.msra.mxu0 0
      %477 = vmatprep.subr.bf16.mxu0 0
      %478 = vmatpush1.bf16.xpose.msra.mxu0 0
      %479 = vmatprep.subr.bf16.mxu0 0
      %480 = vmatpush1.bf16.xpose.msra.mxu0 0
      %481 = vmatprep.subr.bf16.mxu0 0
      %482 = vmatpush1.bf16.xpose.msra.mxu0 0
      %483 = vmatprep.subr.bf16.mxu0 0
      %484 = vmatpush1.bf16.xpose.msra.mxu0 0
      %485 = vmatprep.subr.bf16.mxu0 0
      %486 = vmatpush1.bf16.xpose.msra.mxu0 %v473
      %487 = vmatprep.subr.bf16.mxu0 0
      %488 = vmatpush1.bf16.xpose.msra.mxu0 %v470
      %489 = vmatprep.subr.bf16.mxu0 0
      %490 = vmatpush1.bf16.xpose.msra.mxu0 %v467
      %491 = vmatprep.subr.bf16.mxu0 0
      %492 = vmatpush2.bf16.xpose.msra.mxu0 0
      %493 = vmatprep.subr.bf16.mxu0 0
      %494 = vmatpush2.bf16.xpose.msra.mxu0 0
      %495 = vmatprep.subr.bf16.mxu0 0
      %496 = vmatpush2.bf16.xpose.msra.mxu0 0
      %497 = vmatprep.subr.bf16.mxu0 0
      %498 = vmatpush2.bf16.xpose.msra.mxu0 0
      %499 = vmatprep.subr.bf16.mxu0 0
      %500 = vmatpush2.bf16.xpose.msra.mxu0 0
      %501 = vmatprep.subr.bf16.mxu0 0
      %502 = vmatpush2.bf16.xpose.msra.mxu0 0
      %503 = vmatprep.subr.bf16.mxu0 0
      %504 = vmatpush2.bf16.xpose.msra.mxu0 0
      %505 = vmatprep.subr.bf16.mxu0 0
      %506 = vmatpush2.bf16.xpose.msra.mxu0 0
      %507 = vmatprep.mubr.bf16.mxu0 0
      %508 = vmatmul.mubr.bf16.gmra.mxu0 %v458
      %v509 = vpop.f32.mrf.mxu0
      %v510 = vadd.f32 0.0, %v509
      %v511 = vpop.f32.mrf.mxu0
      %v512 = vpop.f32.mrf.mxu0
      %v513 = vadd.f32 0.0, %v512
      %v514 = vpop.f32.mrf.mxu0
      %515 = vmatprep.mubr.bf16.mxu0 0
      %516 = vmatmul.mubr.bf16.gmra.mxu0 %v461
      %v517 = vpop.f32.mrf.mxu0
      %v518 = vadd.f32 0.0, %v517
      %v519 = vpop.f32.mrf.mxu0
      %v520 = vpop.f32.mrf.mxu0
      %v521 = vadd.f32 0.0, %v520
      %v522 = vpop.f32.mrf.mxu0
      %523 = vmatprep.mubr.bf16.mxu0 0
      %524 = vmatmul.mubr.bf16.gmra.mxu0 %v464
      %v525 = vpop.f32.mrf.mxu0
      %v526 = vadd.f32 0.0, %v525
      %v527 = vpop.f32.mrf.mxu0
      %v528 = vpop.f32.mrf.mxu0
      %v529 = vpop.f32.mrf.mxu0
      %530 = vdwg.mxu0
      %vm531 = vcmask 293888
      %v532 = vsel %vm531, %v510, -inf
      %533 = vmax.xlane.f32.xlu0 %v532
      %v534 = vpop.xlane.xlu0 %533
      %v535 = vsel %vm531, %v513, -inf
      %536 = vmax.xlane.f32.xlu0 %v535
      %v537 = vpop.xlane.xlu0 %536
      %v538 = vsel %vm531, %v518, -inf
      %539 = vmax.xlane.f32.xlu0 %v538
      %v540 = vpop.xlane.xlu0 %539
      %v541 = vsel %vm531, %v521, -inf
      %542 = vmax.xlane.f32.xlu0 %v541
      %v543 = vpop.xlane.xlu0 %542
      %vm544 = vcmask 289792
      %v545 = vsel %vm544, %v526, -inf
      %546 = vmax.xlane.f32.xlu0 %v545
      %v547 = vpop.xlane.xlu0 %546
      %v548 = vsub.f32 %v510, %v534
      %v549 = vsub.f32 %v513, %v537
      %v550 = vsub.f32 %v518, %v540
      %v551 = vsub.f32 %v521, %v543
      %v552 = vsub.f32 %v526, %v547
      %v553 = vmul.f32 %v548, 1.442695
      %v554 = vpow.pop %v553
      %v555 = vmul.f32 %v549, 1.442695
      %v556 = vpow.pop %v555
      %v557 = vmul.f32 %v550, 1.442695
      %v558 = vpow.pop %v557
      %v559 = vmul.f32 %v551, 1.442695
      %v560 = vpow.pop %v559
      %v561 = vmul.f32 %v552, 1.442695
      %v562 = vpow.pop %v561
      %v563 = vsel %vm531, %v554, 0.0
      %564 = vadd.xlane.f32.xlu0 %v563
      %v565 = vpop.xlane.xlu0 %564
      %v566 = vsel %vm531, %v556, 0.0
      %567 = vadd.xlane.f32.xlu0 %v566
      %v568 = vpop.xlane.xlu0 %567
      %v569 = vsel %vm531, %v558, 0.0
      %570 = vadd.xlane.f32.xlu0 %v569
      %v571 = vpop.xlane.xlu0 %570
      %v572 = vsel %vm531, %v560, 0.0
      %573 = vadd.xlane.f32.xlu0 %v572
      %v574 = vpop.xlane.xlu0 %573
      %v575 = vsel %vm544, %v562, 0.0
      %576 = vadd.xlane.f32.xlu0 %v575
      %v577 = vpop.xlane.xlu0 %576
      %v578 = vrcp.pop %v565
      %v579 = vrcp.pop %v568
      %v580 = vrcp.pop %v571
      %v581 = vrcp.pop %v574
      %v582 = vrcp.pop %v577
      %v583 = vmul.f32 %v554, %v578
      %v584 = vmul.f32 %v556, %v579
      %v585 = vmul.f32 %v558, %v580
      %v586 = vmul.f32 %v560, %v581
      %v587 = vmul.f32 %v562, %v582
      %v588 = vpack.c.bf16 %v584, %v583
      %v589 = vpack.c.bf16 %v586, %v585
      %v590 = vpack.c.bf16 %v587, %v587
      %591 = vrot.lane.b32.xlu0 %v444, 64
      %v592 = vpop.permute.xlu0 %591
      %593 = vrot.lane.b32.xlu0 %v445, 64
      %v594 = vpop.permute.xlu0 %593
      %595 = vrot.lane.b32.xlu0 %v446, 64
      %v596 = vpop.permute.xlu0 %595
      %v600 = vsel %vm531, %v588, 0
      %v603 = vsel %vm531, %v589, 0
      %v606 = vsel %vm531, %v590, 0
      %vm608 = vcmask 1041408
      %v610 = vsel %vm608, %v596, 0
      %612 = vmatprep.subr.bf16.mxu0 0
      %613 = vmatpush1.bf16.msra.mxu0 0
      %614 = vmatprep.subr.bf16.mxu0 0
      %615 = vmatpush1.bf16.msra.mxu0 0
      %616 = vmatprep.subr.bf16.mxu0 0
      %617 = vmatpush1.bf16.msra.mxu0 0
      %618 = vmatprep.subr.bf16.mxu0 0
      %619 = vmatpush1.bf16.msra.mxu0 0
      %620 = vmatprep.subr.bf16.mxu0 0
      %621 = vmatpush1.bf16.msra.mxu0 0
      %622 = vmatprep.subr.bf16.mxu0 0
      %623 = vmatpush1.bf16.msra.mxu0 %v610
      %624 = vmatprep.subr.bf16.mxu0 0
      %625 = vmatpush1.bf16.msra.mxu0 %v594
      %626 = vmatprep.subr.bf16.mxu0 0
      %627 = vmatpush1.bf16.msra.mxu0 %v592
      %628 = vmatprep.subr.bf16.mxu0 0
      %629 = vmatpush2.bf16.msra.mxu0 0
      %630 = vmatprep.subr.bf16.mxu0 0
      %631 = vmatpush2.bf16.msra.mxu0 0
      %632 = vmatprep.subr.bf16.mxu0 0
      %633 = vmatpush2.bf16.msra.mxu0 0
      %634 = vmatprep.subr.bf16.mxu0 0
      %635 = vmatpush2.bf16.msra.mxu0 0
      %636 = vmatprep.subr.bf16.mxu0 0
      %637 = vmatpush2.bf16.msra.mxu0 0
      %638 = vmatprep.subr.bf16.mxu0 0
      %639 = vmatpush2.bf16.msra.mxu0 0
      %640 = vmatprep.subr.bf16.mxu0 0
      %641 = vmatpush2.bf16.msra.mxu0 0
      %642 = vmatprep.subr.bf16.mxu0 0
      %643 = vmatpush2.bf16.msra.mxu0 0
      %644 = vmatprep.mubr.bf16.mxu0 0
      %645 = vmatmul.mubr.bf16.gmra.mxu0 %v600
      %v646 = vpop.f32.mrf.mxu0
      %v647 = vadd.f32 0.0, %v646
      %v648 = vpop.f32.mrf.mxu0
      %v649 = vpop.f32.mrf.mxu0
      %v650 = vadd.f32 0.0, %v649
      %v651 = vpop.f32.mrf.mxu0
      %652 = vmatprep.mubr.bf16.mxu0 0
      %653 = vmatmul.mubr.bf16.gmra.mxu0 %v603
      %v654 = vpop.f32.mrf.mxu0
      %v655 = vadd.f32 0.0, %v654
      %v656 = vpop.f32.mrf.mxu0
      %v657 = vpop.f32.mrf.mxu0
      %v658 = vadd.f32 0.0, %v657
      %v659 = vpop.f32.mrf.mxu0
      %660 = vmatprep.mubr.bf16.mxu0 0
      %661 = vmatmul.mubr.bf16.gmra.mxu0 %v606
      %v662 = vpop.f32.mrf.mxu0
      %v663 = vadd.f32 0.0, %v662
      %v664 = vpop.f32.mrf.mxu0
      %v665 = vpop.f32.mrf.mxu0
      %v666 = vpop.f32.mrf.mxu0
      %667 = vdwg.mxu0
      %668 = vrot.lane.b32.xlu0 %v444, 120
      %v669 = vpop.permute.xlu0 %668
      %670 = vrot.lane.b32.xlu0 %v445, 120
      %v671 = vpop.permute.xlu0 %670
      %672 = vrot.lane.b32.xlu0 %v446, 120
      %v673 = vpop.permute.xlu0 %672
      %674 = vrot.lane.b32.xlu0 %v444, 88
      %v675 = vpop.permute.xlu0 %674
      %676 = vrot.lane.b32.xlu0 %v445, 88
      %v677 = vpop.permute.xlu0 %676
      %678 = vrot.lane.b32.xlu0 %v446, 88
      %v679 = vpop.permute.xlu0 %678
      %v681 = vsel %vm456, %v669, 0
      %v684 = vsel %vm456, %v671, 0
      %v687 = vsel %vm456, %v673, 0
      %v690 = vsel %vm456, %v675, 0
      %v693 = vsel %vm456, %v677, 0
      %v696 = vsel %vm456, %v679, 0
      %698 = vmatprep.subr.bf16.mxu0 0
      %699 = vmatpush1.bf16.xpose.msra.mxu0 0
      %700 = vmatprep.subr.bf16.mxu0 0
      %701 = vmatpush1.bf16.xpose.msra.mxu0 0
      %702 = vmatprep.subr.bf16.mxu0 0
      %703 = vmatpush1.bf16.xpose.msra.mxu0 0
      %704 = vmatprep.subr.bf16.mxu0 0
      %705 = vmatpush1.bf16.xpose.msra.mxu0 0
      %706 = vmatprep.subr.bf16.mxu0 0
      %707 = vmatpush1.bf16.xpose.msra.mxu0 0
      %708 = vmatprep.subr.bf16.mxu0 0
      %709 = vmatpush1.bf16.xpose.msra.mxu0 %v696
      %710 = vmatprep.subr.bf16.mxu0 0
      %711 = vmatpush1.bf16.xpose.msra.mxu0 %v693
      %712 = vmatprep.subr.bf16.mxu0 0
      %713 = vmatpush1.bf16.xpose.msra.mxu0 %v690
      %714 = vmatprep.subr.bf16.mxu0 0
      %715 = vmatpush2.bf16.xpose.msra.mxu0 0
      %716 = vmatprep.subr.bf16.mxu0 0
      %717 = vmatpush2.bf16.xpose.msra.mxu0 0
      %718 = vmatprep.subr.bf16.mxu0 0
      %719 = vmatpush2.bf16.xpose.msra.mxu0 0
      %720 = vmatprep.subr.bf16.mxu0 0
      %721 = vmatpush2.bf16.xpose.msra.mxu0 0
      %722 = vmatprep.subr.bf16.mxu0 0
      %723 = vmatpush2.bf16.xpose.msra.mxu0 0
      %724 = vmatprep.subr.bf16.mxu0 0
      %725 = vmatpush2.bf16.xpose.msra.mxu0 0
      %726 = vmatprep.subr.bf16.mxu0 0
      %727 = vmatpush2.bf16.xpose.msra.mxu0 0
      %728 = vmatprep.subr.bf16.mxu0 0
      %729 = vmatpush2.bf16.xpose.msra.mxu0 0
      %730 = vmatprep.mubr.bf16.mxu0 0
      %731 = vmatmul.mubr.bf16.gmra.mxu0 %v681
      %v732 = vpop.f32.mrf.mxu0
      %v733 = vadd.f32 0.0, %v732
      %v734 = vpop.f32.mrf.mxu0
      %v735 = vpop.f32.mrf.mxu0
      %v736 = vadd.f32 0.0, %v735
      %v737 = vpop.f32.mrf.mxu0
      %738 = vmatprep.mubr.bf16.mxu0 0
      %739 = vmatmul.mubr.bf16.gmra.mxu0 %v684
      %v740 = vpop.f32.mrf.mxu0
      %v741 = vadd.f32 0.0, %v740
      %v742 = vpop.f32.mrf.mxu0
      %v743 = vpop.f32.mrf.mxu0
      %v744 = vadd.f32 0.0, %v743
      %v745 = vpop.f32.mrf.mxu0
      %746 = vmatprep.mubr.bf16.mxu0 0
      %747 = vmatmul.mubr.bf16.gmra.mxu0 %v687
      %v748 = vpop.f32.mrf.mxu0
      %v749 = vadd.f32 0.0, %v748
      %v750 = vpop.f32.mrf.mxu0
      %v751 = vpop.f32.mrf.mxu0
      %v752 = vpop.f32.mrf.mxu0
      %753 = vdwg.mxu0
      %v754 = vsel %vm531, %v733, -inf
      %755 = vmax.xlane.f32.xlu0 %v754
      %v756 = vpop.xlane.xlu0 %755
      %v757 = vsel %vm531, %v736, -inf
      %758 = vmax.xlane.f32.xlu0 %v757
      %v759 = vpop.xlane.xlu0 %758
      %v760 = vsel %vm531, %v741, -inf
      %761 = vmax.xlane.f32.xlu0 %v760
      %v762 = vpop.xlane.xlu0 %761
      %v763 = vsel %vm531, %v744, -inf
      %764 = vmax.xlane.f32.xlu0 %v763
      %v765 = vpop.xlane.xlu0 %764
      %v766 = vsel %vm544, %v749, -inf
      %767 = vmax.xlane.f32.xlu0 %v766
      %v768 = vpop.xlane.xlu0 %767
      %v769 = vsub.f32 %v733, %v756
      %v770 = vsub.f32 %v736, %v759
      %v771 = vsub.f32 %v741, %v762
      %v772 = vsub.f32 %v744, %v765
      %v773 = vsub.f32 %v749, %v768
      %v774 = vmul.f32 %v769, 1.442695
      %v775 = vpow.pop %v774
      %v776 = vmul.f32 %v770, 1.442695
      %v777 = vpow.pop %v776
      %v778 = vmul.f32 %v771, 1.442695
      %v779 = vpow.pop %v778
      %v780 = vmul.f32 %v772, 1.442695
      %v781 = vpow.pop %v780
      %v782 = vmul.f32 %v773, 1.442695
      %v783 = vpow.pop %v782
      %v784 = vsel %vm531, %v775, 0.0
      %785 = vadd.xlane.f32.xlu0 %v784
      %v786 = vpop.xlane.xlu0 %785
      %v787 = vsel %vm531, %v777, 0.0
      %788 = vadd.xlane.f32.xlu0 %v787
      %v789 = vpop.xlane.xlu0 %788
      %v790 = vsel %vm531, %v779, 0.0
      %791 = vadd.xlane.f32.xlu0 %v790
      %v792 = vpop.xlane.xlu0 %791
      %v793 = vsel %vm531, %v781, 0.0
      %794 = vadd.xlane.f32.xlu0 %v793
      %v795 = vpop.xlane.xlu0 %794
      %v796 = vsel %vm544, %v783, 0.0
      %797 = vadd.xlane.f32.xlu0 %v796
      %v798 = vpop.xlane.xlu0 %797
      %v799 = vrcp.pop %v786
      %v800 = vrcp.pop %v789
      %v801 = vrcp.pop %v792
      %v802 = vrcp.pop %v795
      %v803 = vrcp.pop %v798
      %v804 = vmul.f32 %v775, %v799
      %v805 = vmul.f32 %v777, %v800
      %v806 = vmul.f32 %v779, %v801
      %v807 = vmul.f32 %v781, %v802
      %v808 = vmul.f32 %v783, %v803
      %v809 = vpack.c.bf16 %v805, %v804
      %v810 = vpack.c.bf16 %v807, %v806
      %v811 = vpack.c.bf16 %v808, %v808
      %812 = vrot.lane.b32.xlu0 %v444, 56
      %v813 = vpop.permute.xlu0 %812
      %814 = vrot.lane.b32.xlu0 %v445, 56
      %v815 = vpop.permute.xlu0 %814
      %816 = vrot.lane.b32.xlu0 %v446, 56
      %v817 = vpop.permute.xlu0 %816
      %v821 = vsel %vm531, %v809, 0
      %v824 = vsel %vm531, %v810, 0
      %v827 = vsel %vm531, %v811, 0
      %v830 = vsel %vm608, %v817, 0
      %832 = vmatprep.subr.bf16.mxu0 0
      %833 = vmatpush1.bf16.msra.mxu0 0
      %834 = vmatprep.subr.bf16.mxu0 0
      %835 = vmatpush1.bf16.msra.mxu0 0
      %836 = vmatprep.subr.bf16.mxu0 0
      %837 = vmatpush1.bf16.msra.mxu0 0
      %838 = vmatprep.subr.bf16.mxu0 0
      %839 = vmatpush1.bf16.msra.mxu0 0
      %840 = vmatprep.subr.bf16.mxu0 0
      %841 = vmatpush1.bf16.msra.mxu0 0
      %842 = vmatprep.subr.bf16.mxu0 0
      %843 = vmatpush1.bf16.msra.mxu0 %v830
      %844 = vmatprep.subr.bf16.mxu0 0
      %845 = vmatpush1.bf16.msra.mxu0 %v815
      %846 = vmatprep.subr.bf16.mxu0 0
      %847 = vmatpush1.bf16.msra.mxu0 %v813
      %848 = vmatprep.subr.bf16.mxu0 0
      %849 = vmatpush2.bf16.msra.mxu0 0
      %850 = vmatprep.subr.bf16.mxu0 0
      %851 = vmatpush2.bf16.msra.mxu0 0
      %852 = vmatprep.subr.bf16.mxu0 0
      %853 = vmatpush2.bf16.msra.mxu0 0
      %854 = vmatprep.subr.bf16.mxu0 0
      %855 = vmatpush2.bf16.msra.mxu0 0
      %856 = vmatprep.subr.bf16.mxu0 0
      %857 = vmatpush2.bf16.msra.mxu0 0
      %858 = vmatprep.subr.bf16.mxu0 0
      %859 = vmatpush2.bf16.msra.mxu0 0
      %860 = vmatprep.subr.bf16.mxu0 0
      %861 = vmatpush2.bf16.msra.mxu0 0
      %862 = vmatprep.subr.bf16.mxu0 0
      %863 = vmatpush2.bf16.msra.mxu0 0
      %864 = vmatprep.mubr.bf16.mxu0 0
      %865 = vmatmul.mubr.bf16.gmra.mxu0 %v821
      %v866 = vpop.f32.mrf.mxu0
      %v867 = vadd.f32 0.0, %v866
      %v868 = vpop.f32.mrf.mxu0
      %v869 = vpop.f32.mrf.mxu0
      %v870 = vadd.f32 0.0, %v869
      %v871 = vpop.f32.mrf.mxu0
      %872 = vmatprep.mubr.bf16.mxu0 0
      %873 = vmatmul.mubr.bf16.gmra.mxu0 %v824
      %v874 = vpop.f32.mrf.mxu0
      %v875 = vadd.f32 0.0, %v874
      %v876 = vpop.f32.mrf.mxu0
      %v877 = vpop.f32.mrf.mxu0
      %v878 = vadd.f32 0.0, %v877
      %v879 = vpop.f32.mrf.mxu0
      %880 = vmatprep.mubr.bf16.mxu0 0
      %881 = vmatmul.mubr.bf16.gmra.mxu0 %v827
      %v882 = vpop.f32.mrf.mxu0
      %v883 = vadd.f32 0.0, %v882
      %v884 = vpop.f32.mrf.mxu0
      %v885 = vpop.f32.mrf.mxu0
      %v886 = vpop.f32.mrf.mxu0
      %887 = vdwg.mxu0
      %888 = vrot.lane.b32.xlu0 %v444, 112
      %v889 = vpop.permute.xlu0 %888
      %890 = vrot.lane.b32.xlu0 %v445, 112
      %v891 = vpop.permute.xlu0 %890
      %892 = vrot.lane.b32.xlu0 %v446, 112
      %v893 = vpop.permute.xlu0 %892
      %894 = vrot.lane.b32.xlu0 %v444, 80
      %v895 = vpop.permute.xlu0 %894
      %896 = vrot.lane.b32.xlu0 %v445, 80
      %v897 = vpop.permute.xlu0 %896
      %898 = vrot.lane.b32.xlu0 %v446, 80
      %v899 = vpop.permute.xlu0 %898
      %v901 = vsel %vm456, %v889, 0
      %v904 = vsel %vm456, %v891, 0
      %v907 = vsel %vm456, %v893, 0
      %v910 = vsel %vm456, %v895, 0
      %v913 = vsel %vm456, %v897, 0
      %v916 = vsel %vm456, %v899, 0
      %918 = vmatprep.subr.bf16.mxu0 0
      %919 = vmatpush1.bf16.xpose.msra.mxu0 0
      %920 = vmatprep.subr.bf16.mxu0 0
      %921 = vmatpush1.bf16.xpose.msra.mxu0 0
      %922 = vmatprep.subr.bf16.mxu0 0
      %923 = vmatpush1.bf16.xpose.msra.mxu0 0
      %924 = vmatprep.subr.bf16.mxu0 0
      %925 = vmatpush1.bf16.xpose.msra.mxu0 0
      %926 = vmatprep.subr.bf16.mxu0 0
      %927 = vmatpush1.bf16.xpose.msra.mxu0 0
      %928 = vmatprep.subr.bf16.mxu0 0
      %929 = vmatpush1.bf16.xpose.msra.mxu0 %v916
      %930 = vmatprep.subr.bf16.mxu0 0
      %931 = vmatpush1.bf16.xpose.msra.mxu0 %v913
      %932 = vmatprep.subr.bf16.mxu0 0
      %933 = vmatpush1.bf16.xpose.msra.mxu0 %v910
      %934 = vmatprep.subr.bf16.mxu0 0
      %935 = vmatpush2.bf16.xpose.msra.mxu0 0
      %936 = vmatprep.subr.bf16.mxu0 0
      %937 = vmatpush2.bf16.xpose.msra.mxu0 0
      %938 = vmatprep.subr.bf16.mxu0 0
      %939 = vmatpush2.bf16.xpose.msra.mxu0 0
      %940 = vmatprep.subr.bf16.mxu0 0
      %941 = vmatpush2.bf16.xpose.msra.mxu0 0
      %942 = vmatprep.subr.bf16.mxu0 0
      %943 = vmatpush2.bf16.xpose.msra.mxu0 0
      %944 = vmatprep.subr.bf16.mxu0 0
      %945 = vmatpush2.bf16.xpose.msra.mxu0 0
      %946 = vmatprep.subr.bf16.mxu0 0
      %947 = vmatpush2.bf16.xpose.msra.mxu0 0
      %948 = vmatprep.subr.bf16.mxu0 0
      %949 = vmatpush2.bf16.xpose.msra.mxu0 0
      %950 = vmatprep.mubr.bf16.mxu0 0
      %951 = vmatmul.mubr.bf16.gmra.mxu0 %v901
      %v952 = vpop.f32.mrf.mxu0
      %v953 = vadd.f32 0.0, %v952
      %v954 = vpop.f32.mrf.mxu0
      %v955 = vpop.f32.mrf.mxu0
      %v956 = vadd.f32 0.0, %v955
      %v957 = vpop.f32.mrf.mxu0
      %958 = vmatprep.mubr.bf16.mxu0 0
      %959 = vmatmul.mubr.bf16.gmra.mxu0 %v904
      %v960 = vpop.f32.mrf.mxu0
      %v961 = vadd.f32 0.0, %v960
      %v962 = vpop.f32.mrf.mxu0
      %v963 = vpop.f32.mrf.mxu0
      %v964 = vadd.f32 0.0, %v963
      %v965 = vpop.f32.mrf.mxu0
      %966 = vmatprep.mubr.bf16.mxu0 0
      %967 = vmatmul.mubr.bf16.gmra.mxu0 %v907
      %v968 = vpop.f32.mrf.mxu0
      %v969 = vadd.f32 0.0, %v968
      %v970 = vpop.f32.mrf.mxu0
      %v971 = vpop.f32.mrf.mxu0
      %v972 = vpop.f32.mrf.mxu0
      %973 = vdwg.mxu0
      %v974 = vsel %vm531, %v953, -inf
      %975 = vmax.xlane.f32.xlu0 %v974
      %v976 = vpop.xlane.xlu0 %975
      %v977 = vsel %vm531, %v956, -inf
      %978 = vmax.xlane.f32.xlu0 %v977
      %v979 = vpop.xlane.xlu0 %978
      %v980 = vsel %vm531, %v961, -inf
      %981 = vmax.xlane.f32.xlu0 %v980
      %v982 = vpop.xlane.xlu0 %981
      %v983 = vsel %vm531, %v964, -inf
      %984 = vmax.xlane.f32.xlu0 %v983
      %v985 = vpop.xlane.xlu0 %984
      %v986 = vsel %vm544, %v969, -inf
      %987 = vmax.xlane.f32.xlu0 %v986
      %v988 = vpop.xlane.xlu0 %987
      %v989 = vsub.f32 %v953, %v976
      %v990 = vsub.f32 %v956, %v979
      %v991 = vsub.f32 %v961, %v982
      %v992 = vsub.f32 %v964, %v985
      %v993 = vsub.f32 %v969, %v988
      %v994 = vmul.f32 %v989, 1.442695
      %v995 = vpow.pop %v994
      %v996 = vmul.f32 %v990, 1.442695
      %v997 = vpow.pop %v996
      %v998 = vmul.f32 %v991, 1.442695
      %v999 = vpow.pop %v998
      %v1000 = vmul.f32 %v992, 1.442695
      %v1001 = vpow.pop %v1000
      %v1002 = vmul.f32 %v993, 1.442695
      %v1003 = vpow.pop %v1002
      %v1004 = vsel %vm531, %v995, 0.0
      %1005 = vadd.xlane.f32.xlu0 %v1004
      %v1006 = vpop.xlane.xlu0 %1005
      %v1007 = vsel %vm531, %v997, 0.0
      %1008 = vadd.xlane.f32.xlu0 %v1007
      %v1009 = vpop.xlane.xlu0 %1008
      %v1010 = vsel %vm531, %v999, 0.0
      %1011 = vadd.xlane.f32.xlu0 %v1010
      %v1012 = vpop.xlane.xlu0 %1011
      %v1013 = vsel %vm531, %v1001, 0.0
      %1014 = vadd.xlane.f32.xlu0 %v1013
      %v1015 = vpop.xlane.xlu0 %1014
      %v1016 = vsel %vm544, %v1003, 0.0
      %1017 = vadd.xlane.f32.xlu0 %v1016
      %v1018 = vpop.xlane.xlu0 %1017
      %v1019 = vrcp.pop %v1006
      %v1020 = vrcp.pop %v1009
      %v1021 = vrcp.pop %v1012
      %v1022 = vrcp.pop %v1015
      %v1023 = vrcp.pop %v1018
      %v1024 = vmul.f32 %v995, %v1019
      %v1025 = vmul.f32 %v997, %v1020
      %v1026 = vmul.f32 %v999, %v1021
      %v1027 = vmul.f32 %v1001, %v1022
      %v1028 = vmul.f32 %v1003, %v1023
      %v1029 = vpack.c.bf16 %v1025, %v1024
      %v1030 = vpack.c.bf16 %v1027, %v1026
      %v1031 = vpack.c.bf16 %v1028, %v1028
      %1032 = vrot.lane.b32.xlu0 %v444, 48
      %v1033 = vpop.permute.xlu0 %1032
      %1034 = vrot.lane.b32.xlu0 %v445, 48
      %v1035 = vpop.permute.xlu0 %1034
      %1036 = vrot.lane.b32.xlu0 %v446, 48
      %v1037 = vpop.permute.xlu0 %1036
      %v1041 = vsel %vm531, %v1029, 0
      %v1044 = vsel %vm531, %v1030, 0
      %v1047 = vsel %vm531, %v1031, 0
      %v1050 = vsel %vm608, %v1037, 0
      %1052 = vmatprep.subr.bf16.mxu0 0
      %1053 = vmatpush1.bf16.msra.mxu0 0
      %1054 = vmatprep.subr.bf16.mxu0 0
      %1055 = vmatpush1.bf16.msra.mxu0 0
      %1056 = vmatprep.subr.bf16.mxu0 0
      %1057 = vmatpush1.bf16.msra.mxu0 0
      %1058 = vmatprep.subr.bf16.mxu0 0
      %1059 = vmatpush1.bf16.msra.mxu0 0
      %1060 = vmatprep.subr.bf16.mxu0 0
      %1061 = vmatpush1.bf16.msra.mxu0 0
      %1062 = vmatprep.subr.bf16.mxu0 0
      %1063 = vmatpush1.bf16.msra.mxu0 %v1050
      %1064 = vmatprep.subr.bf16.mxu0 0
      %1065 = vmatpush1.bf16.msra.mxu0 %v1035
      %1066 = vmatprep.subr.bf16.mxu0 0
      %1067 = vmatpush1.bf16.msra.mxu0 %v1033
      %1068 = vmatprep.subr.bf16.mxu0 0
      %1069 = vmatpush2.bf16.msra.mxu0 0
      %1070 = vmatprep.subr.bf16.mxu0 0
      %1071 = vmatpush2.bf16.msra.mxu0 0
      %1072 = vmatprep.subr.bf16.mxu0 0
      %1073 = vmatpush2.bf16.msra.mxu0 0
      %1074 = vmatprep.subr.bf16.mxu0 0
      %1075 = vmatpush2.bf16.msra.mxu0 0
      %1076 = vmatprep.subr.bf16.mxu0 0
      %1077 = vmatpush2.bf16.msra.mxu0 0
      %1078 = vmatprep.subr.bf16.mxu0 0
      %1079 = vmatpush2.bf16.msra.mxu0 0
      %1080 = vmatprep.subr.bf16.mxu0 0
      %1081 = vmatpush2.bf16.msra.mxu0 0
      %1082 = vmatprep.subr.bf16.mxu0 0
      %1083 = vmatpush2.bf16.msra.mxu0 0
      %1084 = vmatprep.mubr.bf16.mxu0 0
      %1085 = vmatmul.mubr.bf16.gmra.mxu0 %v1041
      %v1086 = vpop.f32.mrf.mxu0
      %v1087 = vadd.f32 0.0, %v1086
      %v1088 = vpop.f32.mrf.mxu0
      %v1089 = vpop.f32.mrf.mxu0
      %v1090 = vadd.f32 0.0, %v1089
      %v1091 = vpop.f32.mrf.mxu0
      %1092 = vmatprep.mubr.bf16.mxu0 0
      %1093 = vmatmul.mubr.bf16.gmra.mxu0 %v1044
      %v1094 = vpop.f32.mrf.mxu0
      %v1095 = vadd.f32 0.0, %v1094
      %v1096 = vpop.f32.mrf.mxu0
      %v1097 = vpop.f32.mrf.mxu0
      %v1098 = vadd.f32 0.0, %v1097
      %v1099 = vpop.f32.mrf.mxu0
      %1100 = vmatprep.mubr.bf16.mxu0 0
      %1101 = vmatmul.mubr.bf16.gmra.mxu0 %v1047
      %v1102 = vpop.f32.mrf.mxu0
      %v1103 = vadd.f32 0.0, %v1102
      %v1104 = vpop.f32.mrf.mxu0
      %v1105 = vpop.f32.mrf.mxu0
      %v1106 = vpop.f32.mrf.mxu0
      %1107 = vdwg.mxu0
      %1108 = vrot.lane.b32.xlu0 %v444, 104
      %v1109 = vpop.permute.xlu0 %1108
      %1110 = vrot.lane.b32.xlu0 %v445, 104
      %v1111 = vpop.permute.xlu0 %1110
      %1112 = vrot.lane.b32.xlu0 %v446, 104
      %v1113 = vpop.permute.xlu0 %1112
      %1114 = vrot.lane.b32.xlu0 %v444, 72
      %v1115 = vpop.permute.xlu0 %1114
      %1116 = vrot.lane.b32.xlu0 %v445, 72
      %v1117 = vpop.permute.xlu0 %1116
      %1118 = vrot.lane.b32.xlu0 %v446, 72
      %v1119 = vpop.permute.xlu0 %1118
      %v1121 = vsel %vm456, %v1109, 0
      %v1124 = vsel %vm456, %v1111, 0
      %v1127 = vsel %vm456, %v1113, 0
      %v1130 = vsel %vm456, %v1115, 0
      %v1133 = vsel %vm456, %v1117, 0
      %v1136 = vsel %vm456, %v1119, 0
      %1138 = vmatprep.subr.bf16.mxu0 0
      %1139 = vmatpush1.bf16.xpose.msra.mxu0 0
      %1140 = vmatprep.subr.bf16.mxu0 0
      %1141 = vmatpush1.bf16.xpose.msra.mxu0 0
      %1142 = vmatprep.subr.bf16.mxu0 0
      %1143 = vmatpush1.bf16.xpose.msra.mxu0 0
      %1144 = vmatprep.subr.bf16.mxu0 0
      %1145 = vmatpush1.bf16.xpose.msra.mxu0 0
      %1146 = vmatprep.subr.bf16.mxu0 0
      %1147 = vmatpush1.bf16.xpose.msra.mxu0 0
      %1148 = vmatprep.subr.bf16.mxu0 0
      %1149 = vmatpush1.bf16.xpose.msra.mxu0 %v1136
      %1150 = vmatprep.subr.bf16.mxu0 0
      %1151 = vmatpush1.bf16.xpose.msra.mxu0 %v1133
      %1152 = vmatprep.subr.bf16.mxu0 0
      %1153 = vmatpush1.bf16.xpose.msra.mxu0 %v1130
      %1154 = vmatprep.subr.bf16.mxu0 0
      %1155 = vmatpush2.bf16.xpose.msra.mxu0 0
      %1156 = vmatprep.subr.bf16.mxu0 0
      %1157 = vmatpush2.bf16.xpose.msra.mxu0 0
      %1158 = vmatprep.subr.bf16.mxu0 0
      %1159 = vmatpush2.bf16.xpose.msra.mxu0 0
      %1160 = vmatprep.subr.bf16.mxu0 0
      %1161 = vmatpush2.bf16.xpose.msra.mxu0 0
      %1162 = vmatprep.subr.bf16.mxu0 0
      %1163 = vmatpush2.bf16.xpose.msra.mxu0 0
      %1164 = vmatprep.subr.bf16.mxu0 0
      %1165 = vmatpush2.bf16.xpose.msra.mxu0 0
      %1166 = vmatprep.subr.bf16.mxu0 0
      %1167 = vmatpush2.bf16.xpose.msra.mxu0 0
      %1168 = vmatprep.subr.bf16.mxu0 0
      %1169 = vmatpush2.bf16.xpose.msra.mxu0 0
      %1170 = vmatprep.mubr.bf16.mxu0 0
      %1171 = vmatmul.mubr.bf16.gmra.mxu0 %v1121
      %v1172 = vpop.f32.mrf.mxu0
      %v1173 = vadd.f32 0.0, %v1172
      %v1174 = vpop.f32.mrf.mxu0
      %v1175 = vpop.f32.mrf.mxu0
      %v1176 = vadd.f32 0.0, %v1175
      %v1177 = vpop.f32.mrf.mxu0
      %1178 = vmatprep.mubr.bf16.mxu0 0
      %1179 = vmatmul.mubr.bf16.gmra.mxu0 %v1124
      %v1180 = vpop.f32.mrf.mxu0
      %v1181 = vadd.f32 0.0, %v1180
      %v1182 = vpop.f32.mrf.mxu0
      %v1183 = vpop.f32.mrf.mxu0
      %v1184 = vadd.f32 0.0, %v1183
      %v1185 = vpop.f32.mrf.mxu0
      %1186 = vmatprep.mubr.bf16.mxu0 0
      %1187 = vmatmul.mubr.bf16.gmra.mxu0 %v1127
      %v1188 = vpop.f32.mrf.mxu0
      %v1189 = vadd.f32 0.0, %v1188
      %v1190 = vpop.f32.mrf.mxu0
      %v1191 = vpop.f32.mrf.mxu0
      %v1192 = vpop.f32.mrf.mxu0
      %1193 = vdwg.mxu0
      %v1194 = vsel %vm531, %v1173, -inf
      %1195 = vmax.xlane.f32.xlu0 %v1194
      %v1196 = vpop.xlane.xlu0 %1195
      %v1197 = vsel %vm531, %v1176, -inf
      %1198 = vmax.xlane.f32.xlu0 %v1197
      %v1199 = vpop.xlane.xlu0 %1198
      %v1200 = vsel %vm531, %v1181, -inf
      %1201 = vmax.xlane.f32.xlu0 %v1200
      %v1202 = vpop.xlane.xlu0 %1201
      %v1203 = vsel %vm531, %v1184, -inf
      %1204 = vmax.xlane.f32.xlu0 %v1203
      %v1205 = vpop.xlane.xlu0 %1204
      %v1206 = vsel %vm544, %v1189, -inf
      %1207 = vmax.xlane.f32.xlu0 %v1206
      %v1208 = vpop.xlane.xlu0 %1207
      %v1209 = vsub.f32 %v1173, %v1196
      %v1210 = vsub.f32 %v1176, %v1199
      %v1211 = vsub.f32 %v1181, %v1202
      %v1212 = vsub.f32 %v1184, %v1205
      %v1213 = vsub.f32 %v1189, %v1208
      %v1214 = vmul.f32 %v1209, 1.442695
      %v1215 = vpow.pop %v1214
      %v1216 = vmul.f32 %v1210, 1.442695
      %v1217 = vpow.pop %v1216
      %v1218 = vmul.f32 %v1211, 1.442695
      %v1219 = vpow.pop %v1218
      %v1220 = vmul.f32 %v1212, 1.442695
      %v1221 = vpow.pop %v1220
      %v1222 = vmul.f32 %v1213, 1.442695
      %v1223 = vpow.pop %v1222
      %v1224 = vsel %vm531, %v1215, 0.0
      %1225 = vadd.xlane.f32.xlu0 %v1224
      %v1226 = vpop.xlane.xlu0 %1225
      %v1227 = vsel %vm531, %v1217, 0.0
      %1228 = vadd.xlane.f32.xlu0 %v1227
      %v1229 = vpop.xlane.xlu0 %1228
      %v1230 = vsel %vm531, %v1219, 0.0
      %1231 = vadd.xlane.f32.xlu0 %v1230
      %v1232 = vpop.xlane.xlu0 %1231
      %v1233 = vsel %vm531, %v1221, 0.0
      %1234 = vadd.xlane.f32.xlu0 %v1233
      %v1235 = vpop.xlane.xlu0 %1234
      %v1236 = vsel %vm544, %v1223, 0.0
      %1237 = vadd.xlane.f32.xlu0 %v1236
      %v1238 = vpop.xlane.xlu0 %1237
      %v1239 = vrcp.pop %v1226
      %v1240 = vrcp.pop %v1229
      %v1241 = vrcp.pop %v1232
      %v1242 = vrcp.pop %v1235
      %v1243 = vrcp.pop %v1238
      %v1244 = vmul.f32 %v1215, %v1239
      %v1245 = vmul.f32 %v1217, %v1240
      %v1246 = vmul.f32 %v1219, %v1241
      %v1247 = vmul.f32 %v1221, %v1242
      %v1248 = vmul.f32 %v1223, %v1243
      %v1249 = vpack.c.bf16 %v1245, %v1244
      %v1250 = vpack.c.bf16 %v1247, %v1246
      %v1251 = vpack.c.bf16 %v1248, %v1248
      %1252 = vrot.lane.b32.xlu0 %v444, 40
      %v1253 = vpop.permute.xlu0 %1252
      %1254 = vrot.lane.b32.xlu0 %v445, 40
      %v1255 = vpop.permute.xlu0 %1254
      %1256 = vrot.lane.b32.xlu0 %v446, 40
      %v1257 = vpop.permute.xlu0 %1256
      %v1261 = vsel %vm531, %v1249, 0
      %v1264 = vsel %vm531, %v1250, 0
      %v1267 = vsel %vm531, %v1251, 0
      %v1270 = vsel %vm608, %v1257, 0
      %1272 = vmatprep.subr.bf16.mxu0 0
      %1273 = vmatpush1.bf16.msra.mxu0 0
      %1274 = vmatprep.subr.bf16.mxu0 0
      %1275 = vmatpush1.bf16.msra.mxu0 0
      %1276 = vmatprep.subr.bf16.mxu0 0
      %1277 = vmatpush1.bf16.msra.mxu0 0
      %1278 = vmatprep.subr.bf16.mxu0 0
      %1279 = vmatpush1.bf16.msra.mxu0 0
      %1280 = vmatprep.subr.bf16.mxu0 0
      %1281 = vmatpush1.bf16.msra.mxu0 0
      %1282 = vmatprep.subr.bf16.mxu0 0
      %1283 = vmatpush1.bf16.msra.mxu0 %v1270
      %1284 = vmatprep.subr.bf16.mxu0 0
      %1285 = vmatpush1.bf16.msra.mxu0 %v1255
      %1286 = vmatprep.subr.bf16.mxu0 0
      %1287 = vmatpush1.bf16.msra.mxu0 %v1253
      %1288 = vmatprep.subr.bf16.mxu0 0
      %1289 = vmatpush2.bf16.msra.mxu0 0
      %1290 = vmatprep.subr.bf16.mxu0 0
      %1291 = vmatpush2.bf16.msra.mxu0 0
      %1292 = vmatprep.subr.bf16.mxu0 0
      %1293 = vmatpush2.bf16.msra.mxu0 0
      %1294 = vmatprep.subr.bf16.mxu0 0
      %1295 = vmatpush2.bf16.msra.mxu0 0
      %1296 = vmatprep.subr.bf16.mxu0 0
      %1297 = vmatpush2.bf16.msra.mxu0 0
      %1298 = vmatprep.subr.bf16.mxu0 0
      %1299 = vmatpush2.bf16.msra.mxu0 0
      %1300 = vmatprep.subr.bf16.mxu0 0
      %1301 = vmatpush2.bf16.msra.mxu0 0
      %1302 = vmatprep.subr.bf16.mxu0 0
      %1303 = vmatpush2.bf16.msra.mxu0 0
      %1304 = vmatprep.mubr.bf16.mxu0 0
      %1305 = vmatmul.mubr.bf16.gmra.mxu0 %v1261
      %v1306 = vpop.f32.mrf.mxu0
      %v1307 = vadd.f32 0.0, %v1306
      %v1308 = vpop.f32.mrf.mxu0
      %v1309 = vpop.f32.mrf.mxu0
      %v1310 = vadd.f32 0.0, %v1309
      %v1311 = vpop.f32.mrf.mxu0
      %1312 = vmatprep.mubr.bf16.mxu0 0
      %1313 = vmatmul.mubr.bf16.gmra.mxu0 %v1264
      %v1314 = vpop.f32.mrf.mxu0
      %v1315 = vadd.f32 0.0, %v1314
      %v1316 = vpop.f32.mrf.mxu0
      %v1317 = vpop.f32.mrf.mxu0
      %v1318 = vadd.f32 0.0, %v1317
      %v1319 = vpop.f32.mrf.mxu0
      %1320 = vmatprep.mubr.bf16.mxu0 0
      %1321 = vmatmul.mubr.bf16.gmra.mxu0 %v1267
      %v1322 = vpop.f32.mrf.mxu0
      %v1323 = vadd.f32 0.0, %v1322
      %v1324 = vpop.f32.mrf.mxu0
      %v1325 = vpop.f32.mrf.mxu0
      %v1326 = vpop.f32.mrf.mxu0
      %1327 = vdwg.mxu0
      %1333 = vrot.lane.b32.xlu0 %v867, 8
      %v1334 = vpop.permute.xlu0 %1333
      %1335 = vrot.lane.b32.xlu0 %v870, 8
      %v1336 = vpop.permute.xlu0 %1335
      %1337 = vrot.lane.b32.xlu0 %v875, 8
      %v1338 = vpop.permute.xlu0 %1337
      %1339 = vrot.lane.b32.xlu0 %v878, 8
      %v1340 = vpop.permute.xlu0 %1339
      %1341 = vrot.lane.b32.xlu0 %v883, 8
      %v1342 = vpop.permute.xlu0 %1341
      %1353 = vrot.lane.b32.xlu0 %v1087, 16
      %v1354 = vpop.permute.xlu0 %1353
      %1355 = vrot.lane.b32.xlu0 %v1090, 16
      %v1356 = vpop.permute.xlu0 %1355
      %1357 = vrot.lane.b32.xlu0 %v1095, 16
      %v1358 = vpop.permute.xlu0 %1357
      %1359 = vrot.lane.b32.xlu0 %v1098, 16
      %v1360 = vpop.permute.xlu0 %1359
      %1361 = vrot.lane.b32.xlu0 %v1103, 16
      %v1362 = vpop.permute.xlu0 %1361
      %1373 = vrot.lane.b32.xlu0 %v1307, 24
      %v1374 = vpop.permute.xlu0 %1373
      %1375 = vrot.lane.b32.xlu0 %v1310, 24
      %v1376 = vpop.permute.xlu0 %1375
      %1377 = vrot.lane.b32.xlu0 %v1315, 24
      %v1378 = vpop.permute.xlu0 %1377
      %1379 = vrot.lane.b32.xlu0 %v1318, 24
      %v1380 = vpop.permute.xlu0 %1379
      %1381 = vrot.lane.b32.xlu0 %v1323, 24
      %v1382 = vpop.permute.xlu0 %1381
      %v1388 = vsel %vm456, %v647, %v1334
      %v1389 = vsel %vm456, %v650, %v1336
      %v1390 = vsel %vm456, %v655, %v1338
      %v1391 = vsel %vm456, %v658, %v1340
      %v1392 = vsel %vm456, %v663, %v1342
      %vm1393 = vcmask 130048
      %v1394 = vsel %vm1393, %v1388, %v1354
      %v1395 = vsel %vm1393, %v1389, %v1356
      %v1396 = vsel %vm1393, %v1390, %v1358
      %v1397 = vsel %vm1393, %v1391, %v1360
      %v1398 = vsel %vm1393, %v1392, %v1362
      %vm1399 = vcmask 195584
      %v1400 = vsel %vm1399, %v1394, %v1374
      %v1401 = vsel %vm1399, %v1395, %v1376
      %v1402 = vsel %vm1399, %v1396, %v1378
      %v1403 = vsel %vm1399, %v1397, %v1380
      %v1404 = vsel %vm1399, %v1398, %v1382
      %v1405 = vpack.c.bf16 %v1401, %v1400
      %v1406 = vpack.c.bf16 %v1403, %v1402
      %v1407 = vpack.c.bf16 %v1404, %v1404
      %v1408 = vld [vmem:[%s1 + $0x80] sm:$0xf]
      %v1409 = vld [vmem:[%s1 + $0x84] sm:$0xf]
      %v1410 = vld [vmem:[%s1 + $0x88] sm:$0xf]
      %v1411 = vld [vmem:[%s1 + $0x8c] sm:$0xf]
      %v1412 = vld [vmem:[%s2 + $0x38] sm:$0x1]
      %v1413 = vlaneseq
      %v1414 = vshrl.u32 %v1413, 7
      %v1415 = vsub.s32 0, %v1414
      %v1416 = vrot.slane %v1412, %v1415
      %v1421 = vunpack.c.l.b16 %v1408
      %v1422 = vunpack.c.l.b16 %v1409
      %v1423 = vunpack.c.l.b16 %v1410
      %v1424 = vunpack.c.l.b16 %v1411
      %v1425 = vpack.c.b16 %v1422, %v1421
      %v1426 = vpack.c.b16 %v1424, %v1423
      %vm1429 = vcmask 261120
      %v1431 = vsel %vm1429, %v1405, 0
      %v1434 = vsel %vm1429, %v1406, 0
      %v1437 = vsel %vm1429, %v1407, 0
      %1439 = vmatprep.subr.bf16.mxu0 0
      %1440 = vmatpush1.bf16.msra.mxu0 0
      %1441 = vmatprep.subr.bf16.mxu0 0
      %1442 = vmatpush1.bf16.msra.mxu0 0
      %1443 = vmatprep.subr.bf16.mxu0 0
      %1444 = vmatpush1.bf16.msra.mxu0 0
      %1445 = vmatprep.subr.bf16.mxu0 0
      %1446 = vmatpush1.bf16.msra.mxu0 0
      %1447 = vmatprep.subr.bf16.mxu0 0
      %1448 = vmatpush1.bf16.msra.mxu0 0
      %1449 = vmatprep.subr.bf16.mxu0 0
      %1450 = vmatpush1.bf16.msra.mxu0 0
      %1451 = vmatprep.subr.bf16.mxu0 0
      %1452 = vmatpush1.bf16.msra.mxu0 %v1426
      %1453 = vmatprep.subr.bf16.mxu0 0
      %1454 = vmatpush1.bf16.msra.mxu0 %v1425
      %1455 = vmatprep.subr.bf16.mxu0 0
      %1456 = vmatpush2.bf16.msra.mxu0 0
      %1457 = vmatprep.subr.bf16.mxu0 0
      %1458 = vmatpush2.bf16.msra.mxu0 0
      %1459 = vmatprep.subr.bf16.mxu0 0
      %1460 = vmatpush2.bf16.msra.mxu0 0
      %1461 = vmatprep.subr.bf16.mxu0 0
      %1462 = vmatpush2.bf16.msra.mxu0 0
      %1463 = vmatprep.subr.bf16.mxu0 0
      %1464 = vmatpush2.bf16.msra.mxu0 0
      %1465 = vmatprep.subr.bf16.mxu0 0
      %1466 = vmatpush2.bf16.msra.mxu0 0
      %1467 = vmatprep.subr.bf16.mxu0 0
      %1468 = vmatpush2.bf16.msra.mxu0 0
      %1469 = vmatprep.subr.bf16.mxu0 0
      %1470 = vmatpush2.bf16.msra.mxu0 0
      %1471 = vmatprep.mubr.bf16.mxu0 0
      %1472 = vmatmul.mubr.bf16.gmra.mxu0 %v1431
      %v1473 = vpop.f32.mrf.mxu0
      %v1474 = vadd.f32 %v1416, %v1473
      %v1475 = vpop.f32.mrf.mxu0
      %v1476 = vpop.f32.mrf.mxu0
      %v1477 = vadd.f32 %v1416, %v1476
      %v1478 = vpop.f32.mrf.mxu0
      %1479 = vmatprep.mubr.bf16.mxu0 0
      %1480 = vmatmul.mubr.bf16.gmra.mxu0 %v1434
      %v1481 = vpop.f32.mrf.mxu0
      %v1482 = vadd.f32 %v1416, %v1481
      %v1483 = vpop.f32.mrf.mxu0
      %v1484 = vpop.f32.mrf.mxu0
      %v1485 = vadd.f32 %v1416, %v1484
      %v1486 = vpop.f32.mrf.mxu0
      %1487 = vmatprep.mubr.bf16.mxu0 0
      %1488 = vmatmul.mubr.bf16.gmra.mxu0 %v1437
      %v1489 = vpop.f32.mrf.mxu0
      %v1490 = vadd.f32 %v1416, %v1489
      %v1491 = vpop.f32.mrf.mxu0
      %v1492 = vpop.f32.mrf.mxu0
      %v1493 = vpop.f32.mrf.mxu0
      %1494 = vdwg.mxu0
      %v1495 = vadd.f32 %v295, %v1474
      %v1496 = vadd.f32 %v298, %v1477
      %v1497 = vadd.f32 %v303, %v1482
      %v1498 = vadd.f32 %v306, %v1485
      %v1499 = vadd.f32 %v311, %v1490
      %1500 = vadd.xlane.f32.xlu0 %v1495
      %v1501 = vpop.xlane.xlu0 %1500
      %1502 = vadd.xlane.f32.xlu0 %v1496
      %v1503 = vpop.xlane.xlu0 %1502
      %1504 = vadd.xlane.f32.xlu0 %v1497
      %v1505 = vpop.xlane.xlu0 %1504
      %1506 = vadd.xlane.f32.xlu0 %v1498
      %v1507 = vpop.xlane.xlu0 %1506
      %vm1508 = vcmask 1043456
      %v1509 = vsel %vm1508, %v1499, 0.0
      %1510 = vadd.xlane.f32.xlu0 %v1509
      %v1511 = vpop.xlane.xlu0 %1510
      %v1512 = vmul.f32 %v1501, 0.03125
      %v1513 = vmul.f32 %v1503, 0.03125
      %v1514 = vmul.f32 %v1505, 0.03125
      %v1515 = vmul.f32 %v1507, 0.03125
      %v1516 = vmul.f32 %v1511, 0.03125
      %v1517 = vmul.f32 %v1495, %v1495
      %v1518 = vmul.f32 %v1496, %v1496
      %v1519 = vmul.f32 %v1497, %v1497
      %v1520 = vmul.f32 %v1498, %v1498
      %v1521 = vmul.f32 %v1499, %v1499
      %1522 = vadd.xlane.f32.xlu0 %v1517
      %v1523 = vpop.xlane.xlu0 %1522
      %1524 = vadd.xlane.f32.xlu0 %v1518
      %v1525 = vpop.xlane.xlu0 %1524
      %1526 = vadd.xlane.f32.xlu0 %v1519
      %v1527 = vpop.xlane.xlu0 %1526
      %1528 = vadd.xlane.f32.xlu0 %v1520
      %v1529 = vpop.xlane.xlu0 %1528
      %v1530 = vsel %vm1508, %v1521, 0.0
      %1531 = vadd.xlane.f32.xlu0 %v1530
      %v1532 = vpop.xlane.xlu0 %1531
      %v1533 = vmul.f32 %v1523, 0.03125
      %v1534 = vmul.f32 %v1525, 0.03125
      %v1535 = vmul.f32 %v1527, 0.03125
      %v1536 = vmul.f32 %v1529, 0.03125
      %v1537 = vmul.f32 %v1532, 0.03125
      %v1538 = vmul.f32 %v1512, %v1512
      %v1539 = vmul.f32 %v1513, %v1513
      %v1540 = vmul.f32 %v1514, %v1514
      %v1541 = vmul.f32 %v1515, %v1515
      %v1542 = vmul.f32 %v1516, %v1516
      %v1543 = vsub.f32 %v1533, %v1538
      %v1544 = vsub.f32 %v1534, %v1539
      %v1545 = vsub.f32 %v1535, %v1540
      %v1546 = vsub.f32 %v1536, %v1541
      %v1547 = vsub.f32 %v1537, %v1542
      %v1548 = vsub.f32 %v1495, %v1512
      %v1549 = vsub.f32 %v1496, %v1513
      %v1550 = vsub.f32 %v1497, %v1514
      %v1551 = vsub.f32 %v1498, %v1515
      %v1552 = vsub.f32 %v1499, %v1516
      %v1553 = vadd.f32 %v1543, 1e-05
      %v1554 = vadd.f32 %v1544, 1e-05
      %v1555 = vadd.f32 %v1545, 1e-05
      %v1556 = vadd.f32 %v1546, 1e-05
      %v1557 = vadd.f32 %v1547, 1e-05
      %v1558 = vrsqrt.pop %v1553
      %v1559 = vrsqrt.pop %v1554
      %v1560 = vrsqrt.pop %v1555
      %v1561 = vrsqrt.pop %v1556
      %v1562 = vrsqrt.pop %v1557
      %v1563 = vmul.f32 %v1548, %v1558
      %v1564 = vmul.f32 %v1549, %v1559
      %v1565 = vmul.f32 %v1550, %v1560
      %v1566 = vmul.f32 %v1551, %v1561
      %v1567 = vmul.f32 %v1552, %v1562
      %v1568 = vld [vmem:[%s2 + $0x40] sm:$0x1]
      %v1569 = vlaneseq
      %v1570 = vshrl.u32 %v1569, 7
      %v1571 = vsub.s32 0, %v1570
      %v1572 = vrot.slane %v1568, %v1571
      %v1573 = vmul.f32 %v1563, %v1572
      %v1574 = vmul.f32 %v1564, %v1572
      %v1575 = vmul.f32 %v1565, %v1572
      %v1576 = vmul.f32 %v1566, %v1572
      %v1577 = vmul.f32 %v1567, %v1572
      %v1578 = vld [vmem:[%s2 + $0x48] sm:$0x1]
      %v1579 = vlaneseq
      %v1580 = vshrl.u32 %v1579, 7
      %v1581 = vsub.s32 0, %v1580
      %v1582 = vrot.slane %v1578, %v1581
      %v1583 = vadd.f32 %v1573, %v1582
      %v1584 = vadd.f32 %v1574, %v1582
      %v1585 = vadd.f32 %v1575, %v1582
      %v1586 = vadd.f32 %v1576, %v1582
      %v1587 = vadd.f32 %v1577, %v1582
      %v1588 = vpack.c.bf16 %v1584, %v1583
      %v1589 = vpack.c.bf16 %v1586, %v1585
      %v1590 = vpack.c.bf16 %v1587, %v1587
      %v1591 = vld [vmem:[%s1 + $0x90] sm:$0xf]
      %v1592 = vld [vmem:[%s1 + $0x94] sm:$0xf]
      %v1593 = vld [vmem:[%s1 + $0x98] sm:$0xf]
      %v1594 = vld [vmem:[%s1 + $0x9c] sm:$0xf]
      %v1595 = vld [vmem:[%s1 + $0xa0] sm:$0xf]
      %v1596 = vld [vmem:[%s1 + $0xa4] sm:$0xf]
      %v1597 = vld [vmem:[%s1 + $0xa8] sm:$0xf]
      %v1598 = vld [vmem:[%s1 + $0xac] sm:$0xf]
      %v1599 = vld [vmem:[%s1 + $0xb0] sm:$0xf]
      %v1600 = vld [vmem:[%s1 + $0xb4] sm:$0xf]
      %v1601 = vld [vmem:[%s1 + $0xb8] sm:$0xf]
      %v1602 = vld [vmem:[%s1 + $0xbc] sm:$0xf]
      %v1603 = vld [vmem:[%s1 + $0xc0] sm:$0xf]
      %v1604 = vld [vmem:[%s1 + $0xc4] sm:$0xf]
      %v1605 = vld [vmem:[%s1 + $0xc8] sm:$0xf]
      %v1606 = vld [vmem:[%s1 + $0xcc] sm:$0xf]
      %v1607 = vld [vmem:[%s2 + $0x50] sm:$0x1]
      %v1608 = vlaneseq
      %v1609 = vshrl.u32 %v1608, 7
      %v1610 = vsub.s32 0, %v1609
      %v1611 = vrot.slane %v1607, %v1610
      %v1628 = vunpack.c.l.b16 %v1591
      %v1629 = vunpack.c.l.b16 %v1592
      %v1630 = vunpack.c.l.b16 %v1593
      %v1631 = vunpack.c.l.b16 %v1594
      %v1632 = vunpack.c.l.b16 %v1595
      %v1633 = vunpack.c.l.b16 %v1596
      %v1634 = vunpack.c.l.b16 %v1597
      %v1635 = vunpack.c.l.b16 %v1598
      %v1636 = vunpack.c.l.b16 %v1599
      %v1637 = vunpack.c.l.b16 %v1600
      %v1638 = vunpack.c.l.b16 %v1601
      %v1639 = vunpack.c.l.b16 %v1602
      %v1640 = vunpack.c.l.b16 %v1603
      %v1641 = vunpack.c.l.b16 %v1604
      %v1642 = vunpack.c.l.b16 %v1605
      %v1643 = vunpack.c.l.b16 %v1606
      %v1644 = vpack.c.b16 %v1629, %v1628
      %v1645 = vpack.c.b16 %v1631, %v1630
      %v1646 = vpack.c.b16 %v1633, %v1632
      %v1647 = vpack.c.b16 %v1635, %v1634
      %v1648 = vpack.c.b16 %v1637, %v1636
      %v1649 = vpack.c.b16 %v1639, %v1638
      %v1650 = vpack.c.b16 %v1641, %v1640
      %v1651 = vpack.c.b16 %v1643, %v1642
      %1660 = vmatprep.subr.bf16.mxu0 0
      %1661 = vmatpush1.bf16.msra.mxu0 %v1651
      %1662 = vmatprep.subr.bf16.mxu0 0
      %1663 = vmatpush1.bf16.msra.mxu0 %v1650
      %1664 = vmatprep.subr.bf16.mxu0 0
      %1665 = vmatpush1.bf16.msra.mxu0 %v1649
      %1666 = vmatprep.subr.bf16.mxu0 0
      %1667 = vmatpush1.bf16.msra.mxu0 %v1648
      %1668 = vmatprep.subr.bf16.mxu0 0
      %1669 = vmatpush1.bf16.msra.mxu0 %v1647
      %1670 = vmatprep.subr.bf16.mxu0 0
      %1671 = vmatpush1.bf16.msra.mxu0 %v1646
      %1672 = vmatprep.subr.bf16.mxu0 0
      %1673 = vmatpush1.bf16.msra.mxu0 %v1645
      %1674 = vmatprep.subr.bf16.mxu0 0
      %1675 = vmatpush1.bf16.msra.mxu0 %v1644
      %1676 = vmatprep.subr.bf16.mxu0 0
      %1677 = vmatpush2.bf16.msra.mxu0 0
      %1678 = vmatprep.subr.bf16.mxu0 0
      %1679 = vmatpush2.bf16.msra.mxu0 0
      %1680 = vmatprep.subr.bf16.mxu0 0
      %1681 = vmatpush2.bf16.msra.mxu0 0
      %1682 = vmatprep.subr.bf16.mxu0 0
      %1683 = vmatpush2.bf16.msra.mxu0 0
      %1684 = vmatprep.subr.bf16.mxu0 0
      %1685 = vmatpush2.bf16.msra.mxu0 0
      %1686 = vmatprep.subr.bf16.mxu0 0
      %1687 = vmatpush2.bf16.msra.mxu0 0
      %1688 = vmatprep.subr.bf16.mxu0 0
      %1689 = vmatpush2.bf16.msra.mxu0 0
      %1690 = vmatprep.subr.bf16.mxu0 0
      %1691 = vmatpush2.bf16.msra.mxu0 0
      %1692 = vmatprep.mubr.bf16.mxu0 0
      %1693 = vmatmul.mubr.bf16.gmra.mxu0 %v1588
      %v1694 = vpop.f32.mrf.mxu0
      %v1695 = vadd.f32 %v1611, %v1694
      %v1696 = vpop.f32.mrf.mxu0
      %v1697 = vpop.f32.mrf.mxu0
      %v1698 = vadd.f32 %v1611, %v1697
      %v1699 = vpop.f32.mrf.mxu0
      %1700 = vmatprep.mubr.bf16.mxu0 0
      %1701 = vmatmul.mubr.bf16.gmra.mxu0 %v1589
      %v1702 = vpop.f32.mrf.mxu0
      %v1703 = vadd.f32 %v1611, %v1702
      %v1704 = vpop.f32.mrf.mxu0
      %v1705 = vpop.f32.mrf.mxu0
      %v1706 = vadd.f32 %v1611, %v1705
      %v1707 = vpop.f32.mrf.mxu0
      %1708 = vmatprep.mubr.bf16.mxu0 0
      %1709 = vmatmul.mubr.bf16.gmra.mxu0 %v1590
      %v1710 = vpop.f32.mrf.mxu0
      %v1711 = vadd.f32 %v1611, %v1710
      %v1712 = vpop.f32.mrf.mxu0
      %v1713 = vpop.f32.mrf.mxu0
      %v1714 = vpop.f32.mrf.mxu0
      %1715 = vdwg.mxu0
      %v1716 = vmax.f32 %v1695, 0.0
      %v1717 = vmax.f32 %v1698, 0.0
      %v1718 = vmax.f32 %v1703, 0.0
      %v1719 = vmax.f32 %v1706, 0.0
      %v1720 = vmax.f32 %v1711, 0.0
      %v1721 = vpack.c.bf16 %v1717, %v1716
      %v1722 = vpack.c.bf16 %v1719, %v1718
      %v1723 = vpack.c.bf16 %v1720, %v1720
      %v1724 = vld [vmem:[%s1 + $0xd0] sm:$0xf]
      %v1725 = vld [vmem:[%s1 + $0xd4] sm:$0xf]
      %v1726 = vld [vmem:[%s1 + $0xd8] sm:$0xf]
      %v1727 = vld [vmem:[%s1 + $0xdc] sm:$0xf]
      %v1728 = vld [vmem:[%s1 + $0xe0] sm:$0xf]
      %v1729 = vld [vmem:[%s1 + $0xe4] sm:$0xf]
      %v1730 = vld [vmem:[%s1 + $0xe8] sm:$0xf]
      %v1731 = vld [vmem:[%s1 + $0xec] sm:$0xf]
      %v1732 = vld [vmem:[%s1 + $0xf0] sm:$0xf]
      %v1733 = vld [vmem:[%s1 + $0xf4] sm:$0xf]
      %v1734 = vld [vmem:[%s1 + $0xf8] sm:$0xf]
      %v1735 = vld [vmem:[%s1 + $0xfc] sm:$0xf]
      %v1736 = vld [vmem:[%s1 + $0x100] sm:$0xf]
      %v1737 = vld [vmem:[%s1 + $0x104] sm:$0xf]
      %v1738 = vld [vmem:[%s1 + $0x108] sm:$0xf]
      %v1739 = vld [vmem:[%s1 + $0x10c] sm:$0xf]
      %v1740 = vld [vmem:[%s2 + $0x58] sm:$0x1]
      %v1741 = vlaneseq
      %v1742 = vshrl.u32 %v1741, 7
      %v1743 = vsub.s32 0, %v1742
      %v1744 = vrot.slane %v1740, %v1743
      %v1761 = vunpack.c.l.b16 %v1724
      %v1762 = vunpack.c.l.b16 %v1725
      %v1763 = vunpack.c.l.b16 %v1726
      %v1764 = vunpack.c.l.b16 %v1727
      %v1765 = vunpack.c.l.b16 %v1728
      %v1766 = vunpack.c.l.b16 %v1729
      %v1767 = vunpack.c.l.b16 %v1730
      %v1768 = vunpack.c.l.b16 %v1731
      %v1769 = vunpack.c.l.b16 %v1732
      %v1770 = vunpack.c.l.b16 %v1733
      %v1771 = vunpack.c.l.b16 %v1734
      %v1772 = vunpack.c.l.b16 %v1735
      %v1773 = vunpack.c.l.b16 %v1736
      %v1774 = vunpack.c.l.b16 %v1737
      %v1775 = vunpack.c.l.b16 %v1738
      %v1776 = vunpack.c.l.b16 %v1739
      %v1777 = vpack.c.b16 %v1762, %v1761
      %v1778 = vpack.c.b16 %v1764, %v1763
      %v1779 = vpack.c.b16 %v1766, %v1765
      %v1780 = vpack.c.b16 %v1768, %v1767
      %v1781 = vpack.c.b16 %v1770, %v1769
      %v1782 = vpack.c.b16 %v1772, %v1771
      %v1783 = vpack.c.b16 %v1774, %v1773
      %v1784 = vpack.c.b16 %v1776, %v1775
      %1793 = vmatprep.subr.bf16.mxu0 0
      %1794 = vmatpush1.bf16.msra.mxu0 %v1784
      %1795 = vmatprep.subr.bf16.mxu0 0
      %1796 = vmatpush1.bf16.msra.mxu0 %v1783
      %1797 = vmatprep.subr.bf16.mxu0 0
      %1798 = vmatpush1.bf16.msra.mxu0 %v1782
      %1799 = vmatprep.subr.bf16.mxu0 0
      %1800 = vmatpush1.bf16.msra.mxu0 %v1781
      %1801 = vmatprep.subr.bf16.mxu0 0
      %1802 = vmatpush1.bf16.msra.mxu0 %v1780
      %1803 = vmatprep.subr.bf16.mxu0 0
      %1804 = vmatpush1.bf16.msra.mxu0 %v1779
      %1805 = vmatprep.subr.bf16.mxu0 0
      %1806 = vmatpush1.bf16.msra.mxu0 %v1778
      %1807 = vmatprep.subr.bf16.mxu0 0
      %1808 = vmatpush1.bf16.msra.mxu0 %v1777
      %1809 = vmatprep.subr.bf16.mxu0 0
      %1810 = vmatpush2.bf16.msra.mxu0 0
      %1811 = vmatprep.subr.bf16.mxu0 0
      %1812 = vmatpush2.bf16.msra.mxu0 0
      %1813 = vmatprep.subr.bf16.mxu0 0
      %1814 = vmatpush2.bf16.msra.mxu0 0
      %1815 = vmatprep.subr.bf16.mxu0 0
      %1816 = vmatpush2.bf16.msra.mxu0 0
      %1817 = vmatprep.subr.bf16.mxu0 0
      %1818 = vmatpush2.bf16.msra.mxu0 0
      %1819 = vmatprep.subr.bf16.mxu0 0
      %1820 = vmatpush2.bf16.msra.mxu0 0
      %1821 = vmatprep.subr.bf16.mxu0 0
      %1822 = vmatpush2.bf16.msra.mxu0 0
      %1823 = vmatprep.subr.bf16.mxu0 0
      %1824 = vmatpush2.bf16.msra.mxu0 0
      %1825 = vmatprep.mubr.bf16.mxu0 0
      %1826 = vmatmul.mubr.bf16.gmra.mxu0 %v1721
      %v1827 = vpop.f32.mrf.mxu0
      %v1828 = vadd.f32 %v1744, %v1827
      %v1829 = vpop.f32.mrf.mxu0
      %v1830 = vpop.f32.mrf.mxu0
      %v1831 = vadd.f32 %v1744, %v1830
      %v1832 = vpop.f32.mrf.mxu0
      %1833 = vmatprep.mubr.bf16.mxu0 0
      %1834 = vmatmul.mubr.bf16.gmra.mxu0 %v1722
      %v1835 = vpop.f32.mrf.mxu0
      %v1836 = vadd.f32 %v1744, %v1835
      %v1837 = vpop.f32.mrf.mxu0
      %v1838 = vpop.f32.mrf.mxu0
      %v1839 = vadd.f32 %v1744, %v1838
      %v1840 = vpop.f32.mrf.mxu0
      %1841 = vmatprep.mubr.bf16.mxu0 0
      %1842 = vmatmul.mubr.bf16.gmra.mxu0 %v1723
      %v1843 = vpop.f32.mrf.mxu0
      %v1844 = vadd.f32 %v1744, %v1843
      %v1845 = vpop.f32.mrf.mxu0
      %v1846 = vpop.f32.mrf.mxu0
      %v1847 = vpop.f32.mrf.mxu0
      %1848 = vdwg.mxu0
      %v1849 = vadd.f32 %v1583, %v1828
      %v1850 = vadd.f32 %v1584, %v1831
      %v1851 = vadd.f32 %v1585, %v1836
      %v1852 = vadd.f32 %v1586, %v1839
      %v1853 = vadd.f32 %v1587, %v1844
      %1854 = vadd.xlane.f32.xlu0 %v1849
      %v1855 = vpop.xlane.xlu0 %1854
      %1856 = vadd.xlane.f32.xlu0 %v1850
      %v1857 = vpop.xlane.xlu0 %1856
      %1858 = vadd.xlane.f32.xlu0 %v1851
      %v1859 = vpop.xlane.xlu0 %1858
      %1860 = vadd.xlane.f32.xlu0 %v1852
      %v1861 = vpop.xlane.xlu0 %1860
      %v1862 = vsel %vm1508, %v1853, 0.0
      %1863 = vadd.xlane.f32.xlu0 %v1862
      %v1864 = vpop.xlane.xlu0 %1863
      %v1865 = vmul.f32 %v1855, 0.03125
      %v1866 = vmul.f32 %v1857, 0.03125
      %v1867 = vmul.f32 %v1859, 0.03125
      %v1868 = vmul.f32 %v1861, 0.03125
      %v1869 = vmul.f32 %v1864, 0.03125
      %v1870 = vmul.f32 %v1849, %v1849
      %v1871 = vmul.f32 %v1850, %v1850
      %v1872 = vmul.f32 %v1851, %v1851
      %v1873 = vmul.f32 %v1852, %v1852
      %v1874 = vmul.f32 %v1853, %v1853
      %1875 = vadd.xlane.f32.xlu0 %v1870
      %v1876 = vpop.xlane.xlu0 %1875
      %1877 = vadd.xlane.f32.xlu0 %v1871
      %v1878 = vpop.xlane.xlu0 %1877
      %1879 = vadd.xlane.f32.xlu0 %v1872
      %v1880 = vpop.xlane.xlu0 %1879
      %1881 = vadd.xlane.f32.xlu0 %v1873
      %v1882 = vpop.xlane.xlu0 %1881
      %v1883 = vsel %vm1508, %v1874, 0.0
      %1884 = vadd.xlane.f32.xlu0 %v1883
      %v1885 = vpop.xlane.xlu0 %1884
      %v1886 = vmul.f32 %v1876, 0.03125
      %v1887 = vmul.f32 %v1878, 0.03125
      %v1888 = vmul.f32 %v1880, 0.03125
      %v1889 = vmul.f32 %v1882, 0.03125
      %v1890 = vmul.f32 %v1885, 0.03125
      %v1891 = vmul.f32 %v1865, %v1865
      %v1892 = vmul.f32 %v1866, %v1866
      %v1893 = vmul.f32 %v1867, %v1867
      %v1894 = vmul.f32 %v1868, %v1868
      %v1895 = vmul.f32 %v1869, %v1869
      %v1896 = vsub.f32 %v1886, %v1891
      %v1897 = vsub.f32 %v1887, %v1892
      %v1898 = vsub.f32 %v1888, %v1893
      %v1899 = vsub.f32 %v1889, %v1894
      %v1900 = vsub.f32 %v1890, %v1895
      %v1901 = vsub.f32 %v1849, %v1865
      %v1902 = vsub.f32 %v1850, %v1866
      %v1903 = vsub.f32 %v1851, %v1867
      %v1904 = vsub.f32 %v1852, %v1868
      %v1905 = vsub.f32 %v1853, %v1869
      %v1906 = vadd.f32 %v1896, 1e-05
      %v1907 = vadd.f32 %v1897, 1e-05
      %v1908 = vadd.f32 %v1898, 1e-05
      %v1909 = vadd.f32 %v1899, 1e-05
      %v1910 = vadd.f32 %v1900, 1e-05
      %v1911 = vrsqrt.pop %v1906
      %v1912 = vrsqrt.pop %v1907
      %v1913 = vrsqrt.pop %v1908
      %v1914 = vrsqrt.pop %v1909
      %v1915 = vrsqrt.pop %v1910
      %v1916 = vmul.f32 %v1901, %v1911
      %v1917 = vmul.f32 %v1902, %v1912
      %v1918 = vmul.f32 %v1903, %v1913
      %v1919 = vmul.f32 %v1904, %v1914
      %v1920 = vmul.f32 %v1905, %v1915
      %v1921 = vld [vmem:[%s2 + $0x60] sm:$0x1]
      %v1922 = vlaneseq
      %v1923 = vshrl.u32 %v1922, 7
      %v1924 = vsub.s32 0, %v1923
      %v1925 = vrot.slane %v1921, %v1924
      %v1926 = vmul.f32 %v1916, %v1925
      %v1927 = vmul.f32 %v1917, %v1925
      %v1928 = vmul.f32 %v1918, %v1925
      %v1929 = vmul.f32 %v1919, %v1925
      %v1930 = vmul.f32 %v1920, %v1925
      %v1931 = vld [vmem:[%s2 + $0x68] sm:$0x1]
      %v1932 = vlaneseq
      %v1933 = vshrl.u32 %v1932, 7
      %v1934 = vsub.s32 0, %v1933
      %v1935 = vrot.slane %v1931, %v1934
      %v1936 = vadd.f32 %v1926, %v1935
      %v1937 = vadd.f32 %v1927, %v1935
      %v1938 = vadd.f32 %v1928, %v1935
      %v1939 = vadd.f32 %v1929, %v1935
      %v1940 = vadd.f32 %v1930, %v1935
      %v1941 = vld [vmem:[%s2 + $0x28] sm:$0xff]
      %v1942 = vpack.c.bf16 %v1941, %v1941
      %v1943 = vld [vmem:[%s1 + $0x110] sm:$0xf]
      %v1944 = vld [vmem:[%s1 + $0x114] sm:$0xf]
      %v1945 = vld [vmem:[%s1 + $0x118] sm:$0xf]
      %v1946 = vld [vmem:[%s1 + $0x11c] sm:$0xf]
      %v1947 = vld [vmem:[%s1 + $0x120] sm:$0xf]
      %v1948 = vld [vmem:[%s1 + $0x124] sm:$0xf]
      %v1949 = vld [vmem:[%s1 + $0x128] sm:$0xf]
      %v1950 = vld [vmem:[%s1 + $0x12c] sm:$0xf]
      %v1951 = vld [vmem:[%s1 + $0x130] sm:$0xf]
      %v1952 = vld [vmem:[%s1 + $0x134] sm:$0xf]
      %v1953 = vld [vmem:[%s1 + $0x138] sm:$0xf]
      %v1954 = vld [vmem:[%s1 + $0x13c] sm:$0xf]
      %v1955 = vld [vmem:[%s1 + $0x140] sm:$0xf]
      %v1956 = vld [vmem:[%s1 + $0x144] sm:$0xf]
      %v1957 = vld [vmem:[%s1 + $0x148] sm:$0xf]
      %v1958 = vld [vmem:[%s1 + $0x14c] sm:$0xf]
      %v1959 = vld [vmem:[%s2 + $0x70] sm:$0x1]
      %v1960 = vlaneseq
      %v1961 = vshrl.u32 %v1960, 7
      %v1962 = vsub.s32 0, %v1961
      %v1963 = vrot.slane %v1959, %v1962
      %v1980 = vunpack.c.l.b16 %v1943
      %v1981 = vunpack.c.l.b16 %v1944
      %v1982 = vunpack.c.l.b16 %v1945
      %v1983 = vunpack.c.l.b16 %v1946
      %v1984 = vunpack.c.l.b16 %v1947
      %v1985 = vunpack.c.l.b16 %v1948
      %v1986 = vunpack.c.l.b16 %v1949
      %v1987 = vunpack.c.l.b16 %v1950
      %v1988 = vunpack.c.l.b16 %v1951
      %v1989 = vunpack.c.l.b16 %v1952
      %v1990 = vunpack.c.l.b16 %v1953
      %v1991 = vunpack.c.l.b16 %v1954
      %v1992 = vunpack.c.l.b16 %v1955
      %v1993 = vunpack.c.l.b16 %v1956
      %v1994 = vunpack.c.l.b16 %v1957
      %v1995 = vunpack.c.l.b16 %v1958
      %v1996 = vpack.c.b16 %v1981, %v1980
      %v1997 = vpack.c.b16 %v1983, %v1982
      %v1998 = vpack.c.b16 %v1985, %v1984
      %v1999 = vpack.c.b16 %v1987, %v1986
      %v2000 = vpack.c.b16 %v1989, %v1988
      %v2001 = vpack.c.b16 %v1991, %v1990
      %v2002 = vpack.c.b16 %v1993, %v1992
      %v2003 = vpack.c.b16 %v1995, %v1994
      %2012 = vmatprep.subr.bf16.mxu0 0
      %2013 = vmatpush1.bf16.msra.mxu0 %v2003
      %2014 = vmatprep.subr.bf16.mxu0 0
      %2015 = vmatpush1.bf16.msra.mxu0 %v2002
      %2016 = vmatprep.subr.bf16.mxu0 0
      %2017 = vmatpush1.bf16.msra.mxu0 %v2001
      %2018 = vmatprep.subr.bf16.mxu0 0
      %2019 = vmatpush1.bf16.msra.mxu0 %v2000
      %2020 = vmatprep.subr.bf16.mxu0 0
      %2021 = vmatpush1.bf16.msra.mxu0 %v1999
      %2022 = vmatprep.subr.bf16.mxu0 0
      %2023 = vmatpush1.bf16.msra.mxu0 %v1998
      %2024 = vmatprep.subr.bf16.mxu0 0
      %2025 = vmatpush1.bf16.msra.mxu0 %v1997
      %2026 = vmatprep.subr.bf16.mxu0 0
      %2027 = vmatpush1.bf16.msra.mxu0 %v1996
      %2028 = vmatprep.subr.bf16.mxu0 0
      %2029 = vmatpush2.bf16.msra.mxu0 0
      %2030 = vmatprep.subr.bf16.mxu0 0
      %2031 = vmatpush2.bf16.msra.mxu0 0
      %2032 = vmatprep.subr.bf16.mxu0 0
      %2033 = vmatpush2.bf16.msra.mxu0 0
      %2034 = vmatprep.subr.bf16.mxu0 0
      %2035 = vmatpush2.bf16.msra.mxu0 0
      %2036 = vmatprep.subr.bf16.mxu0 0
      %2037 = vmatpush2.bf16.msra.mxu0 0
      %2038 = vmatprep.subr.bf16.mxu0 0
      %2039 = vmatpush2.bf16.msra.mxu0 0
      %2040 = vmatprep.subr.bf16.mxu0 0
      %2041 = vmatpush2.bf16.msra.mxu0 0
      %2042 = vmatprep.subr.bf16.mxu0 0
      %2043 = vmatpush2.bf16.msra.mxu0 0
      %2044 = vmatprep.mubr.bf16.mxu0 0
      %2045 = vmatmul.mubr.bf16.gmra.mxu0 %v1942
      %v2046 = vpop.f32.mrf.mxu0
      %v2047 = vadd.f32 %v1963, %v2046
      %v2048 = vpop.f32.mrf.mxu0
      %v2049 = vpop.f32.mrf.mxu0
      %v2050 = vpop.f32.mrf.mxu0
      %2051 = vdwg.mxu0
      %v2052 = vpack.c.bf16 %v2047, %v2047
      %2054 = vrot.lane.b32.xlu0 %v2052, 96
      %v2055 = vpop.permute.xlu0 %2054
      %v2057 = vsel %vm456, %v2052, 0
      %v2060 = vsel %vm456, %v2055, 0
      %2062 = vmatprep.subr.bf16.mxu0 0
      %2063 = vmatpush1.bf16.xpose.msra.mxu0 0
      %2064 = vmatprep.subr.bf16.mxu0 0
      %2065 = vmatpush1.bf16.xpose.msra.mxu0 0
      %2066 = vmatprep.subr.bf16.mxu0 0
      %2067 = vmatpush1.bf16.xpose.msra.mxu0 0
      %2068 = vmatprep.subr.bf16.mxu0 0
      %2069 = vmatpush1.bf16.xpose.msra.mxu0 0
      %2070 = vmatprep.subr.bf16.mxu0 0
      %2071 = vmatpush1.bf16.xpose.msra.mxu0 0
      %2072 = vmatprep.subr.bf16.mxu0 0
      %2073 = vmatpush1.bf16.xpose.msra.mxu0 0
      %2074 = vmatprep.subr.bf16.mxu0 0
      %2075 = vmatpush1.bf16.xpose.msra.mxu0 0
      %2076 = vmatprep.subr.bf16.mxu0 0
      %2077 = vmatpush1.bf16.xpose.msra.mxu0 %v2060
      %2078 = vmatprep.subr.bf16.mxu0 0
      %2079 = vmatpush2.bf16.xpose.msra.mxu0 0
      %2080 = vmatprep.subr.bf16.mxu0 0
      %2081 = vmatpush2.bf16.xpose.msra.mxu0 0
      %2082 = vmatprep.subr.bf16.mxu0 0
      %2083 = vmatpush2.bf16.xpose.msra.mxu0 0
      %2084 = vmatprep.subr.bf16.mxu0 0
      %2085 = vmatpush2.bf16.xpose.msra.mxu0 0
      %2086 = vmatprep.subr.bf16.mxu0 0
      %2087 = vmatpush2.bf16.xpose.msra.mxu0 0
      %2088 = vmatprep.subr.bf16.mxu0 0
      %2089 = vmatpush2.bf16.xpose.msra.mxu0 0
      %2090 = vmatprep.subr.bf16.mxu0 0
      %2091 = vmatpush2.bf16.xpose.msra.mxu0 0
      %2092 = vmatprep.subr.bf16.mxu0 0
      %2093 = vmatpush2.bf16.xpose.msra.mxu0 0
      %2094 = vmatprep.mubr.bf16.mxu0 0
      %2095 = vmatmul.mubr.bf16.gmra.mxu0 %v2057
      %v2096 = vpop.f32.mrf.mxu0
      %v2097 = vadd.f32 0.0, %v2096
      %v2098 = vpop.f32.mrf.mxu0
      %v2099 = vpop.f32.mrf.mxu0
      %v2100 = vpop.f32.mrf.mxu0
      %2101 = vdwg.mxu0
      %v2102 = vsel %vm456, %v2097, -inf
      %2103 = vmax.xlane.f32.xlu0 %v2102
      %v2104 = vpop.xlane.xlu0 %2103
      %v2105 = vsub.f32 %v2097, %v2104
      %v2106 = vmul.f32 %v2105, 1.442695
      %v2107 = vpow.pop %v2106
      %v2108 = vsel %vm456, %v2107, 0.0
      %2109 = vadd.xlane.f32.xlu0 %v2108
      %v2110 = vpop.xlane.xlu0 %2109
      %v2111 = vrcp.pop %v2110
      %v2112 = vmul.f32 %v2107, %v2111
      %v2113 = vpack.c.bf16 %v2112, %v2112
      %2114 = vrot.lane.b32.xlu0 %v2052, 64
      %v2115 = vpop.permute.xlu0 %2114
      %v2117 = vsel %vm456, %v2113, 0
      %v2120 = vsel %vm1508, %v2115, 0
      %2122 = vmatprep.subr.bf16.mxu0 0
      %2123 = vmatpush1.bf16.msra.mxu0 0
      %2124 = vmatprep.subr.bf16.mxu0 0
      %2125 = vmatpush1.bf16.msra.mxu0 0
      %2126 = vmatprep.subr.bf16.mxu0 0
      %2127 = vmatpush1.bf16.msra.mxu0 0
      %2128 = vmatprep.subr.bf16.mxu0 0
      %2129 = vmatpush1.bf16.msra.mxu0 0
      %2130 = vmatprep.subr.bf16.mxu0 0
      %2131 = vmatpush1.bf16.msra.mxu0 0
      %2132 = vmatprep.subr.bf16.mxu0 0
      %2133 = vmatpush1.bf16.msra.mxu0 0
      %2134 = vmatprep.subr.bf16.mxu0 0
      %2135 = vmatpush1.bf16.msra.mxu0 0
      %2136 = vmatprep.subr.bf16.mxu0 0
      %2137 = vmatpush1.bf16.msra.mxu0 %v2120
      %2138 = vmatprep.subr.bf16.mxu0 0
      %2139 = vmatpush2.bf16.msra.mxu0 0
      %2140 = vmatprep.subr.bf16.mxu0 0
      %2141 = vmatpush2.bf16.msra.mxu0 0
      %2142 = vmatprep.subr.bf16.mxu0 0
      %2143 = vmatpush2.bf16.msra.mxu0 0
      %2144 = vmatprep.subr.bf16.mxu0 0
      %2145 = vmatpush2.bf16.msra.mxu0 0
      %2146 = vmatprep.subr.bf16.mxu0 0
      %2147 = vmatpush2.bf16.msra.mxu0 0
      %2148 = vmatprep.subr.bf16.mxu0 0
      %2149 = vmatpush2.bf16.msra.mxu0 0
      %2150 = vmatprep.subr.bf16.mxu0 0
      %2151 = vmatpush2.bf16.msra.mxu0 0
      %2152 = vmatprep.subr.bf16.mxu0 0
      %2153 = vmatpush2.bf16.msra.mxu0 0
      %2154 = vmatprep.mubr.bf16.mxu0 0
      %2155 = vmatmul.mubr.bf16.gmra.mxu0 %v2117
      %v2156 = vpop.f32.mrf.mxu0
      %v2157 = vadd.f32 0.0, %v2156
      %v2158 = vpop.f32.mrf.mxu0
      %v2159 = vpop.f32.mrf.mxu0
      %v2160 = vpop.f32.mrf.mxu0
      %2161 = vdwg.mxu0
      %2162 = vrot.lane.b32.xlu0 %v2052, 120
      %v2163 = vpop.permute.xlu0 %2162
      %2164 = vrot.lane.b32.xlu0 %v2052, 88
      %v2165 = vpop.permute.xlu0 %2164
      %v2167 = vsel %vm456, %v2163, 0
      %v2170 = vsel %vm456, %v2165, 0
      %2172 = vmatprep.subr.bf16.mxu0 0
      %2173 = vmatpush1.bf16.xpose.msra.mxu0 0
      %2174 = vmatprep.subr.bf16.mxu0 0
      %2175 = vmatpush1.bf16.xpose.msra.mxu0 0
      %2176 = vmatprep.subr.bf16.mxu0 0
      %2177 = vmatpush1.bf16.xpose.msra.mxu0 0
      %2178 = vmatprep.subr.bf16.mxu0 0
      %2179 = vmatpush1.bf16.xpose.msra.mxu0 0
      %2180 = vmatprep.subr.bf16.mxu0 0
      %2181 = vmatpush1.bf16.xpose.msra.mxu0 0
      %2182 = vmatprep.subr.bf16.mxu0 0
      %2183 = vmatpush1.bf16.xpose.msra.mxu0 0
      %2184 = vmatprep.subr.bf16.mxu0 0
      %2185 = vmatpush1.bf16.xpose.msra.mxu0 0
      %2186 = vmatprep.subr.bf16.mxu0 0
      %2187 = vmatpush1.bf16.xpose.msra.mxu0 %v2170
      %2188 = vmatprep.subr.bf16.mxu0 0
      %2189 = vmatpush2.bf16.xpose.msra.mxu0 0
      %2190 = vmatprep.subr.bf16.mxu0 0
      %2191 = vmatpush2.bf16.xpose.msra.mxu0 0
      %2192 = vmatprep.subr.bf16.mxu0 0
      %2193 = vmatpush2.bf16.xpose.msra.mxu0 0
      %2194 = vmatprep.subr.bf16.mxu0 0
      %2195 = vmatpush2.bf16.xpose.msra.mxu0 0
      %2196 = vmatprep.subr.bf16.mxu0 0
      %2197 = vmatpush2.bf16.xpose.msra.mxu0 0
      %2198 = vmatprep.subr.bf16.mxu0 0
      %2199 = vmatpush2.bf16.xpose.msra.mxu0 0
      %2200 = vmatprep.subr.bf16.mxu0 0
      %2201 = vmatpush2.bf16.xpose.msra.mxu0 0
      %2202 = vmatprep.subr.bf16.mxu0 0
      %2203 = vmatpush2.bf16.xpose.msra.mxu0 0
      %2204 = vmatprep.mubr.bf16.mxu0 0
      %2205 = vmatmul.mubr.bf16.gmra.mxu0 %v2167
      %v2206 = vpop.f32.mrf.mxu0
      %v2207 = vadd.f32 0.0, %v2206
      %v2208 = vpop.f32.mrf.mxu0
      %v2209 = vpop.f32.mrf.mxu0
      %v2210 = vpop.f32.mrf.mxu0
      %2211 = vdwg.mxu0
      %v2212 = vsel %vm456, %v2207, -inf
      %2213 = vmax.xlane.f32.xlu0 %v2212
      %v2214 = vpop.xlane.xlu0 %2213
      %v2215 = vsub.f32 %v2207, %v2214
      %v2216 = vmul.f32 %v2215, 1.442695
      %v2217 = vpow.pop %v2216
      %v2218 = vsel %vm456, %v2217, 0.0
      %2219 = vadd.xlane.f32.xlu0 %v2218
      %v2220 = vpop.xlane.xlu0 %2219
      %v2221 = vrcp.pop %v2220
      %v2222 = vmul.f32 %v2217, %v2221
      %v2223 = vpack.c.bf16 %v2222, %v2222
      %2224 = vrot.lane.b32.xlu0 %v2052, 56
      %v2225 = vpop.permute.xlu0 %2224
      %v2227 = vsel %vm456, %v2223, 0
      %v2230 = vsel %vm1508, %v2225, 0
      %2232 = vmatprep.subr.bf16.mxu0 0
      %2233 = vmatpush1.bf16.msra.mxu0 0
      %2234 = vmatprep.subr.bf16.mxu0 0
      %2235 = vmatpush1.bf16.msra.mxu0 0
      %2236 = vmatprep.subr.bf16.mxu0 0
      %2237 = vmatpush1.bf16.msra.mxu0 0
      %2238 = vmatprep.subr.bf16.mxu0 0
      %2239 = vmatpush1.bf16.msra.mxu0 0
      %2240 = vmatprep.subr.bf16.mxu0 0
      %2241 = vmatpush1.bf16.msra.mxu0 0
      %2242 = vmatprep.subr.bf16.mxu0 0
      %2243 = vmatpush1.bf16.msra.mxu0 0
      %2244 = vmatprep.subr.bf16.mxu0 0
      %2245 = vmatpush1.bf16.msra.mxu0 0
      %2246 = vmatprep.subr.bf16.mxu0 0
      %2247 = vmatpush1.bf16.msra.mxu0 %v2230
      %2248 = vmatprep.subr.bf16.mxu0 0
      %2249 = vmatpush2.bf16.msra.mxu0 0
      %2250 = vmatprep.subr.bf16.mxu0 0
      %2251 = vmatpush2.bf16.msra.mxu0 0
      %2252 = vmatprep.subr.bf16.mxu0 0
      %2253 = vmatpush2.bf16.msra.mxu0 0
      %2254 = vmatprep.subr.bf16.mxu0 0
      %2255 = vmatpush2.bf16.msra.mxu0 0
      %2256 = vmatprep.subr.bf16.mxu0 0
      %2257 = vmatpush2.bf16.msra.mxu0 0
      %2258 = vmatprep.subr.bf16.mxu0 0
      %2259 = vmatpush2.bf16.msra.mxu0 0
      %2260 = vmatprep.subr.bf16.mxu0 0
      %2261 = vmatpush2.bf16.msra.mxu0 0
      %2262 = vmatprep.subr.bf16.mxu0 0
      %2263 = vmatpush2.bf16.msra.mxu0 0
      %2264 = vmatprep.mubr.bf16.mxu0 0
      %2265 = vmatmul.mubr.bf16.gmra.mxu0 %v2227
      %v2266 = vpop.f32.mrf.mxu0
      %v2267 = vadd.f32 0.0, %v2266
      %v2268 = vpop.f32.mrf.mxu0
      %v2269 = vpop.f32.mrf.mxu0
      %v2270 = vpop.f32.mrf.mxu0
      %2271 = vdwg.mxu0
      %2272 = vrot.lane.b32.xlu0 %v2052, 112
      %v2273 = vpop.permute.xlu0 %2272
      %2274 = vrot.lane.b32.xlu0 %v2052, 80
      %v2275 = vpop.permute.xlu0 %2274
      %v2277 = vsel %vm456, %v2273, 0
      %v2280 = vsel %vm456, %v2275, 0
      %2282 = vmatprep.subr.bf16.mxu0 0
      %2283 = vmatpush1.bf16.xpose.msra.mxu0 0
      %2284 = vmatprep.subr.bf16.mxu0 0
      %2285 = vmatpush1.bf16.xpose.msra.mxu0 0
      %2286 = vmatprep.subr.bf16.mxu0 0
      %2287 = vmatpush1.bf16.xpose.msra.mxu0 0
      %2288 = vmatprep.subr.bf16.mxu0 0
      %2289 = vmatpush1.bf16.xpose.msra.mxu0 0
      %2290 = vmatprep.subr.bf16.mxu0 0
      %2291 = vmatpush1.bf16.xpose.msra.mxu0 0
      %2292 = vmatprep.subr.bf16.mxu0 0
      %2293 = vmatpush1.bf16.xpose.msra.mxu0 0
      %2294 = vmatprep.subr.bf16.mxu0 0
      %2295 = vmatpush1.bf16.xpose.msra.mxu0 0
      %2296 = vmatprep.subr.bf16.mxu0 0
      %2297 = vmatpush1.bf16.xpose.msra.mxu0 %v2280
      %2298 = vmatprep.subr.bf16.mxu0 0
      %2299 = vmatpush2.bf16.xpose.msra.mxu0 0
      %2300 = vmatprep.subr.bf16.mxu0 0
      %2301 = vmatpush2.bf16.xpose.msra.mxu0 0
      %2302 = vmatprep.subr.bf16.mxu0 0
      %2303 = vmatpush2.bf16.xpose.msra.mxu0 0
      %2304 = vmatprep.subr.bf16.mxu0 0
      %2305 = vmatpush2.bf16.xpose.msra.mxu0 0
      %2306 = vmatprep.subr.bf16.mxu0 0
      %2307 = vmatpush2.bf16.xpose.msra.mxu0 0
      %2308 = vmatprep.subr.bf16.mxu0 0
      %2309 = vmatpush2.bf16.xpose.msra.mxu0 0
      %2310 = vmatprep.subr.bf16.mxu0 0
      %2311 = vmatpush2.bf16.xpose.msra.mxu0 0
      %2312 = vmatprep.subr.bf16.mxu0 0
      %2313 = vmatpush2.bf16.xpose.msra.mxu0 0
      %2314 = vmatprep.mubr.bf16.mxu0 0
      %2315 = vmatmul.mubr.bf16.gmra.mxu0 %v2277
      %v2316 = vpop.f32.mrf.mxu0
      %v2317 = vadd.f32 0.0, %v2316
      %v2318 = vpop.f32.mrf.mxu0
      %v2319 = vpop.f32.mrf.mxu0
      %v2320 = vpop.f32.mrf.mxu0
      %2321 = vdwg.mxu0
      %v2322 = vsel %vm456, %v2317, -inf
      %2323 = vmax.xlane.f32.xlu0 %v2322
      %v2324 = vpop.xlane.xlu0 %2323
      %v2325 = vsub.f32 %v2317, %v2324
      %v2326 = vmul.f32 %v2325, 1.442695
      %v2327 = vpow.pop %v2326
      %v2328 = vsel %vm456, %v2327, 0.0
      %2329 = vadd.xlane.f32.xlu0 %v2328
      %v2330 = vpop.xlane.xlu0 %2329
      %v2331 = vrcp.pop %v2330
      %v2332 = vmul.f32 %v2327, %v2331
      %v2333 = vpack.c.bf16 %v2332, %v2332
      %2334 = vrot.lane.b32.xlu0 %v2052, 48
      %v2335 = vpop.permute.xlu0 %2334
      %v2337 = vsel %vm456, %v2333, 0
      %v2340 = vsel %vm1508, %v2335, 0
      %2342 = vmatprep.subr.bf16.mxu0 0
      %2343 = vmatpush1.bf16.msra.mxu0 0
      %2344 = vmatprep.subr.bf16.mxu0 0
      %2345 = vmatpush1.bf16.msra.mxu0 0
      %2346 = vmatprep.subr.bf16.mxu0 0
      %2347 = vmatpush1.bf16.msra.mxu0 0
      %2348 = vmatprep.subr.bf16.mxu0 0
      %2349 = vmatpush1.bf16.msra.mxu0 0
      %2350 = vmatprep.subr.bf16.mxu0 0
      %2351 = vmatpush1.bf16.msra.mxu0 0
      %2352 = vmatprep.subr.bf16.mxu0 0
      %2353 = vmatpush1.bf16.msra.mxu0 0
      %2354 = vmatprep.subr.bf16.mxu0 0
      %2355 = vmatpush1.bf16.msra.mxu0 0
      %2356 = vmatprep.subr.bf16.mxu0 0
      %2357 = vmatpush1.bf16.msra.mxu0 %v2340
      %2358 = vmatprep.subr.bf16.mxu0 0
      %2359 = vmatpush2.bf16.msra.mxu0 0
      %2360 = vmatprep.subr.bf16.mxu0 0
      %2361 = vmatpush2.bf16.msra.mxu0 0
      %2362 = vmatprep.subr.bf16.mxu0 0
      %2363 = vmatpush2.bf16.msra.mxu0 0
      %2364 = vmatprep.subr.bf16.mxu0 0
      %2365 = vmatpush2.bf16.msra.mxu0 0
      %2366 = vmatprep.subr.bf16.mxu0 0
      %2367 = vmatpush2.bf16.msra.mxu0 0
      %2368 = vmatprep.subr.bf16.mxu0 0
      %2369 = vmatpush2.bf16.msra.mxu0 0
      %2370 = vmatprep.subr.bf16.mxu0 0
      %2371 = vmatpush2.bf16.msra.mxu0 0
      %2372 = vmatprep.subr.bf16.mxu0 0
      %2373 = vmatpush2.bf16.msra.mxu0 0
      %2374 = vmatprep.mubr.bf16.mxu0 0
      %2375 = vmatmul.mubr.bf16.gmra.mxu0 %v2337
      %v2376 = vpop.f32.mrf.mxu0
      %v2377 = vadd.f32 0.0, %v2376
      %v2378 = vpop.f32.mrf.mxu0
      %v2379 = vpop.f32.mrf.mxu0
      %v2380 = vpop.f32.mrf.mxu0
      %2381 = vdwg.mxu0
      %2382 = vrot.lane.b32.xlu0 %v2052, 104
      %v2383 = vpop.permute.xlu0 %2382
      %2384 = vrot.lane.b32.xlu0 %v2052, 72
      %v2385 = vpop.permute.xlu0 %2384
      %v2387 = vsel %vm456, %v2383, 0
      %v2390 = vsel %vm456, %v2385, 0
      %2392 = vmatprep.subr.bf16.mxu0 0
      %2393 = vmatpush1.bf16.xpose.msra.mxu0 0
      %2394 = vmatprep.subr.bf16.mxu0 0
      %2395 = vmatpush1.bf16.xpose.msra.mxu0 0
      %2396 = vmatprep.subr.bf16.mxu0 0
      %2397 = vmatpush1.bf16.xpose.msra.mxu0 0
      %2398 = vmatprep.subr.bf16.mxu0 0
      %2399 = vmatpush1.bf16.xpose.msra.mxu0 0
      %2400 = vmatprep.subr.bf16.mxu0 0
      %2401 = vmatpush1.bf16.xpose.msra.mxu0 0
      %2402 = vmatprep.subr.bf16.mxu0 0
      %2403 = vmatpush1.bf16.xpose.msra.mxu0 0
      %2404 = vmatprep.subr.bf16.mxu0 0
      %2405 = vmatpush1.bf16.xpose.msra.mxu0 0
      %2406 = vmatprep.subr.bf16.mxu0 0
      %2407 = vmatpush1.bf16.xpose.msra.mxu0 %v2390
      %2408 = vmatprep.subr.bf16.mxu0 0
      %2409 = vmatpush2.bf16.xpose.msra.mxu0 0
      %2410 = vmatprep.subr.bf16.mxu0 0
      %2411 = vmatpush2.bf16.xpose.msra.mxu0 0
      %2412 = vmatprep.subr.bf16.mxu0 0
      %2413 = vmatpush2.bf16.xpose.msra.mxu0 0
      %2414 = vmatprep.subr.bf16.mxu0 0
      %2415 = vmatpush2.bf16.xpose.msra.mxu0 0
      %2416 = vmatprep.subr.bf16.mxu0 0
      %2417 = vmatpush2.bf16.xpose.msra.mxu0 0
      %2418 = vmatprep.subr.bf16.mxu0 0
      %2419 = vmatpush2.bf16.xpose.msra.mxu0 0
      %2420 = vmatprep.subr.bf16.mxu0 0
      %2421 = vmatpush2.bf16.xpose.msra.mxu0 0
      %2422 = vmatprep.subr.bf16.mxu0 0
      %2423 = vmatpush2.bf16.xpose.msra.mxu0 0
      %2424 = vmatprep.mubr.bf16.mxu0 0
      %2425 = vmatmul.mubr.bf16.gmra.mxu0 %v2387
      %v2426 = vpop.f32.mrf.mxu0
      %v2427 = vadd.f32 0.0, %v2426
      %v2428 = vpop.f32.mrf.mxu0
      %v2429 = vpop.f32.mrf.mxu0
      %v2430 = vpop.f32.mrf.mxu0
      %2431 = vdwg.mxu0
      %v2432 = vsel %vm456, %v2427, -inf
      %2433 = vmax.xlane.f32.xlu0 %v2432
      %v2434 = vpop.xlane.xlu0 %2433
      %v2435 = vsub.f32 %v2427, %v2434
      %v2436 = vmul.f32 %v2435, 1.442695
      %v2437 = vpow.pop %v2436
      %v2438 = vsel %vm456, %v2437, 0.0
      %2439 = vadd.xlane.f32.xlu0 %v2438
      %v2440 = vpop.xlane.xlu0 %2439
      %v2441 = vrcp.pop %v2440
      %v2442 = vmul.f32 %v2437, %v2441
      %v2443 = vpack.c.bf16 %v2442, %v2442
      %2444 = vrot.lane.b32.xlu0 %v2052, 40
      %v2445 = vpop.permute.xlu0 %2444
      %v2447 = vsel %vm456, %v2443, 0
      %v2450 = vsel %vm1508, %v2445, 0
      %2452 = vmatprep.subr.bf16.mxu0 0
      %2453 = vmatpush1.bf16.msra.mxu0 0
      %2454 = vmatprep.subr.bf16.mxu0 0
      %2455 = vmatpush1.bf16.msra.mxu0 0
      %2456 = vmatprep.subr.bf16.mxu0 0
      %2457 = vmatpush1.bf16.msra.mxu0 0
      %2458 = vmatprep.subr.bf16.mxu0 0
      %2459 = vmatpush1.bf16.msra.mxu0 0
      %2460 = vmatprep.subr.bf16.mxu0 0
      %2461 = vmatpush1.bf16.msra.mxu0 0
      %2462 = vmatprep.subr.bf16.mxu0 0
      %2463 = vmatpush1.bf16.msra.mxu0 0
      %2464 = vmatprep.subr.bf16.mxu0 0
      %2465 = vmatpush1.bf16.msra.mxu0 0
      %2466 = vmatprep.subr.bf16.mxu0 0
      %2467 = vmatpush1.bf16.msra.mxu0 %v2450
      %2468 = vmatprep.subr.bf16.mxu0 0
      %2469 = vmatpush2.bf16.msra.mxu0 0
      %2470 = vmatprep.subr.bf16.mxu0 0
      %2471 = vmatpush2.bf16.msra.mxu0 0
      %2472 = vmatprep.subr.bf16.mxu0 0
      %2473 = vmatpush2.bf16.msra.mxu0 0
      %2474 = vmatprep.subr.bf16.mxu0 0
      %2475 = vmatpush2.bf16.msra.mxu0 0
      %2476 = vmatprep.subr.bf16.mxu0 0
      %2477 = vmatpush2.bf16.msra.mxu0 0
      %2478 = vmatprep.subr.bf16.mxu0 0
      %2479 = vmatpush2.bf16.msra.mxu0 0
      %2480 = vmatprep.subr.bf16.mxu0 0
      %2481 = vmatpush2.bf16.msra.mxu0 0
      %2482 = vmatprep.subr.bf16.mxu0 0
      %2483 = vmatpush2.bf16.msra.mxu0 0
      %2484 = vmatprep.mubr.bf16.mxu0 0
      %2485 = vmatmul.mubr.bf16.gmra.mxu0 %v2447
      %v2486 = vpop.f32.mrf.mxu0
      %v2487 = vadd.f32 0.0, %v2486
      %v2488 = vpop.f32.mrf.mxu0
      %v2489 = vpop.f32.mrf.mxu0
      %v2490 = vpop.f32.mrf.mxu0
      %2491 = vdwg.mxu0
      %2493 = vrot.lane.b32.xlu0 %v2267, 8
      %v2494 = vpop.permute.xlu0 %2493
      %2497 = vrot.lane.b32.xlu0 %v2377, 16
      %v2498 = vpop.permute.xlu0 %2497
      %2501 = vrot.lane.b32.xlu0 %v2487, 24
      %v2502 = vpop.permute.xlu0 %2501
      %v2504 = vsel %vm456, %v2157, %v2494
      %v2505 = vsel %vm1393, %v2504, %v2498
      %v2506 = vsel %vm1399, %v2505, %v2502
      %v2507 = vpack.c.bf16 %v2506, %v2506
      %v2508 = vld [vmem:[%s1 + $0x150] sm:$0xf]
      %v2509 = vld [vmem:[%s1 + $0x154] sm:$0xf]
      %v2510 = vld [vmem:[%s1 + $0x158] sm:$0xf]
      %v2511 = vld [vmem:[%s1 + $0x15c] sm:$0xf]
      %v2512 = vld [vmem:[%s2 + $0x78] sm:$0x1]
      %v2513 = vlaneseq
      %v2514 = vshrl.u32 %v2513, 7
      %v2515 = vsub.s32 0, %v2514
      %v2516 = vrot.slane %v2512, %v2515
      %v2521 = vunpack.c.l.b16 %v2508
      %v2522 = vunpack.c.l.b16 %v2509
      %v2523 = vunpack.c.l.b16 %v2510
      %v2524 = vunpack.c.l.b16 %v2511
      %v2525 = vpack.c.b16 %v2522, %v2521
      %v2526 = vpack.c.b16 %v2524, %v2523
      %v2530 = vsel %vm1429, %v2507, 0
      %2532 = vmatprep.subr.bf16.mxu0 0
      %2533 = vmatpush1.bf16.msra.mxu0 0
      %2534 = vmatprep.subr.bf16.mxu0 0
      %2535 = vmatpush1.bf16.msra.mxu0 0
      %2536 = vmatprep.subr.bf16.mxu0 0
      %2537 = vmatpush1.bf16.msra.mxu0 0
      %2538 = vmatprep.subr.bf16.mxu0 0
      %2539 = vmatpush1.bf16.msra.mxu0 0
      %2540 = vmatprep.subr.bf16.mxu0 0
      %2541 = vmatpush1.bf16.msra.mxu0 0
      %2542 = vmatprep.subr.bf16.mxu0 0
      %2543 = vmatpush1.bf16.msra.mxu0 0
      %2544 = vmatprep.subr.bf16.mxu0 0
      %2545 = vmatpush1.bf16.msra.mxu0 %v2526
      %2546 = vmatprep.subr.bf16.mxu0 0
      %2547 = vmatpush1.bf16.msra.mxu0 %v2525
      %2548 = vmatprep.subr.bf16.mxu0 0
      %2549 = vmatpush2.bf16.msra.mxu0 0
      %2550 = vmatprep.subr.bf16.mxu0 0
      %2551 = vmatpush2.bf16.msra.mxu0 0
      %2552 = vmatprep.subr.bf16.mxu0 0
      %2553 = vmatpush2.bf16.msra.mxu0 0
      %2554 = vmatprep.subr.bf16.mxu0 0
      %2555 = vmatpush2.bf16.msra.mxu0 0
      %2556 = vmatprep.subr.bf16.mxu0 0
      %2557 = vmatpush2.bf16.msra.mxu0 0
      %2558 = vmatprep.subr.bf16.mxu0 0
      %2559 = vmatpush2.bf16.msra.mxu0 0
      %2560 = vmatprep.subr.bf16.mxu0 0
      %2561 = vmatpush2.bf16.msra.mxu0 0
      %2562 = vmatprep.subr.bf16.mxu0 0
      %2563 = vmatpush2.bf16.msra.mxu0 0
      %2564 = vmatprep.mubr.bf16.mxu0 0
      %2565 = vmatmul.mubr.bf16.gmra.mxu0 %v2530
      %v2566 = vpop.f32.mrf.mxu0
      %v2567 = vadd.f32 %v2516, %v2566
      %v2568 = vpop.f32.mrf.mxu0
      %v2569 = vpop.f32.mrf.mxu0
      %v2570 = vpop.f32.mrf.mxu0
      %2571 = vdwg.mxu0
      %v2572 = vadd.f32 %v1941, %v2567
      %2573 = vadd.xlane.f32.xlu0 %v2572
      %v2574 = vpop.xlane.xlu0 %2573
      %v2575 = vmul.f32 %v2574, 0.03125
      %v2576 = vmul.f32 %v2572, %v2572
      %2577 = vadd.xlane.f32.xlu0 %v2576
      %v2578 = vpop.xlane.xlu0 %2577
      %v2579 = vmul.f32 %v2578, 0.03125
      %v2580 = vmul.f32 %v2575, %v2575
      %v2581 = vsub.f32 %v2579, %v2580
      %v2582 = vsub.f32 %v2572, %v2575
      %v2583 = vadd.f32 %v2581, 1e-05
      %v2584 = vrsqrt.pop %v2583
      %v2585 = vmul.f32 %v2582, %v2584
      %v2586 = vld [vmem:[%s2 + $0x80] sm:$0x1]
      %v2587 = vlaneseq
      %v2588 = vshrl.u32 %v2587, 7
      %v2589 = vsub.s32 0, %v2588
      %v2590 = vrot.slane %v2586, %v2589
      %v2591 = vmul.f32 %v2585, %v2590
      %v2592 = vld [vmem:[%s2 + $0x88] sm:$0x1]
      %v2593 = vlaneseq
      %v2594 = vshrl.u32 %v2593, 7
      %v2595 = vsub.s32 0, %v2594
      %v2596 = vrot.slane %v2592, %v2595
      %v2597 = vadd.f32 %v2591, %v2596
      %v2598 = vpack.c.bf16 %v2597, %v2597
      %v2599 = vld [vmem:[%s1 + $0x160] sm:$0xf]
      %v2600 = vld [vmem:[%s1 + $0x164] sm:$0xf]
      %v2601 = vld [vmem:[%s1 + $0x168] sm:$0xf]
      %v2602 = vld [vmem:[%s1 + $0x16c] sm:$0xf]
      %v2603 = vld [vmem:[%s1 + $0x170] sm:$0xf]
      %v2604 = vld [vmem:[%s1 + $0x174] sm:$0xf]
      %v2605 = vld [vmem:[%s1 + $0x178] sm:$0xf]
      %v2606 = vld [vmem:[%s1 + $0x17c] sm:$0xf]
      %v2607 = vld [vmem:[%s1 + $0x180] sm:$0xf]
      %v2608 = vld [vmem:[%s1 + $0x184] sm:$0xf]
      %v2609 = vld [vmem:[%s1 + $0x188] sm:$0xf]
      %v2610 = vld [vmem:[%s1 + $0x18c] sm:$0xf]
      %v2611 = vld [vmem:[%s1 + $0x190] sm:$0xf]
      %v2612 = vld [vmem:[%s1 + $0x194] sm:$0xf]
      %v2613 = vld [vmem:[%s1 + $0x198] sm:$0xf]
      %v2614 = vld [vmem:[%s1 + $0x19c] sm:$0xf]
      %v2615 = vld [vmem:[%s2 + $0x90] sm:$0x1]
      %v2616 = vlaneseq
      %v2617 = vshrl.u32 %v2616, 7
      %v2618 = vsub.s32 0, %v2617
      %v2619 = vrot.slane %v2615, %v2618
      %v2636 = vunpack.c.l.b16 %v2599
      %v2637 = vunpack.c.l.b16 %v2600
      %v2638 = vunpack.c.l.b16 %v2601
      %v2639 = vunpack.c.l.b16 %v2602
      %v2640 = vunpack.c.l.b16 %v2603
      %v2641 = vunpack.c.l.b16 %v2604
      %v2642 = vunpack.c.l.b16 %v2605
      %v2643 = vunpack.c.l.b16 %v2606
      %v2644 = vunpack.c.l.b16 %v2607
      %v2645 = vunpack.c.l.b16 %v2608
      %v2646 = vunpack.c.l.b16 %v2609
      %v2647 = vunpack.c.l.b16 %v2610
      %v2648 = vunpack.c.l.b16 %v2611
      %v2649 = vunpack.c.l.b16 %v2612
      %v2650 = vunpack.c.l.b16 %v2613
      %v2651 = vunpack.c.l.b16 %v2614
      %v2652 = vpack.c.b16 %v2637, %v2636
      %v2653 = vpack.c.b16 %v2639, %v2638
      %v2654 = vpack.c.b16 %v2641, %v2640
      %v2655 = vpack.c.b16 %v2643, %v2642
      %v2656 = vpack.c.b16 %v2645, %v2644
      %v2657 = vpack.c.b16 %v2647, %v2646
      %v2658 = vpack.c.b16 %v2649, %v2648
      %v2659 = vpack.c.b16 %v2651, %v2650
      %2668 = vmatprep.subr.bf16.mxu0 0
      %2669 = vmatpush1.bf16.msra.mxu0 %v2659
      %2670 = vmatprep.subr.bf16.mxu0 0
      %2671 = vmatpush1.bf16.msra.mxu0 %v2658
      %2672 = vmatprep.subr.bf16.mxu0 0
      %2673 = vmatpush1.bf16.msra.mxu0 %v2657
      %2674 = vmatprep.subr.bf16.mxu0 0
      %2675 = vmatpush1.bf16.msra.mxu0 %v2656
      %2676 = vmatprep.subr.bf16.mxu0 0
      %2677 = vmatpush1.bf16.msra.mxu0 %v2655
      %2678 = vmatprep.subr.bf16.mxu0 0
      %2679 = vmatpush1.bf16.msra.mxu0 %v2654
      %2680 = vmatprep.subr.bf16.mxu0 0
      %2681 = vmatpush1.bf16.msra.mxu0 %v2653
      %2682 = vmatprep.subr.bf16.mxu0 0
      %2683 = vmatpush1.bf16.msra.mxu0 %v2652
      %2684 = vmatprep.subr.bf16.mxu0 0
      %2685 = vmatpush2.bf16.msra.mxu0 0
      %2686 = vmatprep.subr.bf16.mxu0 0
      %2687 = vmatpush2.bf16.msra.mxu0 0
      %2688 = vmatprep.subr.bf16.mxu0 0
      %2689 = vmatpush2.bf16.msra.mxu0 0
      %2690 = vmatprep.subr.bf16.mxu0 0
      %2691 = vmatpush2.bf16.msra.mxu0 0
      %2692 = vmatprep.subr.bf16.mxu0 0
      %2693 = vmatpush2.bf16.msra.mxu0 0
      %2694 = vmatprep.subr.bf16.mxu0 0
      %2695 = vmatpush2.bf16.msra.mxu0 0
      %2696 = vmatprep.subr.bf16.mxu0 0
      %2697 = vmatpush2.bf16.msra.mxu0 0
      %2698 = vmatprep.subr.bf16.mxu0 0
      %2699 = vmatpush2.bf16.msra.mxu0 0
      %2700 = vmatprep.mubr.bf16.mxu0 0
      %2701 = vmatmul.mubr.bf16.gmra.mxu0 %v2598
      %v2702 = vpop.f32.mrf.mxu0
      %v2703 = vadd.f32 %v2619, %v2702
      %v2704 = vpop.f32.mrf.mxu0
      %v2705 = vpop.f32.mrf.mxu0
      %v2706 = vpop.f32.mrf.mxu0
      %2707 = vdwg.mxu0
      %v2708 = vpack.c.bf16 %v1937, %v1936
      %v2709 = vpack.c.bf16 %v1939, %v1938
      %v2710 = vpack.c.bf16 %v1940, %v1940
      %v2711 = vld [vmem:[%s1 + $0x1a0] sm:$0xf]
      %v2712 = vld [vmem:[%s1 + $0x1a4] sm:$0xf]
      %v2713 = vld [vmem:[%s1 + $0x1a8] sm:$0xf]
      %v2714 = vld [vmem:[%s1 + $0x1ac] sm:$0xf]
      %v2715 = vld [vmem:[%s1 + $0x1b0] sm:$0xf]
      %v2716 = vld [vmem:[%s1 + $0x1b4] sm:$0xf]
      %v2717 = vld [vmem:[%s1 + $0x1b8] sm:$0xf]
      %v2718 = vld [vmem:[%s1 + $0x1bc] sm:$0xf]
      %v2719 = vld [vmem:[%s1 + $0x1c0] sm:$0xf]
      %v2720 = vld [vmem:[%s1 + $0x1c4] sm:$0xf]
      %v2721 = vld [vmem:[%s1 + $0x1c8] sm:$0xf]
      %v2722 = vld [vmem:[%s1 + $0x1cc] sm:$0xf]
      %v2723 = vld [vmem:[%s1 + $0x1d0] sm:$0xf]
      %v2724 = vld [vmem:[%s1 + $0x1d4] sm:$0xf]
      %v2725 = vld [vmem:[%s1 + $0x1d8] sm:$0xf]
      %v2726 = vld [vmem:[%s1 + $0x1dc] sm:$0xf]
      %v2727 = vld [vmem:[%s2 + $0x98] sm:$0x1]
      %v2728 = vlaneseq
      %v2729 = vshrl.u32 %v2728, 7
      %v2730 = vsub.s32 0, %v2729
      %v2731 = vrot.slane %v2727, %v2730
      %v2748 = vunpack.c.l.b16 %v2711
      %v2749 = vunpack.c.l.b16 %v2712
      %v2750 = vunpack.c.l.b16 %v2713
      %v2751 = vunpack.c.l.b16 %v2714
      %v2752 = vunpack.c.l.b16 %v2715
      %v2753 = vunpack.c.l.b16 %v2716
      %v2754 = vunpack.c.l.b16 %v2717
      %v2755 = vunpack.c.l.b16 %v2718
      %v2756 = vunpack.c.l.b16 %v2719
      %v2757 = vunpack.c.l.b16 %v2720
      %v2758 = vunpack.c.l.b16 %v2721
      %v2759 = vunpack.c.l.b16 %v2722
      %v2760 = vunpack.c.l.b16 %v2723
      %v2761 = vunpack.c.l.b16 %v2724
      %v2762 = vunpack.c.l.b16 %v2725
      %v2763 = vunpack.c.l.b16 %v2726
      %v2764 = vpack.c.b16 %v2749, %v2748
      %v2765 = vpack.c.b16 %v2751, %v2750
      %v2766 = vpack.c.b16 %v2753, %v2752
      %v2767 = vpack.c.b16 %v2755, %v2754
      %v2768 = vpack.c.b16 %v2757, %v2756
      %v2769 = vpack.c.b16 %v2759, %v2758
      %v2770 = vpack.c.b16 %v2761, %v2760
      %v2771 = vpack.c.b16 %v2763, %v2762
      %2780 = vmatprep.subr.bf16.mxu0 0
      %2781 = vmatpush1.bf16.msra.mxu0 %v2771
      %2782 = vmatprep.subr.bf16.mxu0 0
      %2783 = vmatpush1.bf16.msra.mxu0 %v2770
      %2784 = vmatprep.subr.bf16.mxu0 0
      %2785 = vmatpush1.bf16.msra.mxu0 %v2769
      %2786 = vmatprep.subr.bf16.mxu0 0
      %2787 = vmatpush1.bf16.msra.mxu0 %v2768
      %2788 = vmatprep.subr.bf16.mxu0 0
      %2789 = vmatpush1.bf16.msra.mxu0 %v2767
      %2790 = vmatprep.subr.bf16.mxu0 0
      %2791 = vmatpush1.bf16.msra.mxu0 %v2766
      %2792 = vmatprep.subr.bf16.mxu0 0
      %2793 = vmatpush1.bf16.msra.mxu0 %v2765
      %2794 = vmatprep.subr.bf16.mxu0 0
      %2795 = vmatpush1.bf16.msra.mxu0 %v2764
      %2796 = vmatprep.subr.bf16.mxu0 0
      %2797 = vmatpush2.bf16.msra.mxu0 0
      %2798 = vmatprep.subr.bf16.mxu0 0
      %2799 = vmatpush2.bf16.msra.mxu0 0
      %2800 = vmatprep.subr.bf16.mxu0 0
      %2801 = vmatpush2.bf16.msra.mxu0 0
      %2802 = vmatprep.subr.bf16.mxu0 0
      %2803 = vmatpush2.bf16.msra.mxu0 0
      %2804 = vmatprep.subr.bf16.mxu0 0
      %2805 = vmatpush2.bf16.msra.mxu0 0
      %2806 = vmatprep.subr.bf16.mxu0 0
      %2807 = vmatpush2.bf16.msra.mxu0 0
      %2808 = vmatprep.subr.bf16.mxu0 0
      %2809 = vmatpush2.bf16.msra.mxu0 0
      %2810 = vmatprep.subr.bf16.mxu0 0
      %2811 = vmatpush2.bf16.msra.mxu0 0
      %2812 = vmatprep.mubr.bf16.mxu0 0
      %2813 = vmatmul.mubr.bf16.gmra.mxu0 %v2708
      %v2814 = vpop.f32.mrf.mxu0
      %v2815 = vadd.f32 %v2731, %v2814
      %v2816 = vpop.f32.mrf.mxu0
      %v2817 = vpop.f32.mrf.mxu0
      %v2818 = vadd.f32 %v2731, %v2817
      %v2819 = vpop.f32.mrf.mxu0
      %2820 = vmatprep.mubr.bf16.mxu0 0
      %2821 = vmatmul.mubr.bf16.gmra.mxu0 %v2709
      %v2822 = vpop.f32.mrf.mxu0
      %v2823 = vadd.f32 %v2731, %v2822
      %v2824 = vpop.f32.mrf.mxu0
      %v2825 = vpop.f32.mrf.mxu0
      %v2826 = vadd.f32 %v2731, %v2825
      %v2827 = vpop.f32.mrf.mxu0
      %2828 = vmatprep.mubr.bf16.mxu0 0
      %2829 = vmatmul.mubr.bf16.gmra.mxu0 %v2710
      %v2830 = vpop.f32.mrf.mxu0
      %v2831 = vadd.f32 %v2731, %v2830
      %v2832 = vpop.f32.mrf.mxu0
      %v2833 = vpop.f32.mrf.mxu0
      %v2834 = vpop.f32.mrf.mxu0
      %2835 = vdwg.mxu0
      %v2836 = vpack.c.bf16 %v2703, %v2703
      %v2837 = vpack.c.bf16 %v2818, %v2815
      %v2838 = vpack.c.bf16 %v2826, %v2823
      %v2839 = vpack.c.bf16 %v2831, %v2831
      %v2841 = vsel %vm456, %v2836, 0
      %v2844 = vsel %vm456, %v2837, 0
      %v2847 = vsel %vm456, %v2838, 0
      %v2850 = vsel %vm456, %v2839, 0
      %2852 = vmatprep.subr.bf16.mxu0 0
      %2853 = vmatpush1.bf16.xpose.msra.mxu0 0
      %2854 = vmatprep.subr.bf16.mxu0 0
      %2855 = vmatpush1.bf16.xpose.msra.mxu0 0
      %2856 = vmatprep.subr.bf16.mxu0 0
      %2857 = vmatpush1.bf16.xpose.msra.mxu0 0
      %2858 = vmatprep.subr.bf16.mxu0 0
      %2859 = vmatpush1.bf16.xpose.msra.mxu0 0
      %2860 = vmatprep.subr.bf16.mxu0 0
      %2861 = vmatpush1.bf16.xpose.msra.mxu0 0
      %2862 = vmatprep.subr.bf16.mxu0 0
      %2863 = vmatpush1.bf16.xpose.msra.mxu0 %v2850
      %2864 = vmatprep.subr.bf16.mxu0 0
      %2865 = vmatpush1.bf16.xpose.msra.mxu0 %v2847
      %2866 = vmatprep.subr.bf16.mxu0 0
      %2867 = vmatpush1.bf16.xpose.msra.mxu0 %v2844
      %2868 = vmatprep.subr.bf16.mxu0 0
      %2869 = vmatpush2.bf16.xpose.msra.mxu0 0
      %2870 = vmatprep.subr.bf16.mxu0 0
      %2871 = vmatpush2.bf16.xpose.msra.mxu0 0
      %2872 = vmatprep.subr.bf16.mxu0 0
      %2873 = vmatpush2.bf16.xpose.msra.mxu0 0
      %2874 = vmatprep.subr.bf16.mxu0 0
      %2875 = vmatpush2.bf16.xpose.msra.mxu0 0
      %2876 = vmatprep.subr.bf16.mxu0 0
      %2877 = vmatpush2.bf16.xpose.msra.mxu0 0
      %2878 = vmatprep.subr.bf16.mxu0 0
      %2879 = vmatpush2.bf16.xpose.msra.mxu0 0
      %2880 = vmatprep.subr.bf16.mxu0 0
      %2881 = vmatpush2.bf16.xpose.msra.mxu0 0
      %2882 = vmatprep.subr.bf16.mxu0 0
      %2883 = vmatpush2.bf16.xpose.msra.mxu0 0
      %2884 = vmatprep.mubr.bf16.mxu0 0
      %2885 = vmatmul.mubr.bf16.gmra.mxu0 %v2841
      %v2886 = vpop.f32.mrf.mxu0
      %v2887 = vadd.f32 0.0, %v2886
      %v2888 = vpop.f32.mrf.mxu0
      %v2889 = vpop.f32.mrf.mxu0
      %v2890 = vpop.f32.mrf.mxu0
      %2891 = vdwg.mxu0
      %v2892 = vsel %vm531, %v2887, -inf
      %2893 = vmax.xlane.f32.xlu0 %v2892
      %v2894 = vpop.xlane.xlu0 %2893
      %v2895 = vsub.f32 %v2887, %v2894
      %v2896 = vmul.f32 %v2895, 1.442695
      %v2897 = vpow.pop %v2896
      %v2898 = vsel %vm531, %v2897, 0.0
      %2899 = vadd.xlane.f32.xlu0 %v2898
      %v2900 = vpop.xlane.xlu0 %2899
      %v2901 = vrcp.pop %v2900
      %v2902 = vmul.f32 %v2897, %v2901
      %v2903 = vpack.c.bf16 %v2902, %v2902
      %2907 = vrot.lane.b32.xlu0 %v2837, 96
      %v2908 = vpop.permute.xlu0 %2907
      %2909 = vrot.lane.b32.xlu0 %v2838, 96
      %v2910 = vpop.permute.xlu0 %2909
      %2911 = vrot.lane.b32.xlu0 %v2839, 96
      %v2912 = vpop.permute.xlu0 %2911
      %v2916 = vsel %vm531, %v2903, 0
      %v2919 = vsel %vm608, %v2912, 0
      %2921 = vmatprep.subr.bf16.mxu0 0
      %2922 = vmatpush1.bf16.msra.mxu0 0
      %2923 = vmatprep.subr.bf16.mxu0 0
      %2924 = vmatpush1.bf16.msra.mxu0 0
      %2925 = vmatprep.subr.bf16.mxu0 0
      %2926 = vmatpush1.bf16.msra.mxu0 0
      %2927 = vmatprep.subr.bf16.mxu0 0
      %2928 = vmatpush1.bf16.msra.mxu0 0
      %2929 = vmatprep.subr.bf16.mxu0 0
      %2930 = vmatpush1.bf16.msra.mxu0 0
      %2931 = vmatprep.subr.bf16.mxu0 0
      %2932 = vmatpush1.bf16.msra.mxu0 %v2919
      %2933 = vmatprep.subr.bf16.mxu0 0
      %2934 = vmatpush1.bf16.msra.mxu0 %v2910
      %2935 = vmatprep.subr.bf16.mxu0 0
      %2936 = vmatpush1.bf16.msra.mxu0 %v2908
      %2937 = vmatprep.subr.bf16.mxu0 0
      %2938 = vmatpush2.bf16.msra.mxu0 0
      %2939 = vmatprep.subr.bf16.mxu0 0
      %2940 = vmatpush2.bf16.msra.mxu0 0
      %2941 = vmatprep.subr.bf16.mxu0 0
      %2942 = vmatpush2.bf16.msra.mxu0 0
      %2943 = vmatprep.subr.bf16.mxu0 0
      %2944 = vmatpush2.bf16.msra.mxu0 0
      %2945 = vmatprep.subr.bf16.mxu0 0
      %2946 = vmatpush2.bf16.msra.mxu0 0
      %2947 = vmatprep.subr.bf16.mxu0 0
      %2948 = vmatpush2.bf16.msra.mxu0 0
      %2949 = vmatprep.subr.bf16.mxu0 0
      %2950 = vmatpush2.bf16.msra.mxu0 0
      %2951 = vmatprep.subr.bf16.mxu0 0
      %2952 = vmatpush2.bf16.msra.mxu0 0
      %2953 = vmatprep.mubr.bf16.mxu0 0
      %2954 = vmatmul.mubr.bf16.gmra.mxu0 %v2916
      %v2955 = vpop.f32.mrf.mxu0
      %v2956 = vadd.f32 0.0, %v2955
      %v2957 = vpop.f32.mrf.mxu0
      %v2958 = vpop.f32.mrf.mxu0
      %v2959 = vpop.f32.mrf.mxu0
      %2960 = vdwg.mxu0
      %2962 = vrot.lane.b32.xlu0 %v2836, 120
      %v2963 = vpop.permute.xlu0 %2962
      %2964 = vrot.lane.b32.xlu0 %v2837, 120
      %v2965 = vpop.permute.xlu0 %2964
      %2966 = vrot.lane.b32.xlu0 %v2838, 120
      %v2967 = vpop.permute.xlu0 %2966
      %2968 = vrot.lane.b32.xlu0 %v2839, 120
      %v2969 = vpop.permute.xlu0 %2968
      %v2971 = vsel %vm456, %v2963, 0
      %v2974 = vsel %vm456, %v2965, 0
      %v2977 = vsel %vm456, %v2967, 0
      %v2980 = vsel %vm456, %v2969, 0
      %2982 = vmatprep.subr.bf16.mxu0 0
      %2983 = vmatpush1.bf16.xpose.msra.mxu0 0
      %2984 = vmatprep.subr.bf16.mxu0 0
      %2985 = vmatpush1.bf16.xpose.msra.mxu0 0
      %2986 = vmatprep.subr.bf16.mxu0 0
      %2987 = vmatpush1.bf16.xpose.msra.mxu0 0
      %2988 = vmatprep.subr.bf16.mxu0 0
      %2989 = vmatpush1.bf16.xpose.msra.mxu0 0
      %2990 = vmatprep.subr.bf16.mxu0 0
      %2991 = vmatpush1.bf16.xpose.msra.mxu0 0
      %2992 = vmatprep.subr.bf16.mxu0 0
      %2993 = vmatpush1.bf16.xpose.msra.mxu0 %v2980
      %2994 = vmatprep.subr.bf16.mxu0 0
      %2995 = vmatpush1.bf16.xpose.msra.mxu0 %v2977
      %2996 = vmatprep.subr.bf16.mxu0 0
      %2997 = vmatpush1.bf16.xpose.msra.mxu0 %v2974
      %2998 = vmatprep.subr.bf16.mxu0 0
      %2999 = vmatpush2.bf16.xpose.msra.mxu0 0
      %3000 = vmatprep.subr.bf16.mxu0 0
      %3001 = vmatpush2.bf16.xpose.msra.mxu0 0
      %3002 = vmatprep.subr.bf16.mxu0 0
      %3003 = vmatpush2.bf16.xpose.msra.mxu0 0
      %3004 = vmatprep.subr.bf16.mxu0 0
      %3005 = vmatpush2.bf16.xpose.msra.mxu0 0
      %3006 = vmatprep.subr.bf16.mxu0 0
      %3007 = vmatpush2.bf16.xpose.msra.mxu0 0
      %3008 = vmatprep.subr.bf16.mxu0 0
      %3009 = vmatpush2.bf16.xpose.msra.mxu0 0
      %3010 = vmatprep.subr.bf16.mxu0 0
      %3011 = vmatpush2.bf16.xpose.msra.mxu0 0
      %3012 = vmatprep.subr.bf16.mxu0 0
      %3013 = vmatpush2.bf16.xpose.msra.mxu0 0
      %3014 = vmatprep.mubr.bf16.mxu0 0
      %3015 = vmatmul.mubr.bf16.gmra.mxu0 %v2971
      %v3016 = vpop.f32.mrf.mxu0
      %v3017 = vadd.f32 0.0, %v3016
      %v3018 = vpop.f32.mrf.mxu0
      %v3019 = vpop.f32.mrf.mxu0
      %v3020 = vpop.f32.mrf.mxu0
      %3021 = vdwg.mxu0
      %v3022 = vsel %vm531, %v3017, -inf
      %3023 = vmax.xlane.f32.xlu0 %v3022
      %v3024 = vpop.xlane.xlu0 %3023
      %v3025 = vsub.f32 %v3017, %v3024
      %v3026 = vmul.f32 %v3025, 1.442695
      %v3027 = vpow.pop %v3026
      %v3028 = vsel %vm531, %v3027, 0.0
      %3029 = vadd.xlane.f32.xlu0 %v3028
      %v3030 = vpop.xlane.xlu0 %3029
      %v3031 = vrcp.pop %v3030
      %v3032 = vmul.f32 %v3027, %v3031
      %v3033 = vpack.c.bf16 %v3032, %v3032
      %3034 = vrot.lane.b32.xlu0 %v2837, 88
      %v3035 = vpop.permute.xlu0 %3034
      %3036 = vrot.lane.b32.xlu0 %v2838, 88
      %v3037 = vpop.permute.xlu0 %3036
      %3038 = vrot.lane.b32.xlu0 %v2839, 88
      %v3039 = vpop.permute.xlu0 %3038
      %v3043 = vsel %vm531, %v3033, 0
      %v3046 = vsel %vm608, %v3039, 0
      %3048 = vmatprep.subr.bf16.mxu0 0
      %3049 = vmatpush1.bf16.msra.mxu0 0
      %3050 = vmatprep.subr.bf16.mxu0 0
      %3051 = vmatpush1.bf16.msra.mxu0 0
      %3052 = vmatprep.subr.bf16.mxu0 0
      %3053 = vmatpush1.bf16.msra.mxu0 0
      %3054 = vmatprep.subr.bf16.mxu0 0
      %3055 = vmatpush1.bf16.msra.mxu0 0
      %3056 = vmatprep.subr.bf16.mxu0 0
      %3057 = vmatpush1.bf16.msra.mxu0 0
      %3058 = vmatprep.subr.bf16.mxu0 0
      %3059 = vmatpush1.bf16.msra.mxu0 %v3046
      %3060 = vmatprep.subr.bf16.mxu0 0
      %3061 = vmatpush1.bf16.msra.mxu0 %v3037
      %3062 = vmatprep.subr.bf16.mxu0 0
      %3063 = vmatpush1.bf16.msra.mxu0 %v3035
      %3064 = vmatprep.subr.bf16.mxu0 0
      %3065 = vmatpush2.bf16.msra.mxu0 0
      %3066 = vmatprep.subr.bf16.mxu0 0
      %3067 = vmatpush2.bf16.msra.mxu0 0
      %3068 = vmatprep.subr.bf16.mxu0 0
      %3069 = vmatpush2.bf16.msra.mxu0 0
      %3070 = vmatprep.subr.bf16.mxu0 0
      %3071 = vmatpush2.bf16.msra.mxu0 0
      %3072 = vmatprep.subr.bf16.mxu0 0
      %3073 = vmatpush2.bf16.msra.mxu0 0
      %3074 = vmatprep.subr.bf16.mxu0 0
      %3075 = vmatpush2.bf16.msra.mxu0 0
      %3076 = vmatprep.subr.bf16.mxu0 0
      %3077 = vmatpush2.bf16.msra.mxu0 0
      %3078 = vmatprep.subr.bf16.mxu0 0
      %3079 = vmatpush2.bf16.msra.mxu0 0
      %3080 = vmatprep.mubr.bf16.mxu0 0
      %3081 = vmatmul.mubr.bf16.gmra.mxu0 %v3043
      %v3082 = vpop.f32.mrf.mxu0
      %v3083 = vadd.f32 0.0, %v3082
      %v3084 = vpop.f32.mrf.mxu0
      %v3085 = vpop.f32.mrf.mxu0
      %v3086 = vpop.f32.mrf.mxu0
      %3087 = vdwg.mxu0
      %3088 = vrot.lane.b32.xlu0 %v2836, 112
      %v3089 = vpop.permute.xlu0 %3088
      %3090 = vrot.lane.b32.xlu0 %v2837, 112
      %v3091 = vpop.permute.xlu0 %3090
      %3092 = vrot.lane.b32.xlu0 %v2838, 112
      %v3093 = vpop.permute.xlu0 %3092
      %3094 = vrot.lane.b32.xlu0 %v2839, 112
      %v3095 = vpop.permute.xlu0 %3094
      %v3097 = vsel %vm456, %v3089, 0
      %v3100 = vsel %vm456, %v3091, 0
      %v3103 = vsel %vm456, %v3093, 0
      %v3106 = vsel %vm456, %v3095, 0
      %3108 = vmatprep.subr.bf16.mxu0 0
      %3109 = vmatpush1.bf16.xpose.msra.mxu0 0
      %3110 = vmatprep.subr.bf16.mxu0 0
      %3111 = vmatpush1.bf16.xpose.msra.mxu0 0
      %3112 = vmatprep.subr.bf16.mxu0 0
      %3113 = vmatpush1.bf16.xpose.msra.mxu0 0
      %3114 = vmatprep.subr.bf16.mxu0 0
      %3115 = vmatpush1.bf16.xpose.msra.mxu0 0
      %3116 = vmatprep.subr.bf16.mxu0 0
      %3117 = vmatpush1.bf16.xpose.msra.mxu0 0
      %3118 = vmatprep.subr.bf16.mxu0 0
      %3119 = vmatpush1.bf16.xpose.msra.mxu0 %v3106
      %3120 = vmatprep.subr.bf16.mxu0 0
      %3121 = vmatpush1.bf16.xpose.msra.mxu0 %v3103
      %3122 = vmatprep.subr.bf16.mxu0 0
      %3123 = vmatpush1.bf16.xpose.msra.mxu0 %v3100
      %3124 = vmatprep.subr.bf16.mxu0 0
      %3125 = vmatpush2.bf16.xpose.msra.mxu0 0
      %3126 = vmatprep.subr.bf16.mxu0 0
      %3127 = vmatpush2.bf16.xpose.msra.mxu0 0
      %3128 = vmatprep.subr.bf16.mxu0 0
      %3129 = vmatpush2.bf16.xpose.msra.mxu0 0
      %3130 = vmatprep.subr.bf16.mxu0 0
      %3131 = vmatpush2.bf16.xpose.msra.mxu0 0
      %3132 = vmatprep.subr.bf16.mxu0 0
      %3133 = vmatpush2.bf16.xpose.msra.mxu0 0
      %3134 = vmatprep.subr.bf16.mxu0 0
      %3135 = vmatpush2.bf16.xpose.msra.mxu0 0
      %3136 = vmatprep.subr.bf16.mxu0 0
      %3137 = vmatpush2.bf16.xpose.msra.mxu0 0
      %3138 = vmatprep.subr.bf16.mxu0 0
      %3139 = vmatpush2.bf16.xpose.msra.mxu0 0
      %3140 = vmatprep.mubr.bf16.mxu0 0
      %3141 = vmatmul.mubr.bf16.gmra.mxu0 %v3097
      %v3142 = vpop.f32.mrf.mxu0
      %v3143 = vadd.f32 0.0, %v3142
      %v3144 = vpop.f32.mrf.mxu0
      %v3145 = vpop.f32.mrf.mxu0
      %v3146 = vpop.f32.mrf.mxu0
      %3147 = vdwg.mxu0
      %v3148 = vsel %vm531, %v3143, -inf
      %3149 = vmax.xlane.f32.xlu0 %v3148
      %v3150 = vpop.xlane.xlu0 %3149
      %v3151 = vsub.f32 %v3143, %v3150
      %v3152 = vmul.f32 %v3151, 1.442695
      %v3153 = vpow.pop %v3152
      %v3154 = vsel %vm531, %v3153, 0.0
      %3155 = vadd.xlane.f32.xlu0 %v3154
      %v3156 = vpop.xlane.xlu0 %3155
      %v3157 = vrcp.pop %v3156
      %v3158 = vmul.f32 %v3153, %v3157
      %v3159 = vpack.c.bf16 %v3158, %v3158
      %3160 = vrot.lane.b32.xlu0 %v2837, 80
      %v3161 = vpop.permute.xlu0 %3160
      %3162 = vrot.lane.b32.xlu0 %v2838, 80
      %v3163 = vpop.permute.xlu0 %3162
      %3164 = vrot.lane.b32.xlu0 %v2839, 80
      %v3165 = vpop.permute.xlu0 %3164
      %v3169 = vsel %vm531, %v3159, 0
      %v3172 = vsel %vm608, %v3165, 0
      %3174 = vmatprep.subr.bf16.mxu0 0
      %3175 = vmatpush1.bf16.msra.mxu0 0
      %3176 = vmatprep.subr.bf16.mxu0 0
      %3177 = vmatpush1.bf16.msra.mxu0 0
      %3178 = vmatprep.subr.bf16.mxu0 0
      %3179 = vmatpush1.bf16.msra.mxu0 0
      %3180 = vmatprep.subr.bf16.mxu0 0
      %3181 = vmatpush1.bf16.msra.mxu0 0
      %3182 = vmatprep.subr.bf16.mxu0 0
      %3183 = vmatpush1.bf16.msra.mxu0 0
      %3184 = vmatprep.subr.bf16.mxu0 0
      %3185 = vmatpush1.bf16.msra.mxu0 %v3172
      %3186 = vmatprep.subr.bf16.mxu0 0
      %3187 = vmatpush1.bf16.msra.mxu0 %v3163
      %3188 = vmatprep.subr.bf16.mxu0 0
      %3189 = vmatpush1.bf16.msra.mxu0 %v3161
      %3190 = vmatprep.subr.bf16.mxu0 0
      %3191 = vmatpush2.bf16.msra.mxu0 0
      %3192 = vmatprep.subr.bf16.mxu0 0
      %3193 = vmatpush2.bf16.msra.mxu0 0
      %3194 = vmatprep.subr.bf16.mxu0 0
      %3195 = vmatpush2.bf16.msra.mxu0 0
      %3196 = vmatprep.subr.bf16.mxu0 0
      %3197 = vmatpush2.bf16.msra.mxu0 0
      %3198 = vmatprep.subr.bf16.mxu0 0
      %3199 = vmatpush2.bf16.msra.mxu0 0
      %3200 = vmatprep.subr.bf16.mxu0 0
      %3201 = vmatpush2.bf16.msra.mxu0 0
      %3202 = vmatprep.subr.bf16.mxu0 0
      %3203 = vmatpush2.bf16.msra.mxu0 0
      %3204 = vmatprep.subr.bf16.mxu0 0
      %3205 = vmatpush2.bf16.msra.mxu0 0
      %3206 = vmatprep.mubr.bf16.mxu0 0
      %3207 = vmatmul.mubr.bf16.gmra.mxu0 %v3169
      %v3208 = vpop.f32.mrf.mxu0
      %v3209 = vadd.f32 0.0, %v3208
      %v3210 = vpop.f32.mrf.mxu0
      %v3211 = vpop.f32.mrf.mxu0
      %v3212 = vpop.f32.mrf.mxu0
      %3213 = vdwg.mxu0
      %3214 = vrot.lane.b32.xlu0 %v2836, 104
      %v3215 = vpop.permute.xlu0 %3214
      %3216 = vrot.lane.b32.xlu0 %v2837, 104
      %v3217 = vpop.permute.xlu0 %3216
      %3218 = vrot.lane.b32.xlu0 %v2838, 104
      %v3219 = vpop.permute.xlu0 %3218
      %3220 = vrot.lane.b32.xlu0 %v2839, 104
      %v3221 = vpop.permute.xlu0 %3220
      %v3223 = vsel %vm456, %v3215, 0
      %v3226 = vsel %vm456, %v3217, 0
      %v3229 = vsel %vm456, %v3219, 0
      %v3232 = vsel %vm456, %v3221, 0
      %3234 = vmatprep.subr.bf16.mxu0 0
      %3235 = vmatpush1.bf16.xpose.msra.mxu0 0
      %3236 = vmatprep.subr.bf16.mxu0 0
      %3237 = vmatpush1.bf16.xpose.msra.mxu0 0
      %3238 = vmatprep.subr.bf16.mxu0 0
      %3239 = vmatpush1.bf16.xpose.msra.mxu0 0
      %3240 = vmatprep.subr.bf16.mxu0 0
      %3241 = vmatpush1.bf16.xpose.msra.mxu0 0
      %3242 = vmatprep.subr.bf16.mxu0 0
      %3243 = vmatpush1.bf16.xpose.msra.mxu0 0
      %3244 = vmatprep.subr.bf16.mxu0 0
      %3245 = vmatpush1.bf16.xpose.msra.mxu0 %v3232
      %3246 = vmatprep.subr.bf16.mxu0 0
      %3247 = vmatpush1.bf16.xpose.msra.mxu0 %v3229
      %3248 = vmatprep.subr.bf16.mxu0 0
      %3249 = vmatpush1.bf16.xpose.msra.mxu0 %v3226
      %3250 = vmatprep.subr.bf16.mxu0 0
      %3251 = vmatpush2.bf16.xpose.msra.mxu0 0
      %3252 = vmatprep.subr.bf16.mxu0 0
      %3253 = vmatpush2.bf16.xpose.msra.mxu0 0
      %3254 = vmatprep.subr.bf16.mxu0 0
      %3255 = vmatpush2.bf16.xpose.msra.mxu0 0
      %3256 = vmatprep.subr.bf16.mxu0 0
      %3257 = vmatpush2.bf16.xpose.msra.mxu0 0
      %3258 = vmatprep.subr.bf16.mxu0 0
      %3259 = vmatpush2.bf16.xpose.msra.mxu0 0
      %3260 = vmatprep.subr.bf16.mxu0 0
      %3261 = vmatpush2.bf16.xpose.msra.mxu0 0
      %3262 = vmatprep.subr.bf16.mxu0 0
      %3263 = vmatpush2.bf16.xpose.msra.mxu0 0
      %3264 = vmatprep.subr.bf16.mxu0 0
      %3265 = vmatpush2.bf16.xpose.msra.mxu0 0
      %3266 = vmatprep.mubr.bf16.mxu0 0
      %3267 = vmatmul.mubr.bf16.gmra.mxu0 %v3223
      %v3268 = vpop.f32.mrf.mxu0
      %v3269 = vadd.f32 0.0, %v3268
      %v3270 = vpop.f32.mrf.mxu0
      %v3271 = vpop.f32.mrf.mxu0
      %v3272 = vpop.f32.mrf.mxu0
      %3273 = vdwg.mxu0
      %v3274 = vsel %vm531, %v3269, -inf
      %3275 = vmax.xlane.f32.xlu0 %v3274
      %v3276 = vpop.xlane.xlu0 %3275
      %v3277 = vsub.f32 %v3269, %v3276
      %v3278 = vmul.f32 %v3277, 1.442695
      %v3279 = vpow.pop %v3278
      %v3280 = vsel %vm531, %v3279, 0.0
      %3281 = vadd.xlane.f32.xlu0 %v3280
      %v3282 = vpop.xlane.xlu0 %3281
      %v3283 = vrcp.pop %v3282
      %v3284 = vmul.f32 %v3279, %v3283
      %v3285 = vpack.c.bf16 %v3284, %v3284
      %3286 = vrot.lane.b32.xlu0 %v2837, 72
      %v3287 = vpop.permute.xlu0 %3286
      %3288 = vrot.lane.b32.xlu0 %v2838, 72
      %v3289 = vpop.permute.xlu0 %3288
      %3290 = vrot.lane.b32.xlu0 %v2839, 72
      %v3291 = vpop.permute.xlu0 %3290
      %v3295 = vsel %vm531, %v3285, 0
      %v3298 = vsel %vm608, %v3291, 0
      %3300 = vmatprep.subr.bf16.mxu0 0
      %3301 = vmatpush1.bf16.msra.mxu0 0
      %3302 = vmatprep.subr.bf16.mxu0 0
      %3303 = vmatpush1.bf16.msra.mxu0 0
      %3304 = vmatprep.subr.bf16.mxu0 0
      %3305 = vmatpush1.bf16.msra.mxu0 0
      %3306 = vmatprep.subr.bf16.mxu0 0
      %3307 = vmatpush1.bf16.msra.mxu0 0
      %3308 = vmatprep.subr.bf16.mxu0 0
      %3309 = vmatpush1.bf16.msra.mxu0 0
      %3310 = vmatprep.subr.bf16.mxu0 0
      %3311 = vmatpush1.bf16.msra.mxu0 %v3298
      %3312 = vmatprep.subr.bf16.mxu0 0
      %3313 = vmatpush1.bf16.msra.mxu0 %v3289
      %3314 = vmatprep.subr.bf16.mxu0 0
      %3315 = vmatpush1.bf16.msra.mxu0 %v3287
      %3316 = vmatprep.subr.bf16.mxu0 0
      %3317 = vmatpush2.bf16.msra.mxu0 0
      %3318 = vmatprep.subr.bf16.mxu0 0
      %3319 = vmatpush2.bf16.msra.mxu0 0
      %3320 = vmatprep.subr.bf16.mxu0 0
      %3321 = vmatpush2.bf16.msra.mxu0 0
      %3322 = vmatprep.subr.bf16.mxu0 0
      %3323 = vmatpush2.bf16.msra.mxu0 0
      %3324 = vmatprep.subr.bf16.mxu0 0
      %3325 = vmatpush2.bf16.msra.mxu0 0
      %3326 = vmatprep.subr.bf16.mxu0 0
      %3327 = vmatpush2.bf16.msra.mxu0 0
      %3328 = vmatprep.subr.bf16.mxu0 0
      %3329 = vmatpush2.bf16.msra.mxu0 0
      %3330 = vmatprep.subr.bf16.mxu0 0
      %3331 = vmatpush2.bf16.msra.mxu0 0
      %3332 = vmatprep.mubr.bf16.mxu0 0
      %3333 = vmatmul.mubr.bf16.gmra.mxu0 %v3295
      %v3334 = vpop.f32.mrf.mxu0
      %v3335 = vadd.f32 0.0, %v3334
      %v3336 = vpop.f32.mrf.mxu0
      %v3337 = vpop.f32.mrf.mxu0
      %v3338 = vpop.f32.mrf.mxu0
      %3339 = vdwg.mxu0
      %3341 = vrot.lane.b32.xlu0 %v3083, 8
      %v3342 = vpop.permute.xlu0 %3341
      %3345 = vrot.lane.b32.xlu0 %v3209, 16
      %v3346 = vpop.permute.xlu0 %3345
      %3349 = vrot.lane.b32.xlu0 %v3335, 24
      %v3350 = vpop.permute.xlu0 %3349
      %v3352 = vsel %vm456, %v2956, %v3342
      %v3353 = vsel %vm1393, %v3352, %v3346
      %v3354 = vsel %vm1399, %v3353, %v3350
      %v3355 = vpack.c.bf16 %v3354, %v3354
      %v3356 = vld [vmem:[%s1 + $0x1e0] sm:$0xf]
      %v3357 = vld [vmem:[%s1 + $0x1e4] sm:$0xf]
      %v3358 = vld [vmem:[%s1 + $0x1e8] sm:$0xf]
      %v3359 = vld [vmem:[%s1 + $0x1ec] sm:$0xf]
      %v3360 = vld [vmem:[%s2 + $0xa0] sm:$0x1]
      %v3361 = vlaneseq
      %v3362 = vshrl.u32 %v3361, 7
      %v3363 = vsub.s32 0, %v3362
      %v3364 = vrot.slane %v3360, %v3363
      %v3369 = vunpack.c.l.b16 %v3356
      %v3370 = vunpack.c.l.b16 %v3357
      %v3371 = vunpack.c.l.b16 %v3358
      %v3372 = vunpack.c.l.b16 %v3359
      %v3373 = vpack.c.b16 %v3370, %v3369
      %v3374 = vpack.c.b16 %v3372, %v3371
      %v3378 = vsel %vm1429, %v3355, 0
      %3380 = vmatprep.subr.bf16.mxu0 0
      %3381 = vmatpush1.bf16.msra.mxu0 0
      %3382 = vmatprep.subr.bf16.mxu0 0
      %3383 = vmatpush1.bf16.msra.mxu0 0
      %3384 = vmatprep.subr.bf16.mxu0 0
      %3385 = vmatpush1.bf16.msra.mxu0 0
      %3386 = vmatprep.subr.bf16.mxu0 0
      %3387 = vmatpush1.bf16.msra.mxu0 0
      %3388 = vmatprep.subr.bf16.mxu0 0
      %3389 = vmatpush1.bf16.msra.mxu0 0
      %3390 = vmatprep.subr.bf16.mxu0 0
      %3391 = vmatpush1.bf16.msra.mxu0 0
      %3392 = vmatprep.subr.bf16.mxu0 0
      %3393 = vmatpush1.bf16.msra.mxu0 %v3374
      %3394 = vmatprep.subr.bf16.mxu0 0
      %3395 = vmatpush1.bf16.msra.mxu0 %v3373
      %3396 = vmatprep.subr.bf16.mxu0 0
      %3397 = vmatpush2.bf16.msra.mxu0 0
      %3398 = vmatprep.subr.bf16.mxu0 0
      %3399 = vmatpush2.bf16.msra.mxu0 0
      %3400 = vmatprep.subr.bf16.mxu0 0
      %3401 = vmatpush2.bf16.msra.mxu0 0
      %3402 = vmatprep.subr.bf16.mxu0 0
      %3403 = vmatpush2.bf16.msra.mxu0 0
      %3404 = vmatprep.subr.bf16.mxu0 0
      %3405 = vmatpush2.bf16.msra.mxu0 0
      %3406 = vmatprep.subr.bf16.mxu0 0
      %3407 = vmatpush2.bf16.msra.mxu0 0
      %3408 = vmatprep.subr.bf16.mxu0 0
      %3409 = vmatpush2.bf16.msra.mxu0 0
      %3410 = vmatprep.subr.bf16.mxu0 0
      %3411 = vmatpush2.bf16.msra.mxu0 0
      %3412 = vmatprep.mubr.bf16.mxu0 0
      %3413 = vmatmul.mubr.bf16.gmra.mxu0 %v3378
      %v3414 = vpop.f32.mrf.mxu0
      %v3415 = vadd.f32 %v3364, %v3414
      %v3416 = vpop.f32.mrf.mxu0
      %v3417 = vpop.f32.mrf.mxu0
      %v3418 = vpop.f32.mrf.mxu0
      %3419 = vdwg.mxu0
      %v3420 = vadd.f32 %v2597, %v3415
      %3421 = vadd.xlane.f32.xlu0 %v3420
      %v3422 = vpop.xlane.xlu0 %3421
      %v3423 = vmul.f32 %v3422, 0.03125
      %v3424 = vmul.f32 %v3420, %v3420
      %3425 = vadd.xlane.f32.xlu0 %v3424
      %v3426 = vpop.xlane.xlu0 %3425
      %v3427 = vmul.f32 %v3426, 0.03125
      %v3428 = vmul.f32 %v3423, %v3423
      %v3429 = vsub.f32 %v3427, %v3428
      %v3430 = vsub.f32 %v3420, %v3423
      %v3431 = vadd.f32 %v3429, 1e-05
      %v3432 = vrsqrt.pop %v3431
      %v3433 = vmul.f32 %v3430, %v3432
      %v3434 = vld [vmem:[%s2 + $0xa8] sm:$0x1]
      %v3435 = vlaneseq
      %v3436 = vshrl.u32 %v3435, 7
      %v3437 = vsub.s32 0, %v3436
      %v3438 = vrot.slane %v3434, %v3437
      %v3439 = vmul.f32 %v3433, %v3438
      %v3440 = vld [vmem:[%s2 + $0xb0] sm:$0x1]
      %v3441 = vlaneseq
      %v3442 = vshrl.u32 %v3441, 7
      %v3443 = vsub.s32 0, %v3442
      %v3444 = vrot.slane %v3440, %v3443
      %v3445 = vadd.f32 %v3439, %v3444
      %v3446 = vpack.c.bf16 %v3445, %v3445
      %v3447 = vld [vmem:[%s1 + $0x1f0] sm:$0xf]
      %v3448 = vld [vmem:[%s1 + $0x1f4] sm:$0xf]
      %v3449 = vld [vmem:[%s1 + $0x1f8] sm:$0xf]
      %v3450 = vld [vmem:[%s1 + $0x1fc] sm:$0xf]
      %v3451 = vld [vmem:[%s1 + $0x200] sm:$0xf]
      %v3452 = vld [vmem:[%s1 + $0x204] sm:$0xf]
      %v3453 = vld [vmem:[%s1 + $0x208] sm:$0xf]
      %v3454 = vld [vmem:[%s1 + $0x20c] sm:$0xf]
      %v3455 = vld [vmem:[%s1 + $0x210] sm:$0xf]
      %v3456 = vld [vmem:[%s1 + $0x214] sm:$0xf]
      %v3457 = vld [vmem:[%s1 + $0x218] sm:$0xf]
      %v3458 = vld [vmem:[%s1 + $0x21c] sm:$0xf]
      %v3459 = vld [vmem:[%s1 + $0x220] sm:$0xf]
      %v3460 = vld [vmem:[%s1 + $0x224] sm:$0xf]
      %v3461 = vld [vmem:[%s1 + $0x228] sm:$0xf]
      %v3462 = vld [vmem:[%s1 + $0x22c] sm:$0xf]
      %v3463 = vld [vmem:[%s2 + $0xb8] sm:$0x1]
      %v3464 = vlaneseq
      %v3465 = vshrl.u32 %v3464, 7
      %v3466 = vsub.s32 0, %v3465
      %v3467 = vrot.slane %v3463, %v3466
      %v3484 = vunpack.c.l.b16 %v3447
      %v3485 = vunpack.c.l.b16 %v3448
      %v3486 = vunpack.c.l.b16 %v3449
      %v3487 = vunpack.c.l.b16 %v3450
      %v3488 = vunpack.c.l.b16 %v3451
      %v3489 = vunpack.c.l.b16 %v3452
      %v3490 = vunpack.c.l.b16 %v3453
      %v3491 = vunpack.c.l.b16 %v3454
      %v3492 = vunpack.c.l.b16 %v3455
      %v3493 = vunpack.c.l.b16 %v3456
      %v3494 = vunpack.c.l.b16 %v3457
      %v3495 = vunpack.c.l.b16 %v3458
      %v3496 = vunpack.c.l.b16 %v3459
      %v3497 = vunpack.c.l.b16 %v3460
      %v3498 = vunpack.c.l.b16 %v3461
      %v3499 = vunpack.c.l.b16 %v3462
      %v3500 = vpack.c.b16 %v3485, %v3484
      %v3501 = vpack.c.b16 %v3487, %v3486
      %v3502 = vpack.c.b16 %v3489, %v3488
      %v3503 = vpack.c.b16 %v3491, %v3490
      %v3504 = vpack.c.b16 %v3493, %v3492
      %v3505 = vpack.c.b16 %v3495, %v3494
      %v3506 = vpack.c.b16 %v3497, %v3496
      %v3507 = vpack.c.b16 %v3499, %v3498
      %3516 = vmatprep.subr.bf16.mxu0 0
      %3517 = vmatpush1.bf16.msra.mxu0 %v3507
      %3518 = vmatprep.subr.bf16.mxu0 0
      %3519 = vmatpush1.bf16.msra.mxu0 %v3506
      %3520 = vmatprep.subr.bf16.mxu0 0
      %3521 = vmatpush1.bf16.msra.mxu0 %v3505
      %3522 = vmatprep.subr.bf16.mxu0 0
      %3523 = vmatpush1.bf16.msra.mxu0 %v3504
      %3524 = vmatprep.subr.bf16.mxu0 0
      %3525 = vmatpush1.bf16.msra.mxu0 %v3503
      %3526 = vmatprep.subr.bf16.mxu0 0
      %3527 = vmatpush1.bf16.msra.mxu0 %v3502
      %3528 = vmatprep.subr.bf16.mxu0 0
      %3529 = vmatpush1.bf16.msra.mxu0 %v3501
      %3530 = vmatprep.subr.bf16.mxu0 0
      %3531 = vmatpush1.bf16.msra.mxu0 %v3500
      %3532 = vmatprep.subr.bf16.mxu0 0
      %3533 = vmatpush2.bf16.msra.mxu0 0
      %3534 = vmatprep.subr.bf16.mxu0 0
      %3535 = vmatpush2.bf16.msra.mxu0 0
      %3536 = vmatprep.subr.bf16.mxu0 0
      %3537 = vmatpush2.bf16.msra.mxu0 0
      %3538 = vmatprep.subr.bf16.mxu0 0
      %3539 = vmatpush2.bf16.msra.mxu0 0
      %3540 = vmatprep.subr.bf16.mxu0 0
      %3541 = vmatpush2.bf16.msra.mxu0 0
      %3542 = vmatprep.subr.bf16.mxu0 0
      %3543 = vmatpush2.bf16.msra.mxu0 0
      %3544 = vmatprep.subr.bf16.mxu0 0
      %3545 = vmatpush2.bf16.msra.mxu0 0
      %3546 = vmatprep.subr.bf16.mxu0 0
      %3547 = vmatpush2.bf16.msra.mxu0 0
      %3548 = vmatprep.mubr.bf16.mxu0 0
      %3549 = vmatmul.mubr.bf16.gmra.mxu0 %v3446
      %v3550 = vpop.f32.mrf.mxu0
      %v3551 = vadd.f32 %v3467, %v3550
      %v3552 = vpop.f32.mrf.mxu0
      %v3553 = vpop.f32.mrf.mxu0
      %v3554 = vpop.f32.mrf.mxu0
      %3555 = vdwg.mxu0
      %v3556 = vmax.f32 %v3551, 0.0
      %v3557 = vpack.c.bf16 %v3556, %v3556
      %v3558 = vld [vmem:[%s1 + $0x230] sm:$0xf]
      %v3559 = vld [vmem:[%s1 + $0x234] sm:$0xf]
      %v3560 = vld [vmem:[%s1 + $0x238] sm:$0xf]
      %v3561 = vld [vmem:[%s1 + $0x23c] sm:$0xf]
      %v3562 = vld [vmem:[%s1 + $0x240] sm:$0xf]
      %v3563 = vld [vmem:[%s1 + $0x244] sm:$0xf]
      %v3564 = vld [vmem:[%s1 + $0x248] sm:$0xf]
      %v3565 = vld [vmem:[%s1 + $0x24c] sm:$0xf]
      %v3566 = vld [vmem:[%s1 + $0x250] sm:$0xf]
      %v3567 = vld [vmem:[%s1 + $0x254] sm:$0xf]
      %v3568 = vld [vmem:[%s1 + $0x258] sm:$0xf]
      %v3569 = vld [vmem:[%s1 + $0x25c] sm:$0xf]
      %v3570 = vld [vmem:[%s1 + $0x260] sm:$0xf]
      %v3571 = vld [vmem:[%s1 + $0x264] sm:$0xf]
      %v3572 = vld [vmem:[%s1 + $0x268] sm:$0xf]
      %v3573 = vld [vmem:[%s1 + $0x26c] sm:$0xf]
      %v3574 = vld [vmem:[%s2 + $0xc0] sm:$0x1]
      %v3575 = vlaneseq
      %v3576 = vshrl.u32 %v3575, 7
      %v3577 = vsub.s32 0, %v3576
      %v3578 = vrot.slane %v3574, %v3577
      %v3595 = vunpack.c.l.b16 %v3558
      %v3596 = vunpack.c.l.b16 %v3559
      %v3597 = vunpack.c.l.b16 %v3560
      %v3598 = vunpack.c.l.b16 %v3561
      %v3599 = vunpack.c.l.b16 %v3562
      %v3600 = vunpack.c.l.b16 %v3563
      %v3601 = vunpack.c.l.b16 %v3564
      %v3602 = vunpack.c.l.b16 %v3565
      %v3603 = vunpack.c.l.b16 %v3566
      %v3604 = vunpack.c.l.b16 %v3567
      %v3605 = vunpack.c.l.b16 %v3568
      %v3606 = vunpack.c.l.b16 %v3569
      %v3607 = vunpack.c.l.b16 %v3570
      %v3608 = vunpack.c.l.b16 %v3571
      %v3609 = vunpack.c.l.b16 %v3572
      %v3610 = vunpack.c.l.b16 %v3573
      %v3611 = vpack.c.b16 %v3596, %v3595
      %v3612 = vpack.c.b16 %v3598, %v3597
      %v3613 = vpack.c.b16 %v3600, %v3599
      %v3614 = vpack.c.b16 %v3602, %v3601
      %v3615 = vpack.c.b16 %v3604, %v3603
      %v3616 = vpack.c.b16 %v3606, %v3605
      %v3617 = vpack.c.b16 %v3608, %v3607
      %v3618 = vpack.c.b16 %v3610, %v3609
      %3627 = vmatprep.subr.bf16.mxu0 0
      %3628 = vmatpush1.bf16.msra.mxu0 %v3618
      %3629 = vmatprep.subr.bf16.mxu0 0
      %3630 = vmatpush1.bf16.msra.mxu0 %v3617
      %3631 = vmatprep.subr.bf16.mxu0 0
      %3632 = vmatpush1.bf16.msra.mxu0 %v3616
      %3633 = vmatprep.subr.bf16.mxu0 0
      %3634 = vmatpush1.bf16.msra.mxu0 %v3615
      %3635 = vmatprep.subr.bf16.mxu0 0
      %3636 = vmatpush1.bf16.msra.mxu0 %v3614
      %3637 = vmatprep.subr.bf16.mxu0 0
      %3638 = vmatpush1.bf16.msra.mxu0 %v3613
      %3639 = vmatprep.subr.bf16.mxu0 0
      %3640 = vmatpush1.bf16.msra.mxu0 %v3612
      %3641 = vmatprep.subr.bf16.mxu0 0
      %3642 = vmatpush1.bf16.msra.mxu0 %v3611
      %3643 = vmatprep.subr.bf16.mxu0 0
      %3644 = vmatpush2.bf16.msra.mxu0 0
      %3645 = vmatprep.subr.bf16.mxu0 0
      %3646 = vmatpush2.bf16.msra.mxu0 0
      %3647 = vmatprep.subr.bf16.mxu0 0
      %3648 = vmatpush2.bf16.msra.mxu0 0
      %3649 = vmatprep.subr.bf16.mxu0 0
      %3650 = vmatpush2.bf16.msra.mxu0 0
      %3651 = vmatprep.subr.bf16.mxu0 0
      %3652 = vmatpush2.bf16.msra.mxu0 0
      %3653 = vmatprep.subr.bf16.mxu0 0
      %3654 = vmatpush2.bf16.msra.mxu0 0
      %3655 = vmatprep.subr.bf16.mxu0 0
      %3656 = vmatpush2.bf16.msra.mxu0 0
      %3657 = vmatprep.subr.bf16.mxu0 0
      %3658 = vmatpush2.bf16.msra.mxu0 0
      %3659 = vmatprep.mubr.bf16.mxu0 0
      %3660 = vmatmul.mubr.bf16.gmra.mxu0 %v3557
      %v3661 = vpop.f32.mrf.mxu0
      %v3662 = vadd.f32 %v3578, %v3661
      %v3663 = vpop.f32.mrf.mxu0
      %v3664 = vpop.f32.mrf.mxu0
      %v3665 = vpop.f32.mrf.mxu0
      %3666 = vdwg.mxu0
      %v3667 = vadd.f32 %v3445, %v3662
      %3668 = vadd.xlane.f32.xlu0 %v3667
      %v3669 = vpop.xlane.xlu0 %3668
      %v3670 = vmul.f32 %v3669, 0.03125
      %v3671 = vmul.f32 %v3667, %v3667
      %3672 = vadd.xlane.f32.xlu0 %v3671
      %v3673 = vpop.xlane.xlu0 %3672
      %v3674 = vmul.f32 %v3673, 0.03125
      %v3675 = vmul.f32 %v3670, %v3670
      %v3676 = vsub.f32 %v3674, %v3675
      %v3677 = vsub.f32 %v3667, %v3670
      %v3678 = vadd.f32 %v3676, 1e-05
      %v3679 = vrsqrt.pop %v3678
      %v3680 = vmul.f32 %v3677, %v3679
      %v3681 = vld [vmem:[%s2 + $0xc8] sm:$0x1]
      %v3682 = vlaneseq
      %v3683 = vshrl.u32 %v3682, 7
      %v3684 = vsub.s32 0, %v3683
      %v3685 = vrot.slane %v3681, %v3684
      %v3686 = vmul.f32 %v3680, %v3685
      %v3687 = vld [vmem:[%s2 + $0xd0] sm:$0x1]
      %v3688 = vlaneseq
      %v3689 = vshrl.u32 %v3688, 7
      %v3690 = vsub.s32 0, %v3689
      %v3691 = vrot.slane %v3687, %v3690
      %v3692 = vadd.f32 %v3686, %v3691
      %v3693 = vpack.c.bf16 %v3692, %v3692
      %v3694 = vld [vmem:[%s1 + $0x270] sm:$0xf]
      %v3695 = vld [vmem:[%s1 + $0x274] sm:$0xf]
      %v3696 = vld [vmem:[%s1 + $0x278] sm:$0xf]
      %v3697 = vld [vmem:[%s1 + $0x27c] sm:$0xf]
      %v3698 = vld [vmem:[%s1 + $0x280] sm:$0xf]
      %v3699 = vld [vmem:[%s1 + $0x284] sm:$0xf]
      %v3700 = vld [vmem:[%s1 + $0x288] sm:$0xf]
      %v3701 = vld [vmem:[%s1 + $0x28c] sm:$0xf]
      %v3702 = vld [vmem:[%s1 + $0x290] sm:$0xf]
      %v3703 = vld [vmem:[%s1 + $0x294] sm:$0xf]
      %v3704 = vld [vmem:[%s1 + $0x298] sm:$0xf]
      %v3705 = vld [vmem:[%s1 + $0x29c] sm:$0xf]
      %v3706 = vld [vmem:[%s1 + $0x2a0] sm:$0xf]
      %v3707 = vld [vmem:[%s1 + $0x2a4] sm:$0xf]
      %v3708 = vld [vmem:[%s1 + $0x2a8] sm:$0xf]
      %v3709 = vld [vmem:[%s1 + $0x2ac] sm:$0xf]
      %v3710 = vld [vmem:[%s2 + $0xd8] sm:$0x1]
      %v3711 = vlaneseq
      %v3712 = vshrl.u32 %v3711, 7
      %v3713 = vsub.s32 0, %v3712
      %v3714 = vrot.slane %v3710, %v3713
      %v3731 = vunpack.c.l.b16 %v3694
      %v3732 = vunpack.c.l.b16 %v3695
      %v3733 = vunpack.c.l.b16 %v3696
      %v3734 = vunpack.c.l.b16 %v3697
      %v3735 = vunpack.c.l.b16 %v3698
      %v3736 = vunpack.c.l.b16 %v3699
      %v3737 = vunpack.c.l.b16 %v3700
      %v3738 = vunpack.c.l.b16 %v3701
      %v3739 = vunpack.c.l.b16 %v3702
      %v3740 = vunpack.c.l.b16 %v3703
      %v3741 = vunpack.c.l.b16 %v3704
      %v3742 = vunpack.c.l.b16 %v3705
      %v3743 = vunpack.c.l.b16 %v3706
      %v3744 = vunpack.c.l.b16 %v3707
      %v3745 = vunpack.c.l.b16 %v3708
      %v3746 = vunpack.c.l.b16 %v3709
      %v3747 = vpack.c.b16 %v3732, %v3731
      %v3748 = vpack.c.b16 %v3734, %v3733
      %v3749 = vpack.c.b16 %v3736, %v3735
      %v3750 = vpack.c.b16 %v3738, %v3737
      %v3751 = vpack.c.b16 %v3740, %v3739
      %v3752 = vpack.c.b16 %v3742, %v3741
      %v3753 = vpack.c.b16 %v3744, %v3743
      %v3754 = vpack.c.b16 %v3746, %v3745
      %3763 = vmatprep.subr.bf16.mxu0 0
      %3764 = vmatpush1.bf16.msra.mxu0 %v3754
      %3765 = vmatprep.subr.bf16.mxu0 0
      %3766 = vmatpush1.bf16.msra.mxu0 %v3753
      %3767 = vmatprep.subr.bf16.mxu0 0
      %3768 = vmatpush1.bf16.msra.mxu0 %v3752
      %3769 = vmatprep.subr.bf16.mxu0 0
      %3770 = vmatpush1.bf16.msra.mxu0 %v3751
      %3771 = vmatprep.subr.bf16.mxu0 0
      %3772 = vmatpush1.bf16.msra.mxu0 %v3750
      %3773 = vmatprep.subr.bf16.mxu0 0
      %3774 = vmatpush1.bf16.msra.mxu0 %v3749
      %3775 = vmatprep.subr.bf16.mxu0 0
      %3776 = vmatpush1.bf16.msra.mxu0 %v3748
      %3777 = vmatprep.subr.bf16.mxu0 0
      %3778 = vmatpush1.bf16.msra.mxu0 %v3747
      %3779 = vmatprep.subr.bf16.mxu0 0
      %3780 = vmatpush2.bf16.msra.mxu0 0
      %3781 = vmatprep.subr.bf16.mxu0 0
      %3782 = vmatpush2.bf16.msra.mxu0 0
      %3783 = vmatprep.subr.bf16.mxu0 0
      %3784 = vmatpush2.bf16.msra.mxu0 0
      %3785 = vmatprep.subr.bf16.mxu0 0
      %3786 = vmatpush2.bf16.msra.mxu0 0
      %3787 = vmatprep.subr.bf16.mxu0 0
      %3788 = vmatpush2.bf16.msra.mxu0 0
      %3789 = vmatprep.subr.bf16.mxu0 0
      %3790 = vmatpush2.bf16.msra.mxu0 0
      %3791 = vmatprep.subr.bf16.mxu0 0
      %3792 = vmatpush2.bf16.msra.mxu0 0
      %3793 = vmatprep.subr.bf16.mxu0 0
      %3794 = vmatpush2.bf16.msra.mxu0 0
      %3795 = vmatprep.mubr.bf16.mxu0 0
      %3796 = vmatmul.mubr.bf16.gmra.mxu0 %v3693
      %v3797 = vpop.f32.mrf.mxu0
      %v3798 = vadd.f32 %v3714, %v3797
      %v3799 = vpop.f32.mrf.mxu0
      %v3800 = vpop.f32.mrf.mxu0
      %v3801 = vpop.f32.mrf.mxu0
      %3802 = vdwg.mxu0
      %3803 = vst [vmem:[%s168] sm:$0xff] %v3798
      %p3804 = scmp.lt.s32.totalorder %s14, 1
      %s3805 = scalar_select %p3804, %s14, 1
      %s3806 = smul.addr %s3805, 8
      %s3807 = scalar_lea.vmem %s3, %s3806
      // Predicated region
      $region33: #{model_forward.1} parent=31 // pred_check
        %p3808 = pneg %p100
      $region34: #{model_forward.1} parent=31 // pred_check_branch
        %3810 = sbr.rel (%p3808) target = $region36
      $region35: #{model_forward.1} parent=31 // pred_region
        _
      $region36: #{model_forward.1} parent=31 // pred_fallthru
        _
    $region32: #{model_forward.1} parent=5 // pred_fallthru
      _
    %p3811 = scmp.le.s32.totalorder 2, %s9
    // Predicated region
    $region37: #{model_forward.1} parent=5 // pred_check
      %p3812 = pneg %p3811
    $region38: #{model_forward.1} parent=5 // pred_check_branch
      %3814 = sbr.rel (%p3812) target = $region40
    $region39: #{model_forward.1} parent=5 // pred_region
      %s3815 = ssub.s32 %s9, 2
      // Predicated region
      $region41: #{model_forward.1} parent=39 // pred_check
        %p3816 = pneg %p106
      $region42: #{model_forward.1} parent=39 // pred_check_branch
        %3818 = sbr.rel (%p3816) target = $region44
      $region43: #{model_forward.1} parent=39 // pred_region
        %p3819 = scmp.lt.s32.totalorder %s15, 1
        %s3820 = scalar_select %p3819, %s15, 1
        %s3821 = smul.addr %s3820, 8
        %s3822 = scalar_lea.vmem %s3, %s3821
      $region44: #{model_forward.1} parent=39 // pred_fallthru
        _
    $region40: #{model_forward.1} parent=5 // pred_fallthru
      _
  $region6: #{model_forward.1} parent=0 // loop_footer
    %s13 = sadd.s32 1, %s9
  $region7: #{model_forward.1} parent=0 // loop_footer_branch
    %8 = sbr.rel target = $region3
  $region8: #{model_forward.1} parent=0 // loop_exit
    _

</llo_original>
